<compile_context>
chip_gen: v7x
topology: tpu7x:2x2x1
jax: 0.10.0
libtpu: 0.0.40
codegen_flags: <defaults>
</compile_context>

<pallas_src>
import jax
import jax.numpy as jnp
from jax import lax
from jax.experimental import pallas as pl
from jax.experimental.pallas import tpu as pltpu


def _round_up(x, m):
    return ((x + m - 1) // m) * m


def _largest_divisor_at_most(n, m):
    m = max(1, min(n, m))
    for d in range(m, 0, -1):
        if n % d == 0:
            return d
    return 1


# ----------------------------------------------------------------------------
# Fused kernel: all LSTM layers + FC head for one batch block.
# ----------------------------------------------------------------------------
def make_fused_kernel(n_layers, n_head, T, Tc, Bpc, Hp):
    n_chunks = T // Tc
    chunk_rows = Tc * Bpc

    def kernel(*refs):
        # refs: x, (wih, whh, bias) per LSTM layer, (w, b) per head layer,
        #       out, then scratch (proj_scr, seq_scr).
        x_ref = refs[0]                       # [T*Bpc, Ep] bf16, time-major
        idx = 1
        lstm_refs = []
        for _ in range(n_layers):
            lstm_refs.append((refs[idx], refs[idx + 1], refs[idx + 2]))
            idx += 3
        head_refs = []
        for _ in range(n_head):
            head_refs.append((refs[idx], refs[idx + 1]))
            idx += 2
        out_ref = refs[idx]
        proj_scr = refs[idx + 1]              # [Tc*Bpc, 4*Hp] f32 gate pre-acts
        seq_scr = refs[idx + 2]               # [T*Bpc, Hp] bf16 inter-layer h

        h_last = None
        for l, (wih_ref, whh_ref, b_ref) in enumerate(lstm_refs):
            write_seq = l < n_layers - 1      # last layer only needs final h

            def chunk_body(ci, carry, l=l, wih_ref=wih_ref, whh_ref=whh_ref,
                           b_ref=b_ref, write_seq=write_seq):
                h, c = carry
                row0 = pl.multiple_of(ci * chunk_rows, Bpc)

                # Hoisted input projection for this time chunk: one batched
                # bf16 x bf16 -> f32 matmul over Tc steps, bias folded in.
                # (Read of seq_scr happens before any write to the same rows
                # below; same-ref program order is preserved by Pallas.)
                if l == 0:
                    x_chunk = x_ref[pl.ds(row0, chunk_rows), :]
                else:
                    x_chunk = seq_scr[pl.ds(row0, chunk_rows), :]
                proj_scr[...] = (
                    jnp.dot(x_chunk, wih_ref[...],
                            preferred_element_type=jnp.float32) + b_ref[...])

                def step(t, carry2):
                    h, c = carry2
                    r = pl.multiple_of(t * Bpc, Bpc)
                    gates = proj_scr[pl.ds(r, Bpc), :] + jnp.dot(
                        h.astype(jnp.bfloat16), whh_ref[...],
                        preferred_element_type=jnp.float32)
                    # Gate columns are 128-lane-aligned blocks: [i | f | g | o].
                    i_g = jax.nn.sigmoid(gates[:, 0 * Hp:1 * Hp])
                    f_g = jax.nn.sigmoid(gates[:, 1 * Hp:2 * Hp])
                    g_g = jnp.tanh(gates[:, 2 * Hp:3 * Hp])
                    o_g = jax.nn.sigmoid(gates[:, 3 * Hp:4 * Hp])
                    c_new = f_g * c + i_g * g_g
                    h_new = o_g * jnp.tanh(c_new)
                    if write_seq:
                        seq_scr[pl.ds(row0 + r, Bpc), :] = (
                            h_new.astype(jnp.bfloat16))
                    return (h_new, c_new)

                # Partial unroll: keeps LLO visibility without exploding code
                # size / vreg live ranges at production Tc.
                return lax.fori_loop(0, Tc, step, (h, c), unroll=min(Tc, 8))

            h0 = jnp.zeros((Bpc, Hp), jnp.float32)
            c0 = jnp.zeros((Bpc, Hp), jnp.float32)
            h_last, _ = lax.fori_loop(0, n_chunks, chunk_body, (h0, c0))

        # FC head (Linear + LeakyReLU; Dropout/BatchNorm are inference
        # identities: p=0, bn=False).
        out = h_last
        for (w_ref, b_ref) in head_refs:
            y = jnp.dot(out.astype(jnp.bfloat16), w_ref[...],
                        preferred_element_type=jnp.float32) + b_ref[...]
            out = jnp.where(y > 0, y, 0.01 * y)
        out_ref[...] = out.astype(out_ref.dtype)

    return kernel


# ----------------------------------------------------------------------------
# DeepTextModel forward: parameter padding / layout + the fused pallas_call.
# ----------------------------------------------------------------------------
def deep_text_forward(X, emb_matrix, lstm_params, head_params,
                      batch_blocks=2, time_chunk=4):
    # batch_blocks=2 shards batch halves across the two v7x TensorCores via a
    # "parallel" grid axis (use 1 on v5e/v6e with tiny batches).
    # time_chunk bounds the projection scratch; pick ~64 at production T
    # (roughly half that on v7x's 64 MiB VMEM).
    B, T = X.shape
    E = emb_matrix.shape[1]
    H = lstm_params[0][1].shape[1]            # w_hh: [4H, H]

    Bpc = _round_up(max((B + batch_blocks - 1) // batch_blocks, 1), 16)  # bf16 sublane tile
    Ep = _round_up(E, 128)                    # lane multiple
    Hp = _round_up(H, 128)
    Tc = _largest_divisor_at_most(T, time_chunk)
    Bp_total = batch_blocks * Bpc

    # Embedding gather directly time-major, grouped by batch block:
    # layout [block, t, local_b, e] flattened to [block*T*Bpc, Ep], bf16.
    x_tbe = emb_matrix[X.T].astype(jnp.float32)               # [T, B, E]
    x_pad = jnp.zeros((T, Bp_total, Ep), jnp.float32).at[:, :B, :E].set(x_tbe)
    x_blk = x_pad.reshape(T, batch_blocks, Bpc, Ep).transpose(1, 0, 2, 3)
    x_flat = x_blk.reshape(batch_blocks * T * Bpc, Ep).astype(jnp.bfloat16)

    # LSTM weights: transpose to [in, 4H], gate g (order i,f,g,o) at a
    # 128-aligned column block; zero padding keeps padded hidden lanes at 0.
    lstm_w = []
    in_dim, in_p = E, Ep
    for (w_ih, w_hh, b_ih, b_hh) in lstm_params:
        wih_t = jnp.zeros((in_p, 4 * Hp), jnp.float32)
        whh_t = jnp.zeros((Hp, 4 * Hp), jnp.float32)
        bias = jnp.zeros((1, 4 * Hp), jnp.float32)
        b_sum = b_ih + b_hh
        for g in range(4):
            wih_t = wih_t.at[:in_dim, g * Hp:g * Hp + H].set(
                w_ih[g * H:(g + 1) * H, :].T)
            whh_t = whh_t.at[:H, g * Hp:g * Hp + H].set(
                w_hh[g * H:(g + 1) * H, :].T)
            bias = bias.at[0, g * Hp:g * Hp + H].set(b_sum[g * H:(g + 1) * H])
        lstm_w.append((wih_t.astype(jnp.bfloat16),
                       whh_t.astype(jnp.bfloat16),
                       bias))                                   # bias stays f32
        in_dim, in_p = H, Hp

    # FC-head weights: transpose to [din, dout], zero-pad to lane-dense tiles.
    head_w = []
    din, din_p = H, Hp
    for (w, b) in head_params:
        dout = w.shape[0]
        dout_p = _round_up(max(dout, 128), 128)
        wt = jnp.zeros((din_p, dout_p), jnp.float32).at[:din, :dout].set(w.T)
        bp = jnp.zeros((1, dout_p), jnp.float32).at[0, :dout].set(b)
        head_w.append((wt.astype(jnp.bfloat16), bp))
        din, din_p = dout, dout_p

    out_dim = head_params[-1][0].shape[0] if head_params else H
    out_p = head_w[-1][0].shape[1] if head_w else Hp

    kernel = make_fused_kernel(len(lstm_w), len(head_w), T, Tc, Bpc, Hp)

    # Grid-invariant operands (weights/biases): whole-array VMEM residency,
    # no per-iteration blocking / double-buffering.
    vmem_resident = pl.BlockSpec(memory_space=pltpu.MemorySpace.VMEM)

    args = [x_flat]
    in_specs = [pl.BlockSpec((T * Bpc, Ep), lambda i: (i, 0))]
    for tup in lstm_w + head_w:
        for a in tup:
            args.append(a)
            in_specs.append(vmem_resident)

    out_pad = pl.pallas_call(
        kernel,
        out_shape=jax.ShapeDtypeStruct((batch_blocks * Bpc, out_p),
                                       jnp.float32),
        grid=(batch_blocks,),
        in_specs=in_specs,
        out_specs=pl.BlockSpec((Bpc, out_p), lambda i: (i, 0)),
        scratch_shapes=[
            pltpu.VMEM((Tc * Bpc, 4 * Hp), jnp.float32),   # chunked gate pre-acts
            pltpu.VMEM((T * Bpc, Hp), jnp.bfloat16),       # inter-layer h (bf16)
        ],
        compiler_params=pltpu.CompilerParams(
            dimension_semantics=("parallel",)),
    )(*args)

    return out_pad[:B, :out_dim]


# ----------------------------------------------------------------------------
# Pure-JAX reference (unpadded).  matmul_dtype=f32 -> exact module semantics;
# matmul_dtype=bf16 -> same cast points as the kernel (tight check).
# ----------------------------------------------------------------------------
def reference_forward(X, emb_matrix, lstm_params, head_params,
                      matmul_dtype=jnp.float32):
    md = matmul_dtype
    x = emb_matrix[X].astype(jnp.float32)       # [B, T, E]
    B = x.shape[0]
    last_h = None
    for (w_ih, w_hh, b_ih, b_hh) in lstm_params:
        H = w_hh.shape[1]
        x_in = jnp.swapaxes(x, 0, 1).astype(md)  # [T, B, in]
        wih_t = w_ih.T.astype(md)
        whh_t = w_hh.T.astype(md)
        bias = (b_ih + b_hh).astype(jnp.float32)

        def step(carry, x_t):
            h, c = carry
            g = (jnp.dot(x_t, wih_t, preferred_element_type=jnp.float32)
                 + jnp.dot(h.astype(md), whh_t,
                           preferred_element_type=jnp.float32)
                 + bias)
            i = jax.nn.sigmoid(g[:, :H])
            f = jax.nn.sigmoid(g[:, H:2 * H])
            gg = jnp.tanh(g[:, 2 * H:3 * H])
            o = jax.nn.sigmoid(g[:, 3 * H:])
            c = f * c + i * gg
            h = o * jnp.tanh(c)
            return (h, c), h

        init = (jnp.zeros((B, H), jnp.float32), jnp.zeros((B, H), jnp.float32))
        (h, _), hs = lax.scan(step, init, x_in)
        x = jnp.swapaxes(hs, 0, 1)
        last_h = h

    out = last_h
    for (w, b) in head_params:
        y = (jnp.dot(out.astype(md), w.T.astype(md),
                     preferred_element_type=jnp.float32) + b)
        out = jnp.where(y > 0, y, 0.01 * y)
    return out


# ----------------------------------------------------------------------------
# Main: deterministic params + inputs, run once, verify, print KERNEL_OK.
# ----------------------------------------------------------------------------
if __name__ == "__main__":
    B, T = 2, 8
    vocab_size = 64
    embed_dim = 16
    hidden_dim = 32
    n_layers = 2
    head_layers = [hidden_dim, 24, 8]            # head_layers[0] == output_dim

    key = jax.random.PRNGKey(0)
    keys = jax.random.split(key, 16)
    ki = iter(keys)

    def u(k, shape, scale=0.1):
        return (jax.random.uniform(k, shape, jnp.float32) * 2.0 - 1.0) * scale

    # nn.Embedding weight (embedding_matrix path of __init__).
    emb_matrix = u(next(ki), (vocab_size, embed_dim))

    # torch.nn.LSTM params per layer: weight_ih (4H,in), weight_hh (4H,H),
    # bias_ih (4H,), bias_hh (4H,).  Gate order [i, f, g, o].
    lstm_params = []
    in_dim = embed_dim
    for _ in range(n_layers):
        w_ih = u(next(ki), (4 * hidden_dim, in_dim))
        w_hh = u(next(ki), (4 * hidden_dim, hidden_dim))
        b_ih = u(next(ki), (4 * hidden_dim,))
        b_hh = u(next(ki), (4 * hidden_dim,))
        lstm_params.append((w_ih, w_hh, b_ih, b_hh))
        in_dim = hidden_dim

    # fc-head: Linear(inp, out) weight (out, inp), bias (out,).
    head_params = []
    for i in range(1, len(head_layers)):
        w = u(next(ki), (head_layers[i], head_layers[i - 1]))
        b = u(next(ki), (head_layers[i],))
        head_params.append((w, b))

    # Token input [B, T] (X.long() in torch).
    X = jax.random.randint(next(ki), (B, T), 0, vocab_size, dtype=jnp.int32)

    out = deep_text_forward(X, emb_matrix, lstm_params, head_params,
                            batch_blocks=2, time_chunk=4)
    out = jax.block_until_ready(out)
    assert out.shape == (B, head_layers[-1]), out.shape

    # (a) Tight check vs. a reference with the SAME bf16 cast points.
    ref_bf16 = reference_forward(X, emb_matrix, lstm_params, head_params,
                                 matmul_dtype=jnp.bfloat16)
    ref_bf16 = jax.block_until_ready(ref_bf16)
    assert jnp.allclose(out, ref_bf16, atol=5e-3, rtol=5e-3), (
        f"bf16-matched max abs diff = {jnp.max(jnp.abs(out - ref_bf16))}")

    # (b) Semantic check vs. the full-f32 module forward (bf16 MXU tolerance).
    ref_f32 = reference_forward(X, emb_matrix, lstm_params, head_params,
                                matmul_dtype=jnp.float32)
    ref_f32 = jax.block_until_ready(ref_f32)
    assert jnp.allclose(out, ref_f32, atol=2.5e-2, rtol=2.5e-2), (
        f"f32 max abs diff = {jnp.max(jnp.abs(out - ref_f32))}")

    print("KERNEL_OK")
</pallas_src>

<mosaic_0001>
module attributes {stable_mosaic.version = 11 : i64} {
  func.func @kernel(%arg0: i32, %arg1: memref<128x128xbf16, #tpu.memory_space<vmem>>, %arg2: memref<128x512xbf16, #tpu.memory_space<vmem>>, %arg3: memref<128x512xbf16, #tpu.memory_space<vmem>>, %arg4: memref<1x512xf32, #tpu.memory_space<vmem>>, %arg5: memref<128x512xbf16, #tpu.memory_space<vmem>>, %arg6: memref<128x512xbf16, #tpu.memory_space<vmem>>, %arg7: memref<1x512xf32, #tpu.memory_space<vmem>>, %arg8: memref<128x128xbf16, #tpu.memory_space<vmem>>, %arg9: memref<1x128xf32, #tpu.memory_space<vmem>>, %arg10: memref<128x128xbf16, #tpu.memory_space<vmem>>, %arg11: memref<1x128xf32, #tpu.memory_space<vmem>>, %arg12: memref<16x128xf32, #tpu.memory_space<vmem>>, %arg13: memref<64x512xf32, #tpu.memory_space<vmem>>, %arg14: memref<128x128xbf16, #tpu.memory_space<vmem>>) attributes {dimension_semantics = [#tpu.dimension_semantics<parallel>], iteration_bounds = array<i64: 2>, scalar_prefetch = 0 : i64, scratch_operands = 2 : i64, tpu.core_type = #tpu.core_type<tc>, window_params = [{transform_indices = @transform_0, window_bounds = array<i64: 128, 128>}, {pipeline_mode = #tpu.pipeline_mode<synchronous>, transform_indices = @transform_1, window_bounds = array<i64: 128, 512>}, {pipeline_mode = #tpu.pipeline_mode<synchronous>, transform_indices = @transform_2, window_bounds = array<i64: 128, 512>}, {pipeline_mode = #tpu.pipeline_mode<synchronous>, transform_indices = @transform_3, window_bounds = array<i64: 1, 512>}, {pipeline_mode = #tpu.pipeline_mode<synchronous>, transform_indices = @transform_4, window_bounds = array<i64: 128, 512>}, {pipeline_mode = #tpu.pipeline_mode<synchronous>, transform_indices = @transform_5, window_bounds = array<i64: 128, 512>}, {pipeline_mode = #tpu.pipeline_mode<synchronous>, transform_indices = @transform_6, window_bounds = array<i64: 1, 512>}, {pipeline_mode = #tpu.pipeline_mode<synchronous>, transform_indices = @transform_7, window_bounds = array<i64: 128, 128>}, {pipeline_mode = #tpu.pipeline_mode<synchronous>, transform_indices = @transform_8, window_bounds = array<i64: 1, 128>}, {pipeline_mode = #tpu.pipeline_mode<synchronous>, transform_indices = @transform_9, window_bounds = array<i64: 128, 128>}, {pipeline_mode = #tpu.pipeline_mode<synchronous>, transform_indices = @transform_10, window_bounds = array<i64: 1, 128>}, {transform_indices = @transform_11, window_bounds = array<i64: 16, 128>}]} {
    %cst = arith.constant 0.000000e+00 : f32
    %0 = vector.broadcast %cst : f32 to vector<16x128xf32>
    %cst_0 = arith.constant 0.000000e+00 : f32
    %1 = vector.broadcast %cst_0 : f32 to vector<16x128xf32>
    %c0_i32 = arith.constant 0 : i32
    %c2_i32 = arith.constant 2 : i32
    %2 = arith.addi %c0_i32, %c2_i32 : i32
    %c1_i32 = arith.constant 1 : i32
    %3:2 = scf.for %arg15 = %c0_i32 to %2 step %c1_i32 iter_args(%arg16 = %0, %arg17 = %1) -> (vector<16x128xf32>, vector<16x128xf32>)  : i32 {
      %c64_i32 = arith.constant 64 : i32
      %31 = arith.muli %arg15, %c64_i32 : i32
      %32 = tpu.assume_multiple %31, 16 : i32
      %33 = arith.index_cast %32 : i32 to index
      %c0_23 = arith.constant 0 : index
      %34 = vector.load %arg1[%33, %c0_23] : memref<128x128xbf16, #tpu.memory_space<vmem>>, vector<64x128xbf16>
      %c0_24 = arith.constant 0 : index
      %c0_25 = arith.constant 0 : index
      %35 = vector.load %arg2[%c0_24, %c0_25] : memref<128x512xbf16, #tpu.memory_space<vmem>>, vector<128x512xbf16>
      %cst_26 = arith.constant dense<0.000000e+00> : vector<64x512xf32>
      %36 = tpu.matmul %34, %35, %cst_26 {dimension_numbers = #tpu.dot_dimension_numbers<[1], [0], [0], [1], [0, 0, 1, 1], [], []>} : vector<64x128xbf16>, vector<128x512xbf16>, vector<64x512xf32> -> vector<64x512xf32>
      %c0_27 = arith.constant 0 : index
      %c0_28 = arith.constant 0 : index
      %37 = vector.load %arg4[%c0_27, %c0_28] : memref<1x512xf32, #tpu.memory_space<vmem>>, vector<1x512xf32>
      %38 = vector.broadcast %37 : vector<1x512xf32> to vector<64x512xf32>
      %39 = arith.addf %36, %38 : vector<64x512xf32>
      %c0_29 = arith.constant 0 : index
      %c0_30 = arith.constant 0 : index
      %40 = vector.load %arg13[%c0_29, %c0_30] : memref<64x512xf32, #tpu.memory_space<vmem>>, vector<64x512xf32>
      tpu.vector_store %arg13[%c0_29, %c0_30], %39 {strides = array<i32>} : memref<64x512xf32, #tpu.memory_space<vmem>>, vector<64x512xf32>,
      %c0_i32_31 = arith.constant 0 : i32
      %c16_i32 = arith.constant 16 : i32
      %41 = arith.muli %c0_i32_31, %c16_i32 : i32
      %42 = tpu.assume_multiple %41, 16 : i32
      %43 = arith.index_cast %42 : i32 to index
      %c0_32 = arith.constant 0 : index
      %44 = vector.load %arg13[%43, %c0_32] : memref<64x512xf32, #tpu.memory_space<vmem>>, vector<16x512xf32>
      %45 = arith.truncf %arg16 : vector<16x128xf32> to vector<16x128xbf16>
      %c0_33 = arith.constant 0 : index
      %c0_34 = arith.constant 0 : index
      %46 = vector.load %arg3[%c0_33, %c0_34] : memref<128x512xbf16, #tpu.memory_space<vmem>>, vector<128x512xbf16>
      %cst_35 = arith.constant dense<0.000000e+00> : vector<16x512xf32>
      %47 = tpu.matmul %45, %46, %cst_35 {dimension_numbers = #tpu.dot_dimension_numbers<[1], [0], [0], [1], [0, 0, 1, 1], [], []>} : vector<16x128xbf16>, vector<128x512xbf16>, vector<16x512xf32> -> vector<16x512xf32>
      %48 = arith.addf %44, %47 : vector<16x512xf32>
      %49 = vector.extract_strided_slice %48 {offsets = [0, 0], sizes = [16, 128], strides = [1, 1]} : vector<16x512xf32> to vector<16x128xf32>
      %50 = arith.negf %49 : vector<16x128xf32>
      %51 = math.exp %50 : vector<16x128xf32>
      %cst_36 = arith.constant 1.000000e+00 : f32
      %52 = vector.broadcast %cst_36 : f32 to vector<16x128xf32>
      %53 = arith.addf %52, %51 : vector<16x128xf32>
      %54 = arith.divf %52, %53 : vector<16x128xf32>
      %55 = vector.extract_strided_slice %48 {offsets = [0, 128], sizes = [16, 128], strides = [1, 1]} : vector<16x512xf32> to vector<16x128xf32>
      %56 = arith.negf %55 : vector<16x128xf32>
      %57 = math.exp %56 : vector<16x128xf32>
      %cst_37 = arith.constant 1.000000e+00 : f32
      %58 = vector.broadcast %cst_37 : f32 to vector<16x128xf32>
      %59 = arith.addf %58, %57 : vector<16x128xf32>
      %60 = arith.divf %58, %59 : vector<16x128xf32>
      %61 = vector.extract_strided_slice %48 {offsets = [0, 256], sizes = [16, 128], strides = [1, 1]} : vector<16x512xf32> to vector<16x128xf32>
      %62 = math.tanh %61 : vector<16x128xf32>
      %63 = vector.extract_strided_slice %48 {offsets = [0, 384], sizes = [16, 128], strides = [1, 1]} : vector<16x512xf32> to vector<16x128xf32>
      %64 = arith.negf %63 : vector<16x128xf32>
      %65 = math.exp %64 : vector<16x128xf32>
      %cst_38 = arith.constant 1.000000e+00 : f32
      %66 = vector.broadcast %cst_38 : f32 to vector<16x128xf32>
      %67 = arith.addf %66, %65 : vector<16x128xf32>
      %68 = arith.divf %66, %67 : vector<16x128xf32>
      %69 = arith.mulf %60, %arg17 : vector<16x128xf32>
      %70 = arith.mulf %54, %62 : vector<16x128xf32>
      %71 = arith.addf %69, %70 : vector<16x128xf32>
      %72 = math.tanh %71 : vector<16x128xf32>
      %73 = arith.mulf %68, %72 : vector<16x128xf32>
      %74 = arith.truncf %73 : vector<16x128xf32> to vector<16x128xbf16>
      %75 = arith.addi %32, %42 : i32
      %76 = arith.index_cast %75 : i32 to index
      %c0_39 = arith.constant 0 : index
      %77 = vector.load %arg14[%76, %c0_39] : memref<128x128xbf16, #tpu.memory_space<vmem>>, vector<16x128xbf16>
      tpu.vector_store %arg14[%76, %c0_39], %74 {strides = array<i32>} : memref<128x128xbf16, #tpu.memory_space<vmem>>, vector<16x128xbf16>,
      %c1_i32_40 = arith.constant 1 : i32
      %c16_i32_41 = arith.constant 16 : i32
      %78 = arith.muli %c1_i32_40, %c16_i32_41 : i32
      %79 = tpu.assume_multiple %78, 16 : i32
      %80 = arith.index_cast %79 : i32 to index
      %c0_42 = arith.constant 0 : index
      %81 = vector.load %arg13[%80, %c0_42] : memref<64x512xf32, #tpu.memory_space<vmem>>, vector<16x512xf32>
      %82 = arith.truncf %73 : vector<16x128xf32> to vector<16x128xbf16>
      %c0_43 = arith.constant 0 : index
      %c0_44 = arith.constant 0 : index
      %83 = vector.load %arg3[%c0_43, %c0_44] : memref<128x512xbf16, #tpu.memory_space<vmem>>, vector<128x512xbf16>
      %cst_45 = arith.constant dense<0.000000e+00> : vector<16x512xf32>
      %84 = tpu.matmul %82, %83, %cst_45 {dimension_numbers = #tpu.dot_dimension_numbers<[1], [0], [0], [1], [0, 0, 1, 1], [], []>} : vector<16x128xbf16>, vector<128x512xbf16>, vector<16x512xf32> -> vector<16x512xf32>
      %85 = arith.addf %81, %84 : vector<16x512xf32>
      %86 = vector.extract_strided_slice %85 {offsets = [0, 0], sizes = [16, 128], strides = [1, 1]} : vector<16x512xf32> to vector<16x128xf32>
      %87 = arith.negf %86 : vector<16x128xf32>
      %88 = math.exp %87 : vector<16x128xf32>
      %cst_46 = arith.constant 1.000000e+00 : f32
      %89 = vector.broadcast %cst_46 : f32 to vector<16x128xf32>
      %90 = arith.addf %89, %88 : vector<16x128xf32>
      %91 = arith.divf %89, %90 : vector<16x128xf32>
      %92 = vector.extract_strided_slice %85 {offsets = [0, 128], sizes = [16, 128], strides = [1, 1]} : vector<16x512xf32> to vector<16x128xf32>
      %93 = arith.negf %92 : vector<16x128xf32>
      %94 = math.exp %93 : vector<16x128xf32>
      %cst_47 = arith.constant 1.000000e+00 : f32
      %95 = vector.broadcast %cst_47 : f32 to vector<16x128xf32>
      %96 = arith.addf %95, %94 : vector<16x128xf32>
      %97 = arith.divf %95, %96 : vector<16x128xf32>
      %98 = vector.extract_strided_slice %85 {offsets = [0, 256], sizes = [16, 128], strides = [1, 1]} : vector<16x512xf32> to vector<16x128xf32>
      %99 = math.tanh %98 : vector<16x128xf32>
      %100 = vector.extract_strided_slice %85 {offsets = [0, 384], sizes = [16, 128], strides = [1, 1]} : vector<16x512xf32> to vector<16x128xf32>
      %101 = arith.negf %100 : vector<16x128xf32>
      %102 = math.exp %101 : vector<16x128xf32>
      %cst_48 = arith.constant 1.000000e+00 : f32
      %103 = vector.broadcast %cst_48 : f32 to vector<16x128xf32>
      %104 = arith.addf %103, %102 : vector<16x128xf32>
      %105 = arith.divf %103, %104 : vector<16x128xf32>
      %106 = arith.mulf %97, %71 : vector<16x128xf32>
      %107 = arith.mulf %91, %99 : vector<16x128xf32>
      %108 = arith.addf %106, %107 : vector<16x128xf32>
      %109 = math.tanh %108 : vector<16x128xf32>
      %110 = arith.mulf %105, %109 : vector<16x128xf32>
      %111 = arith.truncf %110 : vector<16x128xf32> to vector<16x128xbf16>
      %112 = arith.addi %32, %79 : i32
      %113 = arith.index_cast %112 : i32 to index
      %c0_49 = arith.constant 0 : index
      %114 = vector.load %arg14[%113, %c0_49] : memref<128x128xbf16, #tpu.memory_space<vmem>>, vector<16x128xbf16>
      tpu.vector_store %arg14[%113, %c0_49], %111 {strides = array<i32>} : memref<128x128xbf16, #tpu.memory_space<vmem>>, vector<16x128xbf16>,
      %c2_i32_50 = arith.constant 2 : i32
      %c16_i32_51 = arith.constant 16 : i32
      %115 = arith.muli %c2_i32_50, %c16_i32_51 : i32
      %116 = tpu.assume_multiple %115, 16 : i32
      %117 = arith.index_cast %116 : i32 to index
      %c0_52 = arith.constant 0 : index
      %118 = vector.load %arg13[%117, %c0_52] : memref<64x512xf32, #tpu.memory_space<vmem>>, vector<16x512xf32>
      %119 = arith.truncf %110 : vector<16x128xf32> to vector<16x128xbf16>
      %c0_53 = arith.constant 0 : index
      %c0_54 = arith.constant 0 : index
      %120 = vector.load %arg3[%c0_53, %c0_54] : memref<128x512xbf16, #tpu.memory_space<vmem>>, vector<128x512xbf16>
      %cst_55 = arith.constant dense<0.000000e+00> : vector<16x512xf32>
      %121 = tpu.matmul %119, %120, %cst_55 {dimension_numbers = #tpu.dot_dimension_numbers<[1], [0], [0], [1], [0, 0, 1, 1], [], []>} : vector<16x128xbf16>, vector<128x512xbf16>, vector<16x512xf32> -> vector<16x512xf32>
      %122 = arith.addf %118, %121 : vector<16x512xf32>
      %123 = vector.extract_strided_slice %122 {offsets = [0, 0], sizes = [16, 128], strides = [1, 1]} : vector<16x512xf32> to vector<16x128xf32>
      %124 = arith.negf %123 : vector<16x128xf32>
      %125 = math.exp %124 : vector<16x128xf32>
      %cst_56 = arith.constant 1.000000e+00 : f32
      %126 = vector.broadcast %cst_56 : f32 to vector<16x128xf32>
      %127 = arith.addf %126, %125 : vector<16x128xf32>
      %128 = arith.divf %126, %127 : vector<16x128xf32>
      %129 = vector.extract_strided_slice %122 {offsets = [0, 128], sizes = [16, 128], strides = [1, 1]} : vector<16x512xf32> to vector<16x128xf32>
      %130 = arith.negf %129 : vector<16x128xf32>
      %131 = math.exp %130 : vector<16x128xf32>
      %cst_57 = arith.constant 1.000000e+00 : f32
      %132 = vector.broadcast %cst_57 : f32 to vector<16x128xf32>
      %133 = arith.addf %132, %131 : vector<16x128xf32>
      %134 = arith.divf %132, %133 : vector<16x128xf32>
      %135 = vector.extract_strided_slice %122 {offsets = [0, 256], sizes = [16, 128], strides = [1, 1]} : vector<16x512xf32> to vector<16x128xf32>
      %136 = math.tanh %135 : vector<16x128xf32>
      %137 = vector.extract_strided_slice %122 {offsets = [0, 384], sizes = [16, 128], strides = [1, 1]} : vector<16x512xf32> to vector<16x128xf32>
      %138 = arith.negf %137 : vector<16x128xf32>
      %139 = math.exp %138 : vector<16x128xf32>
      %cst_58 = arith.constant 1.000000e+00 : f32
      %140 = vector.broadcast %cst_58 : f32 to vector<16x128xf32>
      %141 = arith.addf %140, %139 : vector<16x128xf32>
      %142 = arith.divf %140, %141 : vector<16x128xf32>
      %143 = arith.mulf %134, %108 : vector<16x128xf32>
      %144 = arith.mulf %128, %136 : vector<16x128xf32>
      %145 = arith.addf %143, %144 : vector<16x128xf32>
      %146 = math.tanh %145 : vector<16x128xf32>
      %147 = arith.mulf %142, %146 : vector<16x128xf32>
      %148 = arith.truncf %147 : vector<16x128xf32> to vector<16x128xbf16>
      %149 = arith.addi %32, %116 : i32
      %150 = arith.index_cast %149 : i32 to index
      %c0_59 = arith.constant 0 : index
      %151 = vector.load %arg14[%150, %c0_59] : memref<128x128xbf16, #tpu.memory_space<vmem>>, vector<16x128xbf16>
      tpu.vector_store %arg14[%150, %c0_59], %148 {strides = array<i32>} : memref<128x128xbf16, #tpu.memory_space<vmem>>, vector<16x128xbf16>,
      %c3_i32 = arith.constant 3 : i32
      %c16_i32_60 = arith.constant 16 : i32
      %152 = arith.muli %c3_i32, %c16_i32_60 : i32
      %153 = tpu.assume_multiple %152, 16 : i32
      %154 = arith.index_cast %153 : i32 to index
      %c0_61 = arith.constant 0 : index
      %155 = vector.load %arg13[%154, %c0_61] : memref<64x512xf32, #tpu.memory_space<vmem>>, vector<16x512xf32>
      %156 = arith.truncf %147 : vector<16x128xf32> to vector<16x128xbf16>
      %c0_62 = arith.constant 0 : index
      %c0_63 = arith.constant 0 : index
      %157 = vector.load %arg3[%c0_62, %c0_63] : memref<128x512xbf16, #tpu.memory_space<vmem>>, vector<128x512xbf16>
      %cst_64 = arith.constant dense<0.000000e+00> : vector<16x512xf32>
      %158 = tpu.matmul %156, %157, %cst_64 {dimension_numbers = #tpu.dot_dimension_numbers<[1], [0], [0], [1], [0, 0, 1, 1], [], []>} : vector<16x128xbf16>, vector<128x512xbf16>, vector<16x512xf32> -> vector<16x512xf32>
      %159 = arith.addf %155, %158 : vector<16x512xf32>
      %160 = vector.extract_strided_slice %159 {offsets = [0, 0], sizes = [16, 128], strides = [1, 1]} : vector<16x512xf32> to vector<16x128xf32>
      %161 = arith.negf %160 : vector<16x128xf32>
      %162 = math.exp %161 : vector<16x128xf32>
      %cst_65 = arith.constant 1.000000e+00 : f32
      %163 = vector.broadcast %cst_65 : f32 to vector<16x128xf32>
      %164 = arith.addf %163, %162 : vector<16x128xf32>
      %165 = arith.divf %163, %164 : vector<16x128xf32>
      %166 = vector.extract_strided_slice %159 {offsets = [0, 128], sizes = [16, 128], strides = [1, 1]} : vector<16x512xf32> to vector<16x128xf32>
      %167 = arith.negf %166 : vector<16x128xf32>
      %168 = math.exp %167 : vector<16x128xf32>
      %cst_66 = arith.constant 1.000000e+00 : f32
      %169 = vector.broadcast %cst_66 : f32 to vector<16x128xf32>
      %170 = arith.addf %169, %168 : vector<16x128xf32>
      %171 = arith.divf %169, %170 : vector<16x128xf32>
      %172 = vector.extract_strided_slice %159 {offsets = [0, 256], sizes = [16, 128], strides = [1, 1]} : vector<16x512xf32> to vector<16x128xf32>
      %173 = math.tanh %172 : vector<16x128xf32>
      %174 = vector.extract_strided_slice %159 {offsets = [0, 384], sizes = [16, 128], strides = [1, 1]} : vector<16x512xf32> to vector<16x128xf32>
      %175 = arith.negf %174 : vector<16x128xf32>
      %176 = math.exp %175 : vector<16x128xf32>
      %cst_67 = arith.constant 1.000000e+00 : f32
      %177 = vector.broadcast %cst_67 : f32 to vector<16x128xf32>
      %178 = arith.addf %177, %176 : vector<16x128xf32>
      %179 = arith.divf %177, %178 : vector<16x128xf32>
      %180 = arith.mulf %171, %145 : vector<16x128xf32>
      %181 = arith.mulf %165, %173 : vector<16x128xf32>
      %182 = arith.addf %180, %181 : vector<16x128xf32>
      %183 = math.tanh %182 : vector<16x128xf32>
      %184 = arith.mulf %179, %183 : vector<16x128xf32>
      %185 = arith.truncf %184 : vector<16x128xf32> to vector<16x128xbf16>
      %186 = arith.addi %32, %153 : i32
      %187 = arith.index_cast %186 : i32 to index
      %c0_68 = arith.constant 0 : index
      %188 = vector.load %arg14[%187, %c0_68] : memref<128x128xbf16, #tpu.memory_space<vmem>>, vector<16x128xbf16>
      tpu.vector_store %arg14[%187, %c0_68], %185 {strides = array<i32>} : memref<128x128xbf16, #tpu.memory_space<vmem>>, vector<16x128xbf16>,
      %c4_i32 = arith.constant 4 : i32
      scf.yield %184, %182 : vector<16x128xf32>, vector<16x128xf32>
    }
    %c2_i32_1 = arith.constant 2 : i32
    %cst_2 = arith.constant 0.000000e+00 : f32
    %4 = vector.broadcast %cst_2 : f32 to vector<16x128xf32>
    %cst_3 = arith.constant 0.000000e+00 : f32
    %5 = vector.broadcast %cst_3 : f32 to vector<16x128xf32>
    %c0_i32_4 = arith.constant 0 : i32
    %c2_i32_5 = arith.constant 2 : i32
    %6 = arith.addi %c0_i32_4, %c2_i32_5 : i32
    %c1_i32_6 = arith.constant 1 : i32
    %7:2 = scf.for %arg15 = %c0_i32_4 to %6 step %c1_i32_6 iter_args(%arg16 = %4, %arg17 = %5) -> (vector<16x128xf32>, vector<16x128xf32>)  : i32 {
      %c64_i32 = arith.constant 64 : i32
      %31 = arith.muli %arg15, %c64_i32 : i32
      %32 = tpu.assume_multiple %31, 16 : i32
      %33 = arith.index_cast %32 : i32 to index
      %c0_23 = arith.constant 0 : index
      %34 = vector.load %arg14[%33, %c0_23] : memref<128x128xbf16, #tpu.memory_space<vmem>>, vector<64x128xbf16>
      %c0_24 = arith.constant 0 : index
      %c0_25 = arith.constant 0 : index
      %35 = vector.load %arg5[%c0_24, %c0_25] : memref<128x512xbf16, #tpu.memory_space<vmem>>, vector<128x512xbf16>
      %cst_26 = arith.constant dense<0.000000e+00> : vector<64x512xf32>
      %36 = tpu.matmul %34, %35, %cst_26 {dimension_numbers = #tpu.dot_dimension_numbers<[1], [0], [0], [1], [0, 0, 1, 1], [], []>} : vector<64x128xbf16>, vector<128x512xbf16>, vector<64x512xf32> -> vector<64x512xf32>
      %c0_27 = arith.constant 0 : index
      %c0_28 = arith.constant 0 : index
      %37 = vector.load %arg7[%c0_27, %c0_28] : memref<1x512xf32, #tpu.memory_space<vmem>>, vector<1x512xf32>
      %38 = vector.broadcast %37 : vector<1x512xf32> to vector<64x512xf32>
      %39 = arith.addf %36, %38 : vector<64x512xf32>
      %c0_29 = arith.constant 0 : index
      %c0_30 = arith.constant 0 : index
      %40 = vector.load %arg13[%c0_29, %c0_30] : memref<64x512xf32, #tpu.memory_space<vmem>>, vector<64x512xf32>
      tpu.vector_store %arg13[%c0_29, %c0_30], %39 {strides = array<i32>} : memref<64x512xf32, #tpu.memory_space<vmem>>, vector<64x512xf32>,
      %c0_i32_31 = arith.constant 0 : i32
      %c16_i32 = arith.constant 16 : i32
      %41 = arith.muli %c0_i32_31, %c16_i32 : i32
      %42 = tpu.assume_multiple %41, 16 : i32
      %43 = arith.index_cast %42 : i32 to index
      %c0_32 = arith.constant 0 : index
      %44 = vector.load %arg13[%43, %c0_32] : memref<64x512xf32, #tpu.memory_space<vmem>>, vector<16x512xf32>
      %45 = arith.truncf %arg16 : vector<16x128xf32> to vector<16x128xbf16>
      %c0_33 = arith.constant 0 : index
      %c0_34 = arith.constant 0 : index
      %46 = vector.load %arg6[%c0_33, %c0_34] : memref<128x512xbf16, #tpu.memory_space<vmem>>, vector<128x512xbf16>
      %cst_35 = arith.constant dense<0.000000e+00> : vector<16x512xf32>
      %47 = tpu.matmul %45, %46, %cst_35 {dimension_numbers = #tpu.dot_dimension_numbers<[1], [0], [0], [1], [0, 0, 1, 1], [], []>} : vector<16x128xbf16>, vector<128x512xbf16>, vector<16x512xf32> -> vector<16x512xf32>
      %48 = arith.addf %44, %47 : vector<16x512xf32>
      %49 = vector.extract_strided_slice %48 {offsets = [0, 0], sizes = [16, 128], strides = [1, 1]} : vector<16x512xf32> to vector<16x128xf32>
      %50 = arith.negf %49 : vector<16x128xf32>
      %51 = math.exp %50 : vector<16x128xf32>
      %cst_36 = arith.constant 1.000000e+00 : f32
      %52 = vector.broadcast %cst_36 : f32 to vector<16x128xf32>
      %53 = arith.addf %52, %51 : vector<16x128xf32>
      %54 = arith.divf %52, %53 : vector<16x128xf32>
      %55 = vector.extract_strided_slice %48 {offsets = [0, 128], sizes = [16, 128], strides = [1, 1]} : vector<16x512xf32> to vector<16x128xf32>
      %56 = arith.negf %55 : vector<16x128xf32>
      %57 = math.exp %56 : vector<16x128xf32>
      %cst_37 = arith.constant 1.000000e+00 : f32
      %58 = vector.broadcast %cst_37 : f32 to vector<16x128xf32>
      %59 = arith.addf %58, %57 : vector<16x128xf32>
      %60 = arith.divf %58, %59 : vector<16x128xf32>
      %61 = vector.extract_strided_slice %48 {offsets = [0, 256], sizes = [16, 128], strides = [1, 1]} : vector<16x512xf32> to vector<16x128xf32>
      %62 = math.tanh %61 : vector<16x128xf32>
      %63 = vector.extract_strided_slice %48 {offsets = [0, 384], sizes = [16, 128], strides = [1, 1]} : vector<16x512xf32> to vector<16x128xf32>
      %64 = arith.negf %63 : vector<16x128xf32>
      %65 = math.exp %64 : vector<16x128xf32>
      %cst_38 = arith.constant 1.000000e+00 : f32
      %66 = vector.broadcast %cst_38 : f32 to vector<16x128xf32>
      %67 = arith.addf %66, %65 : vector<16x128xf32>
      %68 = arith.divf %66, %67 : vector<16x128xf32>
      %69 = arith.mulf %60, %arg17 : vector<16x128xf32>
      %70 = arith.mulf %54, %62 : vector<16x128xf32>
      %71 = arith.addf %69, %70 : vector<16x128xf32>
      %72 = math.tanh %71 : vector<16x128xf32>
      %73 = arith.mulf %68, %72 : vector<16x128xf32>
      %c1_i32_39 = arith.constant 1 : i32
      %c16_i32_40 = arith.constant 16 : i32
      %74 = arith.muli %c1_i32_39, %c16_i32_40 : i32
      %75 = tpu.assume_multiple %74, 16 : i32
      %76 = arith.index_cast %75 : i32 to index
      %c0_41 = arith.constant 0 : index
      %77 = vector.load %arg13[%76, %c0_41] : memref<64x512xf32, #tpu.memory_space<vmem>>, vector<16x512xf32>
      %78 = arith.truncf %73 : vector<16x128xf32> to vector<16x128xbf16>
      %c0_42 = arith.constant 0 : index
      %c0_43 = arith.constant 0 : index
      %79 = vector.load %arg6[%c0_42, %c0_43] : memref<128x512xbf16, #tpu.memory_space<vmem>>, vector<128x512xbf16>
      %cst_44 = arith.constant dense<0.000000e+00> : vector<16x512xf32>
      %80 = tpu.matmul %78, %79, %cst_44 {dimension_numbers = #tpu.dot_dimension_numbers<[1], [0], [0], [1], [0, 0, 1, 1], [], []>} : vector<16x128xbf16>, vector<128x512xbf16>, vector<16x512xf32> -> vector<16x512xf32>
      %81 = arith.addf %77, %80 : vector<16x512xf32>
      %82 = vector.extract_strided_slice %81 {offsets = [0, 0], sizes = [16, 128], strides = [1, 1]} : vector<16x512xf32> to vector<16x128xf32>
      %83 = arith.negf %82 : vector<16x128xf32>
      %84 = math.exp %83 : vector<16x128xf32>
      %cst_45 = arith.constant 1.000000e+00 : f32
      %85 = vector.broadcast %cst_45 : f32 to vector<16x128xf32>
      %86 = arith.addf %85, %84 : vector<16x128xf32>
      %87 = arith.divf %85, %86 : vector<16x128xf32>
      %88 = vector.extract_strided_slice %81 {offsets = [0, 128], sizes = [16, 128], strides = [1, 1]} : vector<16x512xf32> to vector<16x128xf32>
      %89 = arith.negf %88 : vector<16x128xf32>
      %90 = math.exp %89 : vector<16x128xf32>
      %cst_46 = arith.constant 1.000000e+00 : f32
      %91 = vector.broadcast %cst_46 : f32 to vector<16x128xf32>
      %92 = arith.addf %91, %90 : vector<16x128xf32>
      %93 = arith.divf %91, %92 : vector<16x128xf32>
      %94 = vector.extract_strided_slice %81 {offsets = [0, 256], sizes = [16, 128], strides = [1, 1]} : vector<16x512xf32> to vector<16x128xf32>
      %95 = math.tanh %94 : vector<16x128xf32>
      %96 = vector.extract_strided_slice %81 {offsets = [0, 384], sizes = [16, 128], strides = [1, 1]} : vector<16x512xf32> to vector<16x128xf32>
      %97 = arith.negf %96 : vector<16x128xf32>
      %98 = math.exp %97 : vector<16x128xf32>
      %cst_47 = arith.constant 1.000000e+00 : f32
      %99 = vector.broadcast %cst_47 : f32 to vector<16x128xf32>
      %100 = arith.addf %99, %98 : vector<16x128xf32>
      %101 = arith.divf %99, %100 : vector<16x128xf32>
      %102 = arith.mulf %93, %71 : vector<16x128xf32>
      %103 = arith.mulf %87, %95 : vector<16x128xf32>
      %104 = arith.addf %102, %103 : vector<16x128xf32>
      %105 = math.tanh %104 : vector<16x128xf32>
      %106 = arith.mulf %101, %105 : vector<16x128xf32>
      %c2_i32_48 = arith.constant 2 : i32
      %c16_i32_49 = arith.constant 16 : i32
      %107 = arith.muli %c2_i32_48, %c16_i32_49 : i32
      %108 = tpu.assume_multiple %107, 16 : i32
      %109 = arith.index_cast %108 : i32 to index
      %c0_50 = arith.constant 0 : index
      %110 = vector.load %arg13[%109, %c0_50] : memref<64x512xf32, #tpu.memory_space<vmem>>, vector<16x512xf32>
      %111 = arith.truncf %106 : vector<16x128xf32> to vector<16x128xbf16>
      %c0_51 = arith.constant 0 : index
      %c0_52 = arith.constant 0 : index
      %112 = vector.load %arg6[%c0_51, %c0_52] : memref<128x512xbf16, #tpu.memory_space<vmem>>, vector<128x512xbf16>
      %cst_53 = arith.constant dense<0.000000e+00> : vector<16x512xf32>
      %113 = tpu.matmul %111, %112, %cst_53 {dimension_numbers = #tpu.dot_dimension_numbers<[1], [0], [0], [1], [0, 0, 1, 1], [], []>} : vector<16x128xbf16>, vector<128x512xbf16>, vector<16x512xf32> -> vector<16x512xf32>
      %114 = arith.addf %110, %113 : vector<16x512xf32>
      %115 = vector.extract_strided_slice %114 {offsets = [0, 0], sizes = [16, 128], strides = [1, 1]} : vector<16x512xf32> to vector<16x128xf32>
      %116 = arith.negf %115 : vector<16x128xf32>
      %117 = math.exp %116 : vector<16x128xf32>
      %cst_54 = arith.constant 1.000000e+00 : f32
      %118 = vector.broadcast %cst_54 : f32 to vector<16x128xf32>
      %119 = arith.addf %118, %117 : vector<16x128xf32>
      %120 = arith.divf %118, %119 : vector<16x128xf32>
      %121 = vector.extract_strided_slice %114 {offsets = [0, 128], sizes = [16, 128], strides = [1, 1]} : vector<16x512xf32> to vector<16x128xf32>
      %122 = arith.negf %121 : vector<16x128xf32>
      %123 = math.exp %122 : vector<16x128xf32>
      %cst_55 = arith.constant 1.000000e+00 : f32
      %124 = vector.broadcast %cst_55 : f32 to vector<16x128xf32>
      %125 = arith.addf %124, %123 : vector<16x128xf32>
      %126 = arith.divf %124, %125 : vector<16x128xf32>
      %127 = vector.extract_strided_slice %114 {offsets = [0, 256], sizes = [16, 128], strides = [1, 1]} : vector<16x512xf32> to vector<16x128xf32>
      %128 = math.tanh %127 : vector<16x128xf32>
      %129 = vector.extract_strided_slice %114 {offsets = [0, 384], sizes = [16, 128], strides = [1, 1]} : vector<16x512xf32> to vector<16x128xf32>
      %130 = arith.negf %129 : vector<16x128xf32>
      %131 = math.exp %130 : vector<16x128xf32>
      %cst_56 = arith.constant 1.000000e+00 : f32
      %132 = vector.broadcast %cst_56 : f32 to vector<16x128xf32>
      %133 = arith.addf %132, %131 : vector<16x128xf32>
      %134 = arith.divf %132, %133 : vector<16x128xf32>
      %135 = arith.mulf %126, %104 : vector<16x128xf32>
      %136 = arith.mulf %120, %128 : vector<16x128xf32>
      %137 = arith.addf %135, %136 : vector<16x128xf32>
      %138 = math.tanh %137 : vector<16x128xf32>
      %139 = arith.mulf %134, %138 : vector<16x128xf32>
      %c3_i32 = arith.constant 3 : i32
      %c16_i32_57 = arith.constant 16 : i32
      %140 = arith.muli %c3_i32, %c16_i32_57 : i32
      %141 = tpu.assume_multiple %140, 16 : i32
      %142 = arith.index_cast %141 : i32 to index
      %c0_58 = arith.constant 0 : index
      %143 = vector.load %arg13[%142, %c0_58] : memref<64x512xf32, #tpu.memory_space<vmem>>, vector<16x512xf32>
      %144 = arith.truncf %139 : vector<16x128xf32> to vector<16x128xbf16>
      %c0_59 = arith.constant 0 : index
      %c0_60 = arith.constant 0 : index
      %145 = vector.load %arg6[%c0_59, %c0_60] : memref<128x512xbf16, #tpu.memory_space<vmem>>, vector<128x512xbf16>
      %cst_61 = arith.constant dense<0.000000e+00> : vector<16x512xf32>
      %146 = tpu.matmul %144, %145, %cst_61 {dimension_numbers = #tpu.dot_dimension_numbers<[1], [0], [0], [1], [0, 0, 1, 1], [], []>} : vector<16x128xbf16>, vector<128x512xbf16>, vector<16x512xf32> -> vector<16x512xf32>
      %147 = arith.addf %143, %146 : vector<16x512xf32>
      %148 = vector.extract_strided_slice %147 {offsets = [0, 0], sizes = [16, 128], strides = [1, 1]} : vector<16x512xf32> to vector<16x128xf32>
      %149 = arith.negf %148 : vector<16x128xf32>
      %150 = math.exp %149 : vector<16x128xf32>
      %cst_62 = arith.constant 1.000000e+00 : f32
      %151 = vector.broadcast %cst_62 : f32 to vector<16x128xf32>
      %152 = arith.addf %151, %150 : vector<16x128xf32>
      %153 = arith.divf %151, %152 : vector<16x128xf32>
      %154 = vector.extract_strided_slice %147 {offsets = [0, 128], sizes = [16, 128], strides = [1, 1]} : vector<16x512xf32> to vector<16x128xf32>
      %155 = arith.negf %154 : vector<16x128xf32>
      %156 = math.exp %155 : vector<16x128xf32>
      %cst_63 = arith.constant 1.000000e+00 : f32
      %157 = vector.broadcast %cst_63 : f32 to vector<16x128xf32>
      %158 = arith.addf %157, %156 : vector<16x128xf32>
      %159 = arith.divf %157, %158 : vector<16x128xf32>
      %160 = vector.extract_strided_slice %147 {offsets = [0, 256], sizes = [16, 128], strides = [1, 1]} : vector<16x512xf32> to vector<16x128xf32>
      %161 = math.tanh %160 : vector<16x128xf32>
      %162 = vector.extract_strided_slice %147 {offsets = [0, 384], sizes = [16, 128], strides = [1, 1]} : vector<16x512xf32> to vector<16x128xf32>
      %163 = arith.negf %162 : vector<16x128xf32>
      %164 = math.exp %163 : vector<16x128xf32>
      %cst_64 = arith.constant 1.000000e+00 : f32
      %165 = vector.broadcast %cst_64 : f32 to vector<16x128xf32>
      %166 = arith.addf %165, %164 : vector<16x128xf32>
      %167 = arith.divf %165, %166 : vector<16x128xf32>
      %168 = arith.mulf %159, %137 : vector<16x128xf32>
      %169 = arith.mulf %153, %161 : vector<16x128xf32>
      %170 = arith.addf %168, %169 : vector<16x128xf32>
      %171 = math.tanh %170 : vector<16x128xf32>
      %172 = arith.mulf %167, %171 : vector<16x128xf32>
      %c4_i32 = arith.constant 4 : i32
      scf.yield %172, %170 : vector<16x128xf32>, vector<16x128xf32>
    }
    %c2_i32_7 = arith.constant 2 : i32
    %8 = arith.truncf %7#0 : vector<16x128xf32> to vector<16x128xbf16>
    %c0 = arith.constant 0 : index
    %c0_8 = arith.constant 0 : index
    %9 = vector.load %arg8[%c0, %c0_8] : memref<128x128xbf16, #tpu.memory_space<vmem>>, vector<128x128xbf16>
    %cst_9 = arith.constant dense<0.000000e+00> : vector<16x128xf32>
    %10 = tpu.matmul %8, %9, %cst_9 {dimension_numbers = #tpu.dot_dimension_numbers<[1], [0], [0], [1], [0, 0, 1, 1], [], []>} : vector<16x128xbf16>, vector<128x128xbf16>, vector<16x128xf32> -> vector<16x128xf32>
    %c0_10 = arith.constant 0 : index
    %c0_11 = arith.constant 0 : index
    %11 = vector.load %arg9[%c0_10, %c0_11] : memref<1x128xf32, #tpu.memory_space<vmem>>, vector<1x128xf32>
    %12 = vector.broadcast %11 : vector<1x128xf32> to vector<16x128xf32>
    %13 = arith.addf %10, %12 : vector<16x128xf32>
    %cst_12 = arith.constant 0.000000e+00 : f32
    %14 = vector.broadcast %cst_12 : f32 to vector<16x128xf32>
    %15 = arith.cmpf ogt, %13, %14 : vector<16x128xf32>
    %cst_13 = arith.constant 0.00999999977 : f32
    %16 = vector.broadcast %cst_13 : f32 to vector<16x128xf32>
    %17 = arith.mulf %16, %13 : vector<16x128xf32>
    %18 = arith.select %15, %13, %17 : vector<16x128xi1>, vector<16x128xf32>
    %19 = arith.truncf %18 : vector<16x128xf32> to vector<16x128xbf16>
    %c0_14 = arith.constant 0 : index
    %c0_15 = arith.constant 0 : index
    %20 = vector.load %arg10[%c0_14, %c0_15] : memref<128x128xbf16, #tpu.memory_space<vmem>>, vector<128x128xbf16>
    %cst_16 = arith.constant dense<0.000000e+00> : vector<16x128xf32>
    %21 = tpu.matmul %19, %20, %cst_16 {dimension_numbers = #tpu.dot_dimension_numbers<[1], [0], [0], [1], [0, 0, 1, 1], [], []>} : vector<16x128xbf16>, vector<128x128xbf16>, vector<16x128xf32> -> vector<16x128xf32>
    %c0_17 = arith.constant 0 : index
    %c0_18 = arith.constant 0 : index
    %22 = vector.load %arg11[%c0_17, %c0_18] : memref<1x128xf32, #tpu.memory_space<vmem>>, vector<1x128xf32>
    %23 = vector.broadcast %22 : vector<1x128xf32> to vector<16x128xf32>
    %24 = arith.addf %21, %23 : vector<16x128xf32>
    %cst_19 = arith.constant 0.000000e+00 : f32
    %25 = vector.broadcast %cst_19 : f32 to vector<16x128xf32>
    %26 = arith.cmpf ogt, %24, %25 : vector<16x128xf32>
    %cst_20 = arith.constant 0.00999999977 : f32
    %27 = vector.broadcast %cst_20 : f32 to vector<16x128xf32>
    %28 = arith.mulf %27, %24 : vector<16x128xf32>
    %29 = arith.select %26, %24, %28 : vector<16x128xi1>, vector<16x128xf32>
    %c0_21 = arith.constant 0 : index
    %c0_22 = arith.constant 0 : index
    %30 = vector.load %arg12[%c0_21, %c0_22] : memref<16x128xf32, #tpu.memory_space<vmem>>, vector<16x128xf32>
    tpu.vector_store %arg12[%c0_21, %c0_22], %29 {strides = array<i32>} : memref<16x128xf32, #tpu.memory_space<vmem>>, vector<16x128xf32>,
    return
  }
  func.func @transform_0(%arg0: i32) -> (i32, i32) {
    %c0_i32 = arith.constant 0 : i32
    %c0_i32_0 = arith.constant 0 : i32
    return %arg0, %c0_i32 : i32, i32
  }
  func.func @transform_1(%arg0: i32) -> (i32, i32) {
    %c0_i32 = arith.constant 0 : i32
    %c0_i32_0 = arith.constant 0 : i32
    %c0_i32_1 = arith.constant 0 : i32
    return %c0_i32, %c0_i32_0 : i32, i32
  }
  func.func @transform_2(%arg0: i32) -> (i32, i32) {
    %c0_i32 = arith.constant 0 : i32
    %c0_i32_0 = arith.constant 0 : i32
    %c0_i32_1 = arith.constant 0 : i32
    return %c0_i32, %c0_i32_0 : i32, i32
  }
  func.func @transform_3(%arg0: i32) -> (i32, i32) {
    %c0_i32 = arith.constant 0 : i32
    %c0_i32_0 = arith.constant 0 : i32
    %c0_i32_1 = arith.constant 0 : i32
    return %c0_i32, %c0_i32_0 : i32, i32
  }
  func.func @transform_4(%arg0: i32) -> (i32, i32) {
    %c0_i32 = arith.constant 0 : i32
    %c0_i32_0 = arith.constant 0 : i32
    %c0_i32_1 = arith.constant 0 : i32
    return %c0_i32, %c0_i32_0 : i32, i32
  }
  func.func @transform_5(%arg0: i32) -> (i32, i32) {
    %c0_i32 = arith.constant 0 : i32
    %c0_i32_0 = arith.constant 0 : i32
    %c0_i32_1 = arith.constant 0 : i32
    return %c0_i32, %c0_i32_0 : i32, i32
  }
  func.func @transform_6(%arg0: i32) -> (i32, i32) {
    %c0_i32 = arith.constant 0 : i32
    %c0_i32_0 = arith.constant 0 : i32
    %c0_i32_1 = arith.constant 0 : i32
    return %c0_i32, %c0_i32_0 : i32, i32
  }
  func.func @transform_7(%arg0: i32) -> (i32, i32) {
    %c0_i32 = arith.constant 0 : i32
    %c0_i32_0 = arith.constant 0 : i32
    %c0_i32_1 = arith.constant 0 : i32
    return %c0_i32, %c0_i32_0 : i32, i32
  }
  func.func @transform_8(%arg0: i32) -> (i32, i32) {
    %c0_i32 = arith.constant 0 : i32
    %c0_i32_0 = arith.constant 0 : i32
    %c0_i32_1 = arith.constant 0 : i32
    return %c0_i32, %c0_i32_0 : i32, i32
  }
  func.func @transform_9(%arg0: i32) -> (i32, i32) {
    %c0_i32 = arith.constant 0 : i32
    %c0_i32_0 = arith.constant 0 : i32
    %c0_i32_1 = arith.constant 0 : i32
    return %c0_i32, %c0_i32_0 : i32, i32
  }
  func.func @transform_10(%arg0: i32) -> (i32, i32) {
    %c0_i32 = arith.constant 0 : i32
    %c0_i32_0 = arith.constant 0 : i32
    %c0_i32_1 = arith.constant 0 : i32
    return %c0_i32, %c0_i32_0 : i32, i32
  }
  func.func @transform_11(%arg0: i32) -> (i32, i32) {
    %c0_i32 = arith.constant 0 : i32
    %c0_i32_0 = arith.constant 0 : i32
    return %arg0, %c0_i32 : i32, i32
  }
}

</mosaic_0001>

<llo_original>
// kernel: tpu_custom_call.1
$region0: #{tpu_custom_call.1}
  #allocation0 [shape = 'u32[]', space=smem, size = 0x4, offset = 0x4, fixed_abs, tag = 'smem constant byte address 0x4 - core index']
  #allocation1 [shape = 'u32[144,128]{1,0:T(1,128)}', space=vmem, size = 0x12000, scoped, tag = 'internal scratch']
  #allocation2 [shape = 'f32[64,512]{1,0:T(8,128)}', space=vmem, size = 0x20000, scoped, tag = 'scratch operand']
  #allocation3 [shape = 'bf16[128,128]{1,0:T(16,128)(2,1)}', space=vmem, size = 0x8000, scoped, tag = 'scratch operand']
  %s0 = inlined_call_operand.hbm [shape: bf16[256,128], index: 0, kind: input, shape index: {}]
  %s1 = inlined_call_operand.hbm [shape: bf16[128,512], index: 1, kind: input, shape index: {}]
  %s2 = inlined_call_operand.hbm [shape: bf16[128,512], index: 2, kind: input, shape index: {}]
  %s3 = inlined_call_operand.vmem [shape: f32[1,512], index: 3, kind: input, shape index: {}]
  %s4 = inlined_call_operand.hbm [shape: bf16[128,512], index: 4, kind: input, shape index: {}]
  %s5 = inlined_call_operand.hbm [shape: bf16[128,512], index: 5, kind: input, shape index: {}]
  %s6 = inlined_call_operand.vmem [shape: f32[1,512], index: 6, kind: input, shape index: {}]
  %s7 = inlined_call_operand.hbm [shape: bf16[128,128], index: 7, kind: input, shape index: {}]
  %s8 = inlined_call_operand.vmem [shape: f32[1,128], index: 8, kind: input, shape index: {}]
  %s9 = inlined_call_operand.hbm [shape: bf16[128,128], index: 9, kind: input, shape index: {}]
  %s10 = inlined_call_operand.vmem [shape: f32[1,128], index: 10, kind: input, shape index: {}]
  %s11 = inlined_call_operand.hbm [shape: f32[32,128], index: 11, kind: output, shape index: {}]
  %s12 = sld [smem:[#allocation0]]
  $region119: #{tpu_custom_call.1} parent=0
    _
  %s14 = ssub.s32 1, %s12
  %s15 = scalar_select 0, %s14, %s12
  $region1: #{tpu_custom_call.1} parent=0
    #allocation4 [shape = 'u8[65536]{0}', space=vmem, size = 0x10000, scoped, tag = 'input window, operand 0']
    #allocation5 [shape = 's32[2]{0}', space=sflag, size = 0x8, scoped, tag = 'scoped memory for tpu_custom_call.1']
    #allocation6 [shape = 's32[2]{0}', space=sflag, size = 0x8, scoped, tag = 'scoped memory for tpu_custom_call.1']
    #allocation7 [shape = 'u8[131072]{0}', space=vmem, size = 0x20000, scoped, tag = 'input window, operand 1, single buffered']
    #allocation8 [shape = 's32[1]{0}', space=sflag, size = 0x4, scoped, tag = 'scoped memory for tpu_custom_call.1']
    #allocation9 [shape = 'u8[131072]{0}', space=vmem, size = 0x20000, scoped, tag = 'input window, operand 2, single buffered']
    #allocation10 [shape = 'u8[131072]{0}', space=vmem, size = 0x20000, scoped, tag = 'input window, operand 4, single buffered']
    #allocation11 [shape = 's32[1]{0}', space=sflag, size = 0x4, scoped, tag = 'scoped memory for tpu_custom_call.1']
    #allocation12 [shape = 'u8[131072]{0}', space=vmem, size = 0x20000, scoped, tag = 'input window, operand 5, single buffered']
    #allocation13 [shape = 'u8[32768]{0}', space=vmem, size = 0x8000, scoped, tag = 'input window, operand 7, single buffered']
    #allocation14 [shape = 's32[1]{0}', space=sflag, size = 0x4, scoped, tag = 'scoped memory for tpu_custom_call.1']
    #allocation15 [shape = 'u8[32768]{0}', space=vmem, size = 0x8000, scoped, tag = 'input window, operand 9, single buffered']
    #allocation16 [shape = 'u8[16384]{0}', space=vmem, size = 0x4000, scoped, tag = 'output window, operand 0']
    %16 = vsyncpa [#allocation5], 0
    %s17 = scalar_lea.sflag [#allocation5], 1
    %18 = vsyncpa %s17, 0
    %19 = vsyncpa [#allocation8], 0
    %20 = vsyncpa [#allocation11], 0
    %21 = vsyncpa [#allocation14], 0
    %22 = vsyncpa [#allocation6], 0
    %s23 = scalar_lea.sflag [#allocation6], 1
    %24 = vsyncpa %s23, 0
    loop: start=0, step=1, limit=4
    $region2: #{tpu_custom_call.1} parent=1 // loop_pre_header
      _
    $region3: #{tpu_custom_call.1} parent=1 // loop_header
      %s26 = sphi 0, %s30
      %p27 = scmp.ge.s32.totalorder %s26, 4
      %s36 = sphi 0, %s38
      %s39 = sphi 0, %s36
      %s40 = sphi 0, %s39
      %s56 = sphi 0, %s40
      %s60 = sphi 0, %s60
      %s62 = sphi 0, %s60
      %s63 = sphi 0, %s62
      %s77 = sphi 0, %s63
      %s81 = sphi 0, %s81
      %s83 = sphi 0, %s81
      %s84 = sphi 0, %s83
      %s98 = sphi 0, %s84
      %s102 = sphi 0, %s102
      %s104 = sphi 0, %s102
      %s105 = sphi 0, %s104
      %s119 = sphi 0, %s105
      %s123 = sphi 0, %s123
      %s125 = sphi 0, %s123
      %s126 = sphi 0, %s125
      %s140 = sphi 0, %s126
      %s144 = sphi 0, %s144
      %s146 = sphi 0, %s144
      %s147 = sphi 0, %s146
      %s161 = sphi 0, %s147
      %s165 = sphi 0, %s165
      %s167 = sphi 0, %s165
      %s168 = sphi 0, %s167
      %s182 = sphi 0, %s168
      %s186 = sphi 0, %s186
      %s188 = sphi 0, %s186
      %s189 = sphi 0, %s188
      %s203 = sphi 0, %s189
      %s207 = sphi 0, %s207
      %s209 = sphi 0, %s207
      %s210 = sphi 0, %s209
      %s224 = sphi 0, %s210
      %s228 = sphi 0, %s228
      %s230 = sphi 0, %s228
      %s231 = sphi 0, %s230
      %s245 = sphi 0, %s231
      %s249 = sphi 0, %s249
      %s251 = sphi 0, %s249
      %s252 = sphi 0, %s251
      %s266 = sphi 0, %s252
      %s272 = sphi 0, %s274
      %s275 = sphi 0, %s272
      %s276 = sphi 0, %s275
      %s292 = sphi 0, %s276
    $region4: #{tpu_custom_call.1} parent=1 // loop_header_branch
      %29 = sbr.rel (%p27) target = $region8
    $region5: #{tpu_custom_call.1} parent=1 // loop_body
      %s31 = ssub.s32 %s26, 1
      %s32 = ssub.s32 %s26, 2
      %s33 = sadd.s32 %s26, 1
      %s34 = ssub.s32 %s26, %s33
      %p35 = scmp.eq.s32.totalorder %s34, 0
      %s37 = sadd.s32 %s36, 1
      %s38 = scalar_select %p35, %s36, %s37
      %p41 = pneg %p35
      %p42 = scmp.eq.s32.totalorder %s26, 1
      %p43 = por %p41, %p42
      %p44 = scmp.ne.s32.totalorder %s36, %s39
      %p45 = scmp.eq.s32.totalorder %s26, 0
      %p46 = por %p44, %p45
      %p47 = scmp.ne.s32.totalorder %s36, %s39
      %p48 = scmp.eq.s32.totalorder %s31, 1
      %p49 = por %p47, %p48
      %p50 = scmp.ne.s32.totalorder %s39, %s40
      %p51 = scmp.eq.s32.totalorder %s31, 0
      %p52 = por %p50, %p51
      %p53 = scmp.ne.s32.totalorder %s39, %s40
      %p54 = scmp.eq.s32.totalorder %s32, 1
      %p55 = por %p53, %p54
      %p57 = scmp.ne.s32.totalorder %s40, %s56
      %p58 = scmp.eq.s32.totalorder %s32, 0
      %p59 = por %p57, %p58
      %s61 = sadd.s32 %s60, 1
      %p64 = scmp.eq.s32.totalorder %s26, 1
      %p65 = scmp.ne.s32.totalorder %s60, %s62
      %p66 = scmp.eq.s32.totalorder %s26, 0
      %p67 = por %p65, %p66
      %p68 = scmp.ne.s32.totalorder %s60, %s62
      %p69 = scmp.eq.s32.totalorder %s31, 1
      %p70 = por %p68, %p69
      %p71 = scmp.ne.s32.totalorder %s62, %s63
      %p72 = scmp.eq.s32.totalorder %s31, 0
      %p73 = por %p71, %p72
      %p74 = scmp.ne.s32.totalorder %s62, %s63
      %p75 = scmp.eq.s32.totalorder %s32, 1
      %p76 = por %p74, %p75
      %p78 = scmp.ne.s32.totalorder %s63, %s77
      %p79 = scmp.eq.s32.totalorder %s32, 0
      %p80 = por %p78, %p79
      %s82 = sadd.s32 %s81, 1
      %p85 = scmp.eq.s32.totalorder %s26, 1
      %p86 = scmp.ne.s32.totalorder %s81, %s83
      %p87 = scmp.eq.s32.totalorder %s26, 0
      %p88 = por %p86, %p87
      %p89 = scmp.ne.s32.totalorder %s81, %s83
      %p90 = scmp.eq.s32.totalorder %s31, 1
      %p91 = por %p89, %p90
      %p92 = scmp.ne.s32.totalorder %s83, %s84
      %p93 = scmp.eq.s32.totalorder %s31, 0
      %p94 = por %p92, %p93
      %p95 = scmp.ne.s32.totalorder %s83, %s84
      %p96 = scmp.eq.s32.totalorder %s32, 1
      %p97 = por %p95, %p96
      %p99 = scmp.ne.s32.totalorder %s84, %s98
      %p100 = scmp.eq.s32.totalorder %s32, 0
      %p101 = por %p99, %p100
      %s103 = sadd.s32 %s102, 1
      %p106 = scmp.eq.s32.totalorder %s26, 1
      %p107 = scmp.ne.s32.totalorder %s102, %s104
      %p108 = scmp.eq.s32.totalorder %s26, 0
      %p109 = por %p107, %p108
      %p110 = scmp.ne.s32.totalorder %s102, %s104
      %p111 = scmp.eq.s32.totalorder %s31, 1
      %p112 = por %p110, %p111
      %p113 = scmp.ne.s32.totalorder %s104, %s105
      %p114 = scmp.eq.s32.totalorder %s31, 0
      %p115 = por %p113, %p114
      %p116 = scmp.ne.s32.totalorder %s104, %s105
      %p117 = scmp.eq.s32.totalorder %s32, 1
      %p118 = por %p116, %p117
      %p120 = scmp.ne.s32.totalorder %s105, %s119
      %p121 = scmp.eq.s32.totalorder %s32, 0
      %p122 = por %p120, %p121
      %s124 = sadd.s32 %s123, 1
      %p127 = scmp.eq.s32.totalorder %s26, 1
      %p128 = scmp.ne.s32.totalorder %s123, %s125
      %p129 = scmp.eq.s32.totalorder %s26, 0
      %p130 = por %p128, %p129
      %p131 = scmp.ne.s32.totalorder %s123, %s125
      %p132 = scmp.eq.s32.totalorder %s31, 1
      %p133 = por %p131, %p132
      %p134 = scmp.ne.s32.totalorder %s125, %s126
      %p135 = scmp.eq.s32.totalorder %s31, 0
      %p136 = por %p134, %p135
      %p137 = scmp.ne.s32.totalorder %s125, %s126
      %p138 = scmp.eq.s32.totalorder %s32, 1
      %p139 = por %p137, %p138
      %p141 = scmp.ne.s32.totalorder %s126, %s140
      %p142 = scmp.eq.s32.totalorder %s32, 0
      %p143 = por %p141, %p142
      %s145 = sadd.s32 %s144, 1
      %p148 = scmp.eq.s32.totalorder %s26, 1
      %p149 = scmp.ne.s32.totalorder %s144, %s146
      %p150 = scmp.eq.s32.totalorder %s26, 0
      %p151 = por %p149, %p150
      %p152 = scmp.ne.s32.totalorder %s144, %s146
      %p153 = scmp.eq.s32.totalorder %s31, 1
      %p154 = por %p152, %p153
      %p155 = scmp.ne.s32.totalorder %s146, %s147
      %p156 = scmp.eq.s32.totalorder %s31, 0
      %p157 = por %p155, %p156
      %p158 = scmp.ne.s32.totalorder %s146, %s147
      %p159 = scmp.eq.s32.totalorder %s32, 1
      %p160 = por %p158, %p159
      %p162 = scmp.ne.s32.totalorder %s147, %s161
      %p163 = scmp.eq.s32.totalorder %s32, 0
      %p164 = por %p162, %p163
      %s166 = sadd.s32 %s165, 1
      %p169 = scmp.eq.s32.totalorder %s26, 1
      %p170 = scmp.ne.s32.totalorder %s165, %s167
      %p171 = scmp.eq.s32.totalorder %s26, 0
      %p172 = por %p170, %p171
      %p173 = scmp.ne.s32.totalorder %s165, %s167
      %p174 = scmp.eq.s32.totalorder %s31, 1
      %p175 = por %p173, %p174
      %p176 = scmp.ne.s32.totalorder %s167, %s168
      %p177 = scmp.eq.s32.totalorder %s31, 0
      %p178 = por %p176, %p177
      %p179 = scmp.ne.s32.totalorder %s167, %s168
      %p180 = scmp.eq.s32.totalorder %s32, 1
      %p181 = por %p179, %p180
      %p183 = scmp.ne.s32.totalorder %s168, %s182
      %p184 = scmp.eq.s32.totalorder %s32, 0
      %p185 = por %p183, %p184
      %s187 = sadd.s32 %s186, 1
      %p190 = scmp.eq.s32.totalorder %s26, 1
      %p191 = scmp.ne.s32.totalorder %s186, %s188
      %p192 = scmp.eq.s32.totalorder %s26, 0
      %p193 = por %p191, %p192
      %p194 = scmp.ne.s32.totalorder %s186, %s188
      %p195 = scmp.eq.s32.totalorder %s31, 1
      %p196 = por %p194, %p195
      %p197 = scmp.ne.s32.totalorder %s188, %s189
      %p198 = scmp.eq.s32.totalorder %s31, 0
      %p199 = por %p197, %p198
      %p200 = scmp.ne.s32.totalorder %s188, %s189
      %p201 = scmp.eq.s32.totalorder %s32, 1
      %p202 = por %p200, %p201
      %p204 = scmp.ne.s32.totalorder %s189, %s203
      %p205 = scmp.eq.s32.totalorder %s32, 0
      %p206 = por %p204, %p205
      %s208 = sadd.s32 %s207, 1
      %p211 = scmp.eq.s32.totalorder %s26, 1
      %p212 = scmp.ne.s32.totalorder %s207, %s209
      %p213 = scmp.eq.s32.totalorder %s26, 0
      %p214 = por %p212, %p213
      %p215 = scmp.ne.s32.totalorder %s207, %s209
      %p216 = scmp.eq.s32.totalorder %s31, 1
      %p217 = por %p215, %p216
      %p218 = scmp.ne.s32.totalorder %s209, %s210
      %p219 = scmp.eq.s32.totalorder %s31, 0
      %p220 = por %p218, %p219
      %p221 = scmp.ne.s32.totalorder %s209, %s210
      %p222 = scmp.eq.s32.totalorder %s32, 1
      %p223 = por %p221, %p222
      %p225 = scmp.ne.s32.totalorder %s210, %s224
      %p226 = scmp.eq.s32.totalorder %s32, 0
      %p227 = por %p225, %p226
      %s229 = sadd.s32 %s228, 1
      %p232 = scmp.eq.s32.totalorder %s26, 1
      %p233 = scmp.ne.s32.totalorder %s228, %s230
      %p234 = scmp.eq.s32.totalorder %s26, 0
      %p235 = por %p233, %p234
      %p236 = scmp.ne.s32.totalorder %s228, %s230
      %p237 = scmp.eq.s32.totalorder %s31, 1
      %p238 = por %p236, %p237
      %p239 = scmp.ne.s32.totalorder %s230, %s231
      %p240 = scmp.eq.s32.totalorder %s31, 0
      %p241 = por %p239, %p240
      %p242 = scmp.ne.s32.totalorder %s230, %s231
      %p243 = scmp.eq.s32.totalorder %s32, 1
      %p244 = por %p242, %p243
      %p246 = scmp.ne.s32.totalorder %s231, %s245
      %p247 = scmp.eq.s32.totalorder %s32, 0
      %p248 = por %p246, %p247
      %s250 = sadd.s32 %s249, 1
      %p253 = scmp.eq.s32.totalorder %s26, 1
      %p254 = scmp.ne.s32.totalorder %s249, %s251
      %p255 = scmp.eq.s32.totalorder %s26, 0
      %p256 = por %p254, %p255
      %p257 = scmp.ne.s32.totalorder %s249, %s251
      %p258 = scmp.eq.s32.totalorder %s31, 1
      %p259 = por %p257, %p258
      %p260 = scmp.ne.s32.totalorder %s251, %s252
      %p261 = scmp.eq.s32.totalorder %s31, 0
      %p262 = por %p260, %p261
      %p263 = scmp.ne.s32.totalorder %s251, %s252
      %p264 = scmp.eq.s32.totalorder %s32, 1
      %p265 = por %p263, %p264
      %p267 = scmp.ne.s32.totalorder %s252, %s266
      %p268 = scmp.eq.s32.totalorder %s32, 0
      %p269 = por %p267, %p268
      %s270 = ssub.s32 %s26, %s33
      %p271 = scmp.eq.s32.totalorder %s270, 0
      %s273 = sadd.s32 %s272, 1
      %s274 = scalar_select %p271, %s272, %s273
      %p277 = pneg %p271
      %p278 = scmp.eq.s32.totalorder %s26, 1
      %p279 = por %p277, %p278
      %p280 = scmp.ne.s32.totalorder %s272, %s275
      %p281 = scmp.eq.s32.totalorder %s26, 0
      %p282 = por %p280, %p281
      %p283 = scmp.ne.s32.totalorder %s272, %s275
      %p284 = scmp.eq.s32.totalorder %s31, 1
      %p285 = por %p283, %p284
      %p286 = scmp.ne.s32.totalorder %s275, %s276
      %p287 = scmp.eq.s32.totalorder %s31, 0
      %p288 = por %p286, %p287
      %p289 = scmp.ne.s32.totalorder %s275, %s276
      %p290 = scmp.eq.s32.totalorder %s32, 1
      %p291 = por %p289, %p290
      %p293 = scmp.ne.s32.totalorder %s276, %s292
      %p294 = scmp.eq.s32.totalorder %s32, 0
      %p295 = por %p293, %p294
      %p296 = scmp.le.s32.totalorder 1, %s26
      %p297 = scmp.lt.s32.totalorder %s26, 3
      %p298 = pnand %p296, %p297
      %p299 = pneg %p298
      // Predicated region
      $region9: #{tpu_custom_call.1} parent=5 // pred_check
        _
      $region10: #{tpu_custom_call.1} parent=5 // pred_check_branch
        %301 = sbr.rel (%p298) target = $region12
      $region11: #{tpu_custom_call.1} parent=5 // pred_region
        %s302 = ssub.s32 %s26, 1
        // Predicated region
        $region13: #{tpu_custom_call.1} parent=11 // pred_check
          %p303 = pneg %p73
        $region14: #{tpu_custom_call.1} parent=11 // pred_check_branch
          %305 = sbr.rel (%p303) target = $region16
        $region15: #{tpu_custom_call.1} parent=11 // pred_region
          %s307 = ssub.s32 4096, 4096
          %308 = vsyncadd [#allocation8], %s307
          %s309 = sshll.u32 [#allocation7], 4
          %s310 = int_to_ptr.vmem [resolvable:$true] %s309
          %315 = dma.hbm_to_vmem [thread:$0]  %s1, 4096, %s310, [#allocation8], 256, 256, 16
        $region16: #{tpu_custom_call.1} parent=11 // pred_fallthru
          _
        // Predicated region
        $region17: #{tpu_custom_call.1} parent=11 // pred_check
          %p316 = pneg %p94
        $region18: #{tpu_custom_call.1} parent=11 // pred_check_branch
          %318 = sbr.rel (%p316) target = $region20
        $region19: #{tpu_custom_call.1} parent=11 // pred_region
          %s320 = ssub.s32 4096, 4096
          %321 = vsyncadd [#allocation8], %s320
          %s322 = sshll.u32 [#allocation9], 4
          %s323 = int_to_ptr.vmem [resolvable:$true] %s322
          %328 = dma.hbm_to_vmem [thread:$0]  %s2, 4096, %s323, [#allocation8], 256, 256, 16
        $region20: #{tpu_custom_call.1} parent=11 // pred_fallthru
          _
        // Predicated region
        $region21: #{tpu_custom_call.1} parent=11 // pred_check
          %p329 = pneg %p115
        $region22: #{tpu_custom_call.1} parent=11 // pred_check_branch
          %331 = sbr.rel (%p329) target = $region24
        $region23: #{tpu_custom_call.1} parent=11 // pred_region
          _
        $region24: #{tpu_custom_call.1} parent=11 // pred_fallthru
          _
        // Predicated region
        $region25: #{tpu_custom_call.1} parent=11 // pred_check
          %p332 = pneg %p136
        $region26: #{tpu_custom_call.1} parent=11 // pred_check_branch
          %334 = sbr.rel (%p332) target = $region28
        $region27: #{tpu_custom_call.1} parent=11 // pred_region
          %s336 = ssub.s32 4096, 4096
          %337 = vsyncadd [#allocation11], %s336
          %s338 = sshll.u32 [#allocation10], 4
          %s339 = int_to_ptr.vmem [resolvable:$true] %s338
          %344 = dma.hbm_to_vmem [thread:$0]  %s4, 4096, %s339, [#allocation11], 256, 256, 16
        $region28: #{tpu_custom_call.1} parent=11 // pred_fallthru
          _
        // Predicated region
        $region29: #{tpu_custom_call.1} parent=11 // pred_check
          %p345 = pneg %p157
        $region30: #{tpu_custom_call.1} parent=11 // pred_check_branch
          %347 = sbr.rel (%p345) target = $region32
        $region31: #{tpu_custom_call.1} parent=11 // pred_region
          %s349 = ssub.s32 4096, 4096
          %350 = vsyncadd [#allocation11], %s349
          %s351 = sshll.u32 [#allocation12], 4
          %s352 = int_to_ptr.vmem [resolvable:$true] %s351
          %357 = dma.hbm_to_vmem [thread:$0]  %s5, 4096, %s352, [#allocation11], 256, 256, 16
        $region32: #{tpu_custom_call.1} parent=11 // pred_fallthru
          _
        // Predicated region
        $region33: #{tpu_custom_call.1} parent=11 // pred_check
          %p358 = pneg %p178
        $region34: #{tpu_custom_call.1} parent=11 // pred_check_branch
          %360 = sbr.rel (%p358) target = $region36
        $region35: #{tpu_custom_call.1} parent=11 // pred_region
          _
        $region36: #{tpu_custom_call.1} parent=11 // pred_fallthru
          _
        // Predicated region
        $region37: #{tpu_custom_call.1} parent=11 // pred_check
          %p361 = pneg %p199
        $region38: #{tpu_custom_call.1} parent=11 // pred_check_branch
          %363 = sbr.rel (%p361) target = $region40
        $region39: #{tpu_custom_call.1} parent=11 // pred_region
          %s365 = ssub.s32 1024, 1024
          %366 = vsyncadd [#allocation14], %s365
          %s367 = sshll.u32 [#allocation13], 4
          %s368 = int_to_ptr.vmem [resolvable:$true] %s367
          %373 = dma.hbm_to_vmem [thread:$0]  %s7, 1024, %s368, [#allocation14], 64, 64, 4
        $region40: #{tpu_custom_call.1} parent=11 // pred_fallthru
          _
        // Predicated region
        $region41: #{tpu_custom_call.1} parent=11 // pred_check
          %p374 = pneg %p220
        $region42: #{tpu_custom_call.1} parent=11 // pred_check_branch
          %376 = sbr.rel (%p374) target = $region44
        $region43: #{tpu_custom_call.1} parent=11 // pred_region
          _
        $region44: #{tpu_custom_call.1} parent=11 // pred_fallthru
          _
        // Predicated region
        $region45: #{tpu_custom_call.1} parent=11 // pred_check
          %p377 = pneg %p241
        $region46: #{tpu_custom_call.1} parent=11 // pred_check_branch
          %379 = sbr.rel (%p377) target = $region48
        $region47: #{tpu_custom_call.1} parent=11 // pred_region
          %s381 = ssub.s32 1024, 1024
          %382 = vsyncadd [#allocation14], %s381
          %s383 = sshll.u32 [#allocation15], 4
          %s384 = int_to_ptr.vmem [resolvable:$true] %s383
          %389 = dma.hbm_to_vmem [thread:$0]  %s9, 1024, %s384, [#allocation14], 64, 64, 4
        $region48: #{tpu_custom_call.1} parent=11 // pred_fallthru
          _
        // Predicated region
        $region49: #{tpu_custom_call.1} parent=11 // pred_check
          %p390 = pneg %p262
        $region50: #{tpu_custom_call.1} parent=11 // pred_check_branch
          %392 = sbr.rel (%p390) target = $region52
        $region51: #{tpu_custom_call.1} parent=11 // pred_region
          _
        $region52: #{tpu_custom_call.1} parent=11 // pred_fallthru
          _
      $region12: #{tpu_custom_call.1} parent=5 // pred_fallthru
        _
      %p393 = scmp.lt.s32.totalorder %s26, 2
      // Predicated region
      $region53: #{tpu_custom_call.1} parent=5 // pred_check
        %p394 = pneg %p393
      $region54: #{tpu_custom_call.1} parent=5 // pred_check_branch
        %396 = sbr.rel (%p394) target = $region56
      $region55: #{tpu_custom_call.1} parent=5 // pred_region
        // Predicated region
        $region57: #{tpu_custom_call.1} parent=55 // pred_check
          %p397 = pneg %p46
        $region58: #{tpu_custom_call.1} parent=55 // pred_check_branch
          %399 = sbr.rel (%p397) target = $region60
        $region59: #{tpu_custom_call.1} parent=55 // pred_region
          %s400 = sand.u32 %s36, 1
          %s401 = scalar_lea.sflag [#allocation5], %s400
          %s402 = sand.u32 %s36, 1
          %s403 = smul.addr %s402, 64
          %s404 = scalar_lea.vmem [#allocation4], %s403
          %s405 = smul.u32 16, %s26
          %s407 = ssub.s32 1024, 1024
          %408 = vsyncadd %s401, %s407
          %s409 = smul.addr %s405, 64
          %s410 = scalar_lea.hbm %s0, %s409
          %s411 = sshll.u32 %s404, 4
          %s412 = int_to_ptr.vmem [resolvable:$true] %s411
          %417 = dma.hbm_to_vmem [thread:$0]  %s410, 1024, %s412, %s401, 64, 64, 4
        $region60: #{tpu_custom_call.1} parent=55 // pred_fallthru
          _
      $region56: #{tpu_custom_call.1} parent=5 // pred_fallthru
        _
      %p418 = scmp.le.s32.totalorder 1, %s26
      %p419 = scmp.lt.s32.totalorder %s26, 3
      %p420 = pnand %p418, %p419
      %p421 = pneg %p420
      // Predicated region
      $region61: #{tpu_custom_call.1} parent=5 // pred_check
        _
      $region62: #{tpu_custom_call.1} parent=5 // pred_check_branch
        %423 = sbr.rel (%p420) target = $region64
      $region63: #{tpu_custom_call.1} parent=5 // pred_region
        %s424 = ssub.s32 %s26, 1
        %s425 = sand.u32 %s39, 1
        %s426 = scalar_lea.sflag [#allocation5], %s425
        %s427 = sand.u32 %s39, 1
        %s428 = smul.addr %s427, 64
        %s429 = scalar_lea.vmem [#allocation4], %s428
        // Predicated region
        $region65: #{tpu_custom_call.1} parent=63 // pred_check
          %p430 = pneg %p52
        $region66: #{tpu_custom_call.1} parent=63 // pred_check_branch
          %432 = sbr.rel (%p430) target = $region68
        $region67: #{tpu_custom_call.1} parent=63 // pred_region
          %433 = dma.done %s426, 1024
        $region68: #{tpu_custom_call.1} parent=63 // pred_fallthru
          _
        // Predicated region
        $region69: #{tpu_custom_call.1} parent=63 // pred_check
          %p434 = pneg %p73
        $region70: #{tpu_custom_call.1} parent=63 // pred_check_branch
          %436 = sbr.rel (%p434) target = $region72
        $region71: #{tpu_custom_call.1} parent=63 // pred_region
          %437 = dma.done [#allocation8], 4096
        $region72: #{tpu_custom_call.1} parent=63 // pred_fallthru
          _
        // Predicated region
        $region73: #{tpu_custom_call.1} parent=63 // pred_check
          %p438 = pneg %p94
        $region74: #{tpu_custom_call.1} parent=63 // pred_check_branch
          %440 = sbr.rel (%p438) target = $region76
        $region75: #{tpu_custom_call.1} parent=63 // pred_region
          %441 = dma.done [#allocation8], 4096
        $region76: #{tpu_custom_call.1} parent=63 // pred_fallthru
          _
        // Predicated region
        $region77: #{tpu_custom_call.1} parent=63 // pred_check
          %p442 = pneg %p136
        $region78: #{tpu_custom_call.1} parent=63 // pred_check_branch
          %444 = sbr.rel (%p442) target = $region80
        $region79: #{tpu_custom_call.1} parent=63 // pred_region
          %445 = dma.done [#allocation11], 4096
        $region80: #{tpu_custom_call.1} parent=63 // pred_fallthru
          _
        // Predicated region
        $region81: #{tpu_custom_call.1} parent=63 // pred_check
          %p446 = pneg %p157
        $region82: #{tpu_custom_call.1} parent=63 // pred_check_branch
          %448 = sbr.rel (%p446) target = $region84
        $region83: #{tpu_custom_call.1} parent=63 // pred_region
          %449 = dma.done [#allocation11], 4096
        $region84: #{tpu_custom_call.1} parent=63 // pred_fallthru
          _
        // Predicated region
        $region85: #{tpu_custom_call.1} parent=63 // pred_check
          %p450 = pneg %p199
        $region86: #{tpu_custom_call.1} parent=63 // pred_check_branch
          %452 = sbr.rel (%p450) target = $region88
        $region87: #{tpu_custom_call.1} parent=63 // pred_region
          %453 = dma.done [#allocation14], 1024
        $region88: #{tpu_custom_call.1} parent=63 // pred_fallthru
          _
        // Predicated region
        $region89: #{tpu_custom_call.1} parent=63 // pred_check
          %p454 = pneg %p241
        $region90: #{tpu_custom_call.1} parent=63 // pred_check_branch
          %456 = sbr.rel (%p454) target = $region92
        $region91: #{tpu_custom_call.1} parent=63 // pred_region
          %457 = dma.done [#allocation14], 1024
        $region92: #{tpu_custom_call.1} parent=63 // pred_fallthru
          _
        %s458 = sand.u32 %s39, 1
        %s459 = scalar_lea.sflag [#allocation5], %s458
        %s460 = sand.u32 %s39, 1
        %s461 = smul.addr %s460, 64
        %s462 = scalar_lea.vmem [#allocation4], %s461
        %p463 = pneg %p52
        %p464 = pneg %p49
        %p465 = pneg %p73
        %p466 = pneg %p70
        %p467 = pneg %p94
        %p468 = pneg %p91
        %p469 = pneg %p115
        %p470 = pneg %p112
        %p471 = pneg %p136
        %p472 = pneg %p133
        %p473 = pneg %p157
        %p474 = pneg %p154
        %p475 = pneg %p178
        %p476 = pneg %p175
        %p477 = pneg %p199
        %p478 = pneg %p196
        %p479 = pneg %p220
        %p480 = pneg %p217
        %p481 = pneg %p241
        %p482 = pneg %p238
        %p483 = pneg %p262
        %p484 = pneg %p259
        %p485 = pneg %p288
        %p486 = pneg %p285
        %s487 = sand.u32 %s275, 1
        %s488 = scalar_lea.sflag [#allocation6], %s487
        %s489 = sand.u32 %s275, 1
        %s490 = smul.addr %s489, 16
        %s491 = scalar_lea.vmem [#allocation16], %s490
        %s492 = smul.u32 16, %s31
        %s493 = smul.u32 2, %s31
        loop: start=0, step=1, limit=2
        $region93: #{tpu_custom_call.1} parent=63 // loop_pre_header
          _
        $region94: #{tpu_custom_call.1} parent=63 // loop_header
          %s496 = sphi 0, %s500
          %p497 = scmp.ge.s32.totalorder %s496, 2
          %v501 = vphi 0.0, %v2334
          %v502 = vphi 0.0, %v2335
          %v503 = vphi 0.0, %v2330
          %v504 = vphi 0.0, %v2331
        $region95: #{tpu_custom_call.1} parent=63 // loop_header_branch
          %499 = sbr.rel (%p497) target = $region99
        $region96: #{tpu_custom_call.1} parent=63 // loop_body
          %s505 = smul.u32 %s496, 64
          %s506 = sshra.s32 %s505, 3
          %s507 = sand.u32 %s505, 7
          %s508 = smul.addr %s506, 4
          %s509 = scalar_lea.vmem %s429, %s508 [#allocation4]
          %v510 = vld [vmem:[%s509] sm:$0xf]
          %v511 = vld [vmem:[%s509 + $0x4] sm:$0xf]
          %v512 = vld [vmem:[%s509 + $0x8] sm:$0xf]
          %v513 = vld [vmem:[%s509 + $0xc] sm:$0xf]
          %v514 = vld [vmem:[%s509 + $0x10] sm:$0xf]
          %v515 = vld [vmem:[%s509 + $0x14] sm:$0xf]
          %v516 = vld [vmem:[%s509 + $0x18] sm:$0xf]
          %v517 = vld [vmem:[%s509 + $0x1c] sm:$0xf]
          %v518 = vld [vmem:[#allocation7] sm:$0xff]
          %v519 = vld [vmem:[#allocation7 + $0x8] sm:$0xff]
          %v520 = vld [vmem:[#allocation7 + $0x10] sm:$0xff]
          %v521 = vld [vmem:[#allocation7 + $0x18] sm:$0xff]
          %v522 = vld [vmem:[#allocation7 + $0x20] sm:$0xff]
          %v523 = vld [vmem:[#allocation7 + $0x28] sm:$0xff]
          %v524 = vld [vmem:[#allocation7 + $0x30] sm:$0xff]
          %v525 = vld [vmem:[#allocation7 + $0x38] sm:$0xff]
          %v526 = vld [vmem:[#allocation7 + $0x40] sm:$0xff]
          %v527 = vld [vmem:[#allocation7 + $0x48] sm:$0xff]
          %v528 = vld [vmem:[#allocation7 + $0x50] sm:$0xff]
          %v529 = vld [vmem:[#allocation7 + $0x58] sm:$0xff]
          %v530 = vld [vmem:[#allocation7 + $0x60] sm:$0xff]
          %v531 = vld [vmem:[#allocation7 + $0x68] sm:$0xff]
          %v532 = vld [vmem:[#allocation7 + $0x70] sm:$0xff]
          %v533 = vld [vmem:[#allocation7 + $0x78] sm:$0xff]
          %v534 = vld [vmem:[#allocation7 + $0x80] sm:$0xff]
          %v535 = vld [vmem:[#allocation7 + $0x88] sm:$0xff]
          %v536 = vld [vmem:[#allocation7 + $0x90] sm:$0xff]
          %v537 = vld [vmem:[#allocation7 + $0x98] sm:$0xff]
          %v538 = vld [vmem:[#allocation7 + $0xa0] sm:$0xff]
          %v539 = vld [vmem:[#allocation7 + $0xa8] sm:$0xff]
          %v540 = vld [vmem:[#allocation7 + $0xb0] sm:$0xff]
          %v541 = vld [vmem:[#allocation7 + $0xb8] sm:$0xff]
          %v542 = vld [vmem:[#allocation7 + $0xc0] sm:$0xff]
          %v543 = vld [vmem:[#allocation7 + $0xc8] sm:$0xff]
          %v544 = vld [vmem:[#allocation7 + $0xd0] sm:$0xff]
          %v545 = vld [vmem:[#allocation7 + $0xd8] sm:$0xff]
          %v546 = vld [vmem:[#allocation7 + $0xe0] sm:$0xff]
          %v547 = vld [vmem:[#allocation7 + $0xe8] sm:$0xff]
          %v548 = vld [vmem:[#allocation7 + $0xf0] sm:$0xff]
          %v549 = vld [vmem:[#allocation7 + $0xf8] sm:$0xff]
          %v550 = vld [vmem:[%s3] sm:$0xf]
          %v552 = vlaneseq
          %v553 = vshrl.u32 %v552, 7
          %v554 = vsub.s32 0, %v553
          %v555 = vrot.slane %v550, %v554
          %v556 = vlaneseq
          %v557 = vshrl.u32 %v556, 7
          %v558 = vsub.s32 1, %v557
          %v559 = vrot.slane %v550, %v558
          %v560 = vlaneseq
          %v561 = vshrl.u32 %v560, 7
          %v562 = vsub.s32 2, %v561
          %v563 = vrot.slane %v550, %v562
          %v564 = vlaneseq
          %v565 = vshrl.u32 %v564, 7
          %v566 = vsub.s32 3, %v565
          %v567 = vrot.slane %v550, %v566
          %v580 = vunpack.c.l.b16 %v510
          %v581 = vunpack.c.l.b16 %v511
          %v582 = vunpack.c.l.b16 %v512
          %v583 = vunpack.c.l.b16 %v513
          %v584 = vunpack.c.l.b16 %v514
          %v585 = vunpack.c.l.b16 %v515
          %v586 = vunpack.c.l.b16 %v516
          %v587 = vunpack.c.l.b16 %v517
          %v588 = vpack.c.b16 %v581, %v580
          %v589 = vpack.c.b16 %v583, %v582
          %v590 = vpack.c.b16 %v585, %v584
          %v591 = vpack.c.b16 %v587, %v586
          %v628 = vunpack.c.l.b16 %v518
          %v629 = vunpack.c.h.b16 %v518
          %v630 = vunpack.c.l.b16 %v519
          %v631 = vunpack.c.h.b16 %v519
          %v632 = vunpack.c.l.b16 %v520
          %v633 = vunpack.c.h.b16 %v520
          %v634 = vunpack.c.l.b16 %v521
          %v635 = vunpack.c.h.b16 %v521
          %v636 = vunpack.c.l.b16 %v522
          %v637 = vunpack.c.h.b16 %v522
          %v638 = vunpack.c.l.b16 %v523
          %v639 = vunpack.c.h.b16 %v523
          %v640 = vunpack.c.l.b16 %v524
          %v641 = vunpack.c.h.b16 %v524
          %v642 = vunpack.c.l.b16 %v525
          %v643 = vunpack.c.h.b16 %v525
          %v644 = vunpack.c.l.b16 %v526
          %v645 = vunpack.c.h.b16 %v526
          %v646 = vunpack.c.l.b16 %v527
          %v647 = vunpack.c.h.b16 %v527
          %v648 = vunpack.c.l.b16 %v528
          %v649 = vunpack.c.h.b16 %v528
          %v650 = vunpack.c.l.b16 %v529
          %v651 = vunpack.c.h.b16 %v529
          %v652 = vunpack.c.l.b16 %v530
          %v653 = vunpack.c.h.b16 %v530
          %v654 = vunpack.c.l.b16 %v531
          %v655 = vunpack.c.h.b16 %v531
          %v656 = vunpack.c.l.b16 %v532
          %v657 = vunpack.c.h.b16 %v532
          %v658 = vunpack.c.l.b16 %v533
          %v659 = vunpack.c.h.b16 %v533
          %v660 = vunpack.c.l.b16 %v534
          %v661 = vunpack.c.h.b16 %v534
          %v662 = vunpack.c.l.b16 %v535
          %v663 = vunpack.c.h.b16 %v535
          %v664 = vunpack.c.l.b16 %v536
          %v665 = vunpack.c.h.b16 %v536
          %v666 = vunpack.c.l.b16 %v537
          %v667 = vunpack.c.h.b16 %v537
          %v668 = vunpack.c.l.b16 %v538
          %v669 = vunpack.c.h.b16 %v538
          %v670 = vunpack.c.l.b16 %v539
          %v671 = vunpack.c.h.b16 %v539
          %v672 = vunpack.c.l.b16 %v540
          %v673 = vunpack.c.h.b16 %v540
          %v674 = vunpack.c.l.b16 %v541
          %v675 = vunpack.c.h.b16 %v541
          %v676 = vunpack.c.l.b16 %v542
          %v677 = vunpack.c.h.b16 %v542
          %v678 = vunpack.c.l.b16 %v543
          %v679 = vunpack.c.h.b16 %v543
          %v680 = vunpack.c.l.b16 %v544
          %v681 = vunpack.c.h.b16 %v544
          %v682 = vunpack.c.l.b16 %v545
          %v683 = vunpack.c.h.b16 %v545
          %v684 = vunpack.c.l.b16 %v546
          %v685 = vunpack.c.h.b16 %v546
          %v686 = vunpack.c.l.b16 %v547
          %v687 = vunpack.c.h.b16 %v547
          %v688 = vunpack.c.l.b16 %v548
          %v689 = vunpack.c.h.b16 %v548
          %v690 = vunpack.c.l.b16 %v549
          %v691 = vunpack.c.h.b16 %v549
          %v692 = vpack.c.b16 %v632, %v628
          %v693 = vpack.c.b16 %v633, %v629
          %v694 = vpack.c.b16 %v634, %v630
          %v695 = vpack.c.b16 %v635, %v631
          %v696 = vpack.c.b16 %v640, %v636
          %v697 = vpack.c.b16 %v641, %v637
          %v698 = vpack.c.b16 %v642, %v638
          %v699 = vpack.c.b16 %v643, %v639
          %v700 = vpack.c.b16 %v648, %v644
          %v701 = vpack.c.b16 %v649, %v645
          %v702 = vpack.c.b16 %v650, %v646
          %v703 = vpack.c.b16 %v651, %v647
          %v704 = vpack.c.b16 %v656, %v652
          %v705 = vpack.c.b16 %v657, %v653
          %v706 = vpack.c.b16 %v658, %v654
          %v707 = vpack.c.b16 %v659, %v655
          %v708 = vpack.c.b16 %v664, %v660
          %v709 = vpack.c.b16 %v665, %v661
          %v710 = vpack.c.b16 %v666, %v662
          %v711 = vpack.c.b16 %v667, %v663
          %v712 = vpack.c.b16 %v672, %v668
          %v713 = vpack.c.b16 %v673, %v669
          %v714 = vpack.c.b16 %v674, %v670
          %v715 = vpack.c.b16 %v675, %v671
          %v716 = vpack.c.b16 %v680, %v676
          %v717 = vpack.c.b16 %v681, %v677
          %v718 = vpack.c.b16 %v682, %v678
          %v719 = vpack.c.b16 %v683, %v679
          %v720 = vpack.c.b16 %v688, %v684
          %v721 = vpack.c.b16 %v689, %v685
          %v722 = vpack.c.b16 %v690, %v686
          %v723 = vpack.c.b16 %v691, %v687
          %756 = vmatprep.subr.bf16.mxu0 %v693
          %757 = vmatpush1.bf16.msra.mxu0 %v692
          %758 = vmatprep.subr.bf16.mxu0 %v697
          %759 = vmatpush1.bf16.msra.mxu0 %v696
          %760 = vmatprep.subr.bf16.mxu0 %v701
          %761 = vmatpush1.bf16.msra.mxu0 %v700
          %762 = vmatprep.subr.bf16.mxu0 %v705
          %763 = vmatpush1.bf16.msra.mxu0 %v704
          %764 = vmatprep.subr.bf16.mxu0 %v709
          %765 = vmatpush1.bf16.msra.mxu0 %v708
          %766 = vmatprep.subr.bf16.mxu0 %v713
          %767 = vmatpush1.bf16.msra.mxu0 %v712
          %768 = vmatprep.subr.bf16.mxu0 %v717
          %769 = vmatpush1.bf16.msra.mxu0 %v716
          %770 = vmatprep.subr.bf16.mxu0 %v721
          %771 = vmatpush1.bf16.msra.mxu0 %v720
          %772 = vmatprep.subr.bf16.mxu0 0
          %773 = vmatpush1.bf16.msra.mxu0 0
          %774 = vmatprep.subr.bf16.mxu0 0
          %775 = vmatpush1.bf16.msra.mxu0 0
          %776 = vmatprep.subr.bf16.mxu0 0
          %777 = vmatpush1.bf16.msra.mxu0 0
          %778 = vmatprep.subr.bf16.mxu0 0
          %779 = vmatpush1.bf16.msra.mxu0 0
          %780 = vmatprep.subr.bf16.mxu0 0
          %781 = vmatpush1.bf16.msra.mxu0 0
          %782 = vmatprep.subr.bf16.mxu0 0
          %783 = vmatpush1.bf16.msra.mxu0 0
          %784 = vmatprep.subr.bf16.mxu0 0
          %785 = vmatpush1.bf16.msra.mxu0 0
          %786 = vmatprep.subr.bf16.mxu0 0
          %787 = vmatpush1.bf16.msra.mxu0 0
          %788 = vmatprep.mubr.bf16.mxu0 0
          %789 = vmatmul.mubr.bf16.gmra.mrb[0].mxu0 %v588
          %v790 = vpop.f32.mrb[0].mxu0
          %v791 = vadd.f32 %v555, %v790
          %v792 = vpop.f32.mrb[0].mxu0
          %v793 = vadd.f32 %v559, %v792
          %v794 = vpop.f32.mrb[0].mxu0
          %v795 = vadd.f32 %v555, %v794
          %v796 = vpop.f32.mrb[0].mxu0
          %v797 = vadd.f32 %v559, %v796
          %798 = vmatprep.mubr.bf16.mxu0 0
          %799 = vmatmul.mubr.bf16.gmra.mrb[0].mxu0 %v589
          %v800 = vpop.f32.mrb[0].mxu0
          %v801 = vadd.f32 %v555, %v800
          %v802 = vpop.f32.mrb[0].mxu0
          %v803 = vadd.f32 %v559, %v802
          %v804 = vpop.f32.mrb[0].mxu0
          %v805 = vadd.f32 %v555, %v804
          %v806 = vpop.f32.mrb[0].mxu0
          %v807 = vadd.f32 %v559, %v806
          %808 = vmatprep.mubr.bf16.mxu0 0
          %809 = vmatmul.mubr.bf16.gmra.mrb[0].mxu0 %v590
          %v810 = vpop.f32.mrb[0].mxu0
          %v811 = vadd.f32 %v555, %v810
          %v812 = vpop.f32.mrb[0].mxu0
          %v813 = vadd.f32 %v559, %v812
          %v814 = vpop.f32.mrb[0].mxu0
          %v815 = vadd.f32 %v555, %v814
          %v816 = vpop.f32.mrb[0].mxu0
          %v817 = vadd.f32 %v559, %v816
          %818 = vmatprep.mubr.bf16.mxu0 0
          %819 = vmatmul.mubr.bf16.gmra.mrb[0].mxu0 %v591
          %v820 = vpop.f32.mrb[0].mxu0
          %v821 = vadd.f32 %v555, %v820
          %v822 = vpop.f32.mrb[0].mxu0
          %v823 = vadd.f32 %v559, %v822
          %v824 = vpop.f32.mrb[0].mxu0
          %v825 = vadd.f32 %v555, %v824
          %v826 = vpop.f32.mrb[0].mxu0
          %v827 = vadd.f32 %v559, %v826
          %828 = vdwg.mxu0
          %829 = vmatprep.subr.bf16.mxu0 %v695
          %830 = vmatpush1.bf16.msra.mxu0 %v694
          %831 = vmatprep.subr.bf16.mxu0 %v699
          %832 = vmatpush1.bf16.msra.mxu0 %v698
          %833 = vmatprep.subr.bf16.mxu0 %v703
          %834 = vmatpush1.bf16.msra.mxu0 %v702
          %835 = vmatprep.subr.bf16.mxu0 %v707
          %836 = vmatpush1.bf16.msra.mxu0 %v706
          %837 = vmatprep.subr.bf16.mxu0 %v711
          %838 = vmatpush1.bf16.msra.mxu0 %v710
          %839 = vmatprep.subr.bf16.mxu0 %v715
          %840 = vmatpush1.bf16.msra.mxu0 %v714
          %841 = vmatprep.subr.bf16.mxu0 %v719
          %842 = vmatpush1.bf16.msra.mxu0 %v718
          %843 = vmatprep.subr.bf16.mxu0 %v723
          %844 = vmatpush1.bf16.msra.mxu0 %v722
          %845 = vmatprep.subr.bf16.mxu0 0
          %846 = vmatpush1.bf16.msra.mxu0 0
          %847 = vmatprep.subr.bf16.mxu0 0
          %848 = vmatpush1.bf16.msra.mxu0 0
          %849 = vmatprep.subr.bf16.mxu0 0
          %850 = vmatpush1.bf16.msra.mxu0 0
          %851 = vmatprep.subr.bf16.mxu0 0
          %852 = vmatpush1.bf16.msra.mxu0 0
          %853 = vmatprep.subr.bf16.mxu0 0
          %854 = vmatpush1.bf16.msra.mxu0 0
          %855 = vmatprep.subr.bf16.mxu0 0
          %856 = vmatpush1.bf16.msra.mxu0 0
          %857 = vmatprep.subr.bf16.mxu0 0
          %858 = vmatpush1.bf16.msra.mxu0 0
          %859 = vmatprep.subr.bf16.mxu0 0
          %860 = vmatpush1.bf16.msra.mxu0 0
          %861 = vmatprep.mubr.bf16.mxu0 0
          %862 = vmatmul.mubr.bf16.gmra.mrb[0].mxu0 %v588
          %v863 = vpop.f32.mrb[0].mxu0
          %v864 = vadd.f32 %v563, %v863
          %v865 = vpop.f32.mrb[0].mxu0
          %v866 = vadd.f32 %v567, %v865
          %v867 = vpop.f32.mrb[0].mxu0
          %v868 = vadd.f32 %v563, %v867
          %v869 = vpop.f32.mrb[0].mxu0
          %v870 = vadd.f32 %v567, %v869
          %871 = vmatprep.mubr.bf16.mxu0 0
          %872 = vmatmul.mubr.bf16.gmra.mrb[0].mxu0 %v589
          %v873 = vpop.f32.mrb[0].mxu0
          %v874 = vadd.f32 %v563, %v873
          %v875 = vpop.f32.mrb[0].mxu0
          %v876 = vadd.f32 %v567, %v875
          %v877 = vpop.f32.mrb[0].mxu0
          %v878 = vadd.f32 %v563, %v877
          %v879 = vpop.f32.mrb[0].mxu0
          %v880 = vadd.f32 %v567, %v879
          %881 = vmatprep.mubr.bf16.mxu0 0
          %882 = vmatmul.mubr.bf16.gmra.mrb[0].mxu0 %v590
          %v883 = vpop.f32.mrb[0].mxu0
          %v884 = vadd.f32 %v563, %v883
          %v885 = vpop.f32.mrb[0].mxu0
          %v886 = vadd.f32 %v567, %v885
          %v887 = vpop.f32.mrb[0].mxu0
          %v888 = vadd.f32 %v563, %v887
          %v889 = vpop.f32.mrb[0].mxu0
          %v890 = vadd.f32 %v567, %v889
          %891 = vmatprep.mubr.bf16.mxu0 0
          %892 = vmatmul.mubr.bf16.gmra.mrb[0].mxu0 %v591
          %v893 = vpop.f32.mrb[0].mxu0
          %v894 = vadd.f32 %v563, %v893
          %v895 = vpop.f32.mrb[0].mxu0
          %v896 = vadd.f32 %v567, %v895
          %v897 = vpop.f32.mrb[0].mxu0
          %v898 = vadd.f32 %v563, %v897
          %v899 = vpop.f32.mrb[0].mxu0
          %v900 = vadd.f32 %v567, %v899
          %901 = vdwg.mxu0
          %902 = vst [vmem:[#allocation2] sm:$0xff] %v791
          %903 = vst [vmem:[#allocation2 + $0x8] sm:$0xff] %v793
          %904 = vst [vmem:[#allocation2 + $0x10] sm:$0xff] %v864
          %905 = vst [vmem:[#allocation2 + $0x18] sm:$0xff] %v866
          %906 = vst [vmem:[#allocation2 + $0x20] sm:$0xff] %v795
          %907 = vst [vmem:[#allocation2 + $0x28] sm:$0xff] %v797
          %908 = vst [vmem:[#allocation2 + $0x30] sm:$0xff] %v868
          %909 = vst [vmem:[#allocation2 + $0x38] sm:$0xff] %v870
          %910 = vst [vmem:[#allocation2 + $0x40] sm:$0xff] %v801
          %911 = vst [vmem:[#allocation2 + $0x48] sm:$0xff] %v803
          %912 = vst [vmem:[#allocation2 + $0x50] sm:$0xff] %v874
          %913 = vst [vmem:[#allocation2 + $0x58] sm:$0xff] %v876
          %914 = vst [vmem:[#allocation2 + $0x60] sm:$0xff] %v805
          %915 = vst [vmem:[#allocation2 + $0x68] sm:$0xff] %v807
          %916 = vst [vmem:[#allocation2 + $0x70] sm:$0xff] %v878
          %917 = vst [vmem:[#allocation2 + $0x78] sm:$0xff] %v880
          %918 = vst [vmem:[#allocation2 + $0x80] sm:$0xff] %v811
          %919 = vst [vmem:[#allocation2 + $0x88] sm:$0xff] %v813
          %920 = vst [vmem:[#allocation2 + $0x90] sm:$0xff] %v884
          %921 = vst [vmem:[#allocation2 + $0x98] sm:$0xff] %v886
          %922 = vst [vmem:[#allocation2 + $0xa0] sm:$0xff] %v815
          %923 = vst [vmem:[#allocation2 + $0xa8] sm:$0xff] %v817
          %924 = vst [vmem:[#allocation2 + $0xb0] sm:$0xff] %v888
          %925 = vst [vmem:[#allocation2 + $0xb8] sm:$0xff] %v890
          %926 = vst [vmem:[#allocation2 + $0xc0] sm:$0xff] %v821
          %927 = vst [vmem:[#allocation2 + $0xc8] sm:$0xff] %v823
          %928 = vst [vmem:[#allocation2 + $0xd0] sm:$0xff] %v894
          %929 = vst [vmem:[#allocation2 + $0xd8] sm:$0xff] %v896
          %930 = vst [vmem:[#allocation2 + $0xe0] sm:$0xff] %v825
          %931 = vst [vmem:[#allocation2 + $0xe8] sm:$0xff] %v827
          %932 = vst [vmem:[#allocation2 + $0xf0] sm:$0xff] %v898
          %933 = vst [vmem:[#allocation2 + $0xf8] sm:$0xff] %v900
          %s934 = smul.u32 0, 4
          %s935 = smul.addr %s934, 8
          %s936 = scalar_lea.vmem [#allocation2], %s935
          %v937 = vld [vmem:[%s936] sm:$0xff]
          %v938 = vld [vmem:[%s936 + $0x8] sm:$0xff]
          %v939 = vld [vmem:[%s936 + $0x10] sm:$0xff]
          %v940 = vld [vmem:[%s936 + $0x18] sm:$0xff]
          %v941 = vld [vmem:[%s936 + $0x20] sm:$0xff]
          %v942 = vld [vmem:[%s936 + $0x28] sm:$0xff]
          %v943 = vld [vmem:[%s936 + $0x30] sm:$0xff]
          %v944 = vld [vmem:[%s936 + $0x38] sm:$0xff]
          %v945 = vpack.c.bf16 %v502, %v501
          %v946 = vld [vmem:[#allocation9] sm:$0xff]
          %v947 = vld [vmem:[#allocation9 + $0x8] sm:$0xff]
          %v948 = vld [vmem:[#allocation9 + $0x10] sm:$0xff]
          %v949 = vld [vmem:[#allocation9 + $0x18] sm:$0xff]
          %v950 = vld [vmem:[#allocation9 + $0x20] sm:$0xff]
          %v951 = vld [vmem:[#allocation9 + $0x28] sm:$0xff]
          %v952 = vld [vmem:[#allocation9 + $0x30] sm:$0xff]
          %v953 = vld [vmem:[#allocation9 + $0x38] sm:$0xff]
          %v954 = vld [vmem:[#allocation9 + $0x40] sm:$0xff]
          %v955 = vld [vmem:[#allocation9 + $0x48] sm:$0xff]
          %v956 = vld [vmem:[#allocation9 + $0x50] sm:$0xff]
          %v957 = vld [vmem:[#allocation9 + $0x58] sm:$0xff]
          %v958 = vld [vmem:[#allocation9 + $0x60] sm:$0xff]
          %v959 = vld [vmem:[#allocation9 + $0x68] sm:$0xff]
          %v960 = vld [vmem:[#allocation9 + $0x70] sm:$0xff]
          %v961 = vld [vmem:[#allocation9 + $0x78] sm:$0xff]
          %v962 = vld [vmem:[#allocation9 + $0x80] sm:$0xff]
          %v963 = vld [vmem:[#allocation9 + $0x88] sm:$0xff]
          %v964 = vld [vmem:[#allocation9 + $0x90] sm:$0xff]
          %v965 = vld [vmem:[#allocation9 + $0x98] sm:$0xff]
          %v966 = vld [vmem:[#allocation9 + $0xa0] sm:$0xff]
          %v967 = vld [vmem:[#allocation9 + $0xa8] sm:$0xff]
          %v968 = vld [vmem:[#allocation9 + $0xb0] sm:$0xff]
          %v969 = vld [vmem:[#allocation9 + $0xb8] sm:$0xff]
          %v970 = vld [vmem:[#allocation9 + $0xc0] sm:$0xff]
          %v971 = vld [vmem:[#allocation9 + $0xc8] sm:$0xff]
          %v972 = vld [vmem:[#allocation9 + $0xd0] sm:$0xff]
          %v973 = vld [vmem:[#allocation9 + $0xd8] sm:$0xff]
          %v974 = vld [vmem:[#allocation9 + $0xe0] sm:$0xff]
          %v975 = vld [vmem:[#allocation9 + $0xe8] sm:$0xff]
          %v976 = vld [vmem:[#allocation9 + $0xf0] sm:$0xff]
          %v977 = vld [vmem:[#allocation9 + $0xf8] sm:$0xff]
          %v1010 = vunpack.c.l.b16 %v946
          %v1011 = vunpack.c.h.b16 %v946
          %v1012 = vunpack.c.l.b16 %v947
          %v1013 = vunpack.c.h.b16 %v947
          %v1014 = vunpack.c.l.b16 %v948
          %v1015 = vunpack.c.h.b16 %v948
          %v1016 = vunpack.c.l.b16 %v949
          %v1017 = vunpack.c.h.b16 %v949
          %v1018 = vunpack.c.l.b16 %v950
          %v1019 = vunpack.c.h.b16 %v950
          %v1020 = vunpack.c.l.b16 %v951
          %v1021 = vunpack.c.h.b16 %v951
          %v1022 = vunpack.c.l.b16 %v952
          %v1023 = vunpack.c.h.b16 %v952
          %v1024 = vunpack.c.l.b16 %v953
          %v1025 = vunpack.c.h.b16 %v953
          %v1026 = vunpack.c.l.b16 %v954
          %v1027 = vunpack.c.h.b16 %v954
          %v1028 = vunpack.c.l.b16 %v955
          %v1029 = vunpack.c.h.b16 %v955
          %v1030 = vunpack.c.l.b16 %v956
          %v1031 = vunpack.c.h.b16 %v956
          %v1032 = vunpack.c.l.b16 %v957
          %v1033 = vunpack.c.h.b16 %v957
          %v1034 = vunpack.c.l.b16 %v958
          %v1035 = vunpack.c.h.b16 %v958
          %v1036 = vunpack.c.l.b16 %v959
          %v1037 = vunpack.c.h.b16 %v959
          %v1038 = vunpack.c.l.b16 %v960
          %v1039 = vunpack.c.h.b16 %v960
          %v1040 = vunpack.c.l.b16 %v961
          %v1041 = vunpack.c.h.b16 %v961
          %v1042 = vunpack.c.l.b16 %v962
          %v1043 = vunpack.c.h.b16 %v962
          %v1044 = vunpack.c.l.b16 %v963
          %v1045 = vunpack.c.h.b16 %v963
          %v1046 = vunpack.c.l.b16 %v964
          %v1047 = vunpack.c.h.b16 %v964
          %v1048 = vunpack.c.l.b16 %v965
          %v1049 = vunpack.c.h.b16 %v965
          %v1050 = vunpack.c.l.b16 %v966
          %v1051 = vunpack.c.h.b16 %v966
          %v1052 = vunpack.c.l.b16 %v967
          %v1053 = vunpack.c.h.b16 %v967
          %v1054 = vunpack.c.l.b16 %v968
          %v1055 = vunpack.c.h.b16 %v968
          %v1056 = vunpack.c.l.b16 %v969
          %v1057 = vunpack.c.h.b16 %v969
          %v1058 = vunpack.c.l.b16 %v970
          %v1059 = vunpack.c.h.b16 %v970
          %v1060 = vunpack.c.l.b16 %v971
          %v1061 = vunpack.c.h.b16 %v971
          %v1062 = vunpack.c.l.b16 %v972
          %v1063 = vunpack.c.h.b16 %v972
          %v1064 = vunpack.c.l.b16 %v973
          %v1065 = vunpack.c.h.b16 %v973
          %v1066 = vunpack.c.l.b16 %v974
          %v1067 = vunpack.c.h.b16 %v974
          %v1068 = vunpack.c.l.b16 %v975
          %v1069 = vunpack.c.h.b16 %v975
          %v1070 = vunpack.c.l.b16 %v976
          %v1071 = vunpack.c.h.b16 %v976
          %v1072 = vunpack.c.l.b16 %v977
          %v1073 = vunpack.c.h.b16 %v977
          %v1074 = vpack.c.b16 %v1014, %v1010
          %v1075 = vpack.c.b16 %v1015, %v1011
          %v1076 = vpack.c.b16 %v1016, %v1012
          %v1077 = vpack.c.b16 %v1017, %v1013
          %v1078 = vpack.c.b16 %v1022, %v1018
          %v1079 = vpack.c.b16 %v1023, %v1019
          %v1080 = vpack.c.b16 %v1024, %v1020
          %v1081 = vpack.c.b16 %v1025, %v1021
          %v1082 = vpack.c.b16 %v1030, %v1026
          %v1083 = vpack.c.b16 %v1031, %v1027
          %v1084 = vpack.c.b16 %v1032, %v1028
          %v1085 = vpack.c.b16 %v1033, %v1029
          %v1086 = vpack.c.b16 %v1038, %v1034
          %v1087 = vpack.c.b16 %v1039, %v1035
          %v1088 = vpack.c.b16 %v1040, %v1036
          %v1089 = vpack.c.b16 %v1041, %v1037
          %v1090 = vpack.c.b16 %v1046, %v1042
          %v1091 = vpack.c.b16 %v1047, %v1043
          %v1092 = vpack.c.b16 %v1048, %v1044
          %v1093 = vpack.c.b16 %v1049, %v1045
          %v1094 = vpack.c.b16 %v1054, %v1050
          %v1095 = vpack.c.b16 %v1055, %v1051
          %v1096 = vpack.c.b16 %v1056, %v1052
          %v1097 = vpack.c.b16 %v1057, %v1053
          %v1098 = vpack.c.b16 %v1062, %v1058
          %v1099 = vpack.c.b16 %v1063, %v1059
          %v1100 = vpack.c.b16 %v1064, %v1060
          %v1101 = vpack.c.b16 %v1065, %v1061
          %v1102 = vpack.c.b16 %v1070, %v1066
          %v1103 = vpack.c.b16 %v1071, %v1067
          %v1104 = vpack.c.b16 %v1072, %v1068
          %v1105 = vpack.c.b16 %v1073, %v1069
          %1138 = vmatprep.subr.bf16.mxu0 %v1075
          %1139 = vmatpush1.bf16.msra.mxu0 %v1074
          %1140 = vmatprep.subr.bf16.mxu0 %v1079
          %1141 = vmatpush1.bf16.msra.mxu0 %v1078
          %1142 = vmatprep.subr.bf16.mxu0 %v1083
          %1143 = vmatpush1.bf16.msra.mxu0 %v1082
          %1144 = vmatprep.subr.bf16.mxu0 %v1087
          %1145 = vmatpush1.bf16.msra.mxu0 %v1086
          %1146 = vmatprep.subr.bf16.mxu0 %v1091
          %1147 = vmatpush1.bf16.msra.mxu0 %v1090
          %1148 = vmatprep.subr.bf16.mxu0 %v1095
          %1149 = vmatpush1.bf16.msra.mxu0 %v1094
          %1150 = vmatprep.subr.bf16.mxu0 %v1099
          %1151 = vmatpush1.bf16.msra.mxu0 %v1098
          %1152 = vmatprep.subr.bf16.mxu0 %v1103
          %1153 = vmatpush1.bf16.msra.mxu0 %v1102
          %1154 = vmatprep.subr.bf16.mxu0 0
          %1155 = vmatpush1.bf16.msra.mxu0 0
          %1156 = vmatprep.subr.bf16.mxu0 0
          %1157 = vmatpush1.bf16.msra.mxu0 0
          %1158 = vmatprep.subr.bf16.mxu0 0
          %1159 = vmatpush1.bf16.msra.mxu0 0
          %1160 = vmatprep.subr.bf16.mxu0 0
          %1161 = vmatpush1.bf16.msra.mxu0 0
          %1162 = vmatprep.subr.bf16.mxu0 0
          %1163 = vmatpush1.bf16.msra.mxu0 0
          %1164 = vmatprep.subr.bf16.mxu0 0
          %1165 = vmatpush1.bf16.msra.mxu0 0
          %1166 = vmatprep.subr.bf16.mxu0 0
          %1167 = vmatpush1.bf16.msra.mxu0 0
          %1168 = vmatprep.subr.bf16.mxu0 0
          %1169 = vmatpush1.bf16.msra.mxu0 0
          %1170 = vmatprep.mubr.bf16.mxu0 0
          %1171 = vmatmul.mubr.bf16.gmra.mrb[0].mxu0 %v945
          %v1172 = vpop.f32.mrb[0].mxu0
          %v1173 = vadd.f32 0.0, %v1172
          %v1174 = vpop.f32.mrb[0].mxu0
          %v1175 = vadd.f32 0.0, %v1174
          %v1176 = vpop.f32.mrb[0].mxu0
          %v1177 = vadd.f32 0.0, %v1176
          %v1178 = vpop.f32.mrb[0].mxu0
          %v1179 = vadd.f32 0.0, %v1178
          %1180 = vdwg.mxu0
          %1181 = vmatprep.subr.bf16.mxu0 %v1077
          %1182 = vmatpush1.bf16.msra.mxu0 %v1076
          %1183 = vmatprep.subr.bf16.mxu0 %v1081
          %1184 = vmatpush1.bf16.msra.mxu0 %v1080
          %1185 = vmatprep.subr.bf16.mxu0 %v1085
          %1186 = vmatpush1.bf16.msra.mxu0 %v1084
          %1187 = vmatprep.subr.bf16.mxu0 %v1089
          %1188 = vmatpush1.bf16.msra.mxu0 %v1088
          %1189 = vmatprep.subr.bf16.mxu0 %v1093
          %1190 = vmatpush1.bf16.msra.mxu0 %v1092
          %1191 = vmatprep.subr.bf16.mxu0 %v1097
          %1192 = vmatpush1.bf16.msra.mxu0 %v1096
          %1193 = vmatprep.subr.bf16.mxu0 %v1101
          %1194 = vmatpush1.bf16.msra.mxu0 %v1100
          %1195 = vmatprep.subr.bf16.mxu0 %v1105
          %1196 = vmatpush1.bf16.msra.mxu0 %v1104
          %1197 = vmatprep.subr.bf16.mxu0 0
          %1198 = vmatpush1.bf16.msra.mxu0 0
          %1199 = vmatprep.subr.bf16.mxu0 0
          %1200 = vmatpush1.bf16.msra.mxu0 0
          %1201 = vmatprep.subr.bf16.mxu0 0
          %1202 = vmatpush1.bf16.msra.mxu0 0
          %1203 = vmatprep.subr.bf16.mxu0 0
          %1204 = vmatpush1.bf16.msra.mxu0 0
          %1205 = vmatprep.subr.bf16.mxu0 0
          %1206 = vmatpush1.bf16.msra.mxu0 0
          %1207 = vmatprep.subr.bf16.mxu0 0
          %1208 = vmatpush1.bf16.msra.mxu0 0
          %1209 = vmatprep.subr.bf16.mxu0 0
          %1210 = vmatpush1.bf16.msra.mxu0 0
          %1211 = vmatprep.subr.bf16.mxu0 0
          %1212 = vmatpush1.bf16.msra.mxu0 0
          %1213 = vmatprep.mubr.bf16.mxu0 0
          %1214 = vmatmul.mubr.bf16.gmra.mrb[0].mxu0 %v945
          %v1215 = vpop.f32.mrb[0].mxu0
          %v1216 = vadd.f32 0.0, %v1215
          %v1217 = vpop.f32.mrb[0].mxu0
          %v1218 = vadd.f32 0.0, %v1217
          %v1219 = vpop.f32.mrb[0].mxu0
          %v1220 = vadd.f32 0.0, %v1219
          %v1221 = vpop.f32.mrb[0].mxu0
          %v1222 = vadd.f32 0.0, %v1221
          %1223 = vdwg.mxu0
          %v1224 = vadd.f32 %v937, %v1173
          %v1225 = vadd.f32 %v938, %v1175
          %v1226 = vadd.f32 %v939, %v1216
          %v1227 = vadd.f32 %v940, %v1218
          %v1228 = vadd.f32 %v941, %v1177
          %v1229 = vadd.f32 %v942, %v1179
          %v1230 = vadd.f32 %v943, %v1220
          %v1231 = vadd.f32 %v944, %v1222
          %v1232 = vxor.u32 %v1224, 2147483648
          %v1233 = vxor.u32 %v1228, 2147483648
          %v1234 = vmul.f32 %v1232, 1.442695
          %v1235 = vpow.pop %v1234
          %v1236 = vmul.f32 %v1233, 1.442695
          %v1237 = vpow.pop %v1236
          %v1238 = vadd.f32 %v1235, 1.0
          %v1239 = vadd.f32 %v1237, 1.0
          %v1240 = vrcp.pop %v1238
          %v1241 = vmul.f32 1.0, %v1240
          %v1242 = vrcp.pop %v1239
          %v1243 = vmul.f32 1.0, %v1242
          %v1244 = vxor.u32 %v1225, 2147483648
          %v1245 = vxor.u32 %v1229, 2147483648
          %v1246 = vmul.f32 %v1244, 1.442695
          %v1247 = vpow.pop %v1246
          %v1248 = vmul.f32 %v1245, 1.442695
          %v1249 = vpow.pop %v1248
          %v1250 = vadd.f32 %v1247, 1.0
          %v1251 = vadd.f32 %v1249, 1.0
          %v1252 = vrcp.pop %v1250
          %v1253 = vmul.f32 1.0, %v1252
          %v1254 = vrcp.pop %v1251
          %v1255 = vmul.f32 1.0, %v1254
          %v1256 = vtanh.pop %v1226
          %v1257 = vtanh.pop %v1230
          %v1258 = vxor.u32 %v1227, 2147483648
          %v1259 = vxor.u32 %v1231, 2147483648
          %v1260 = vmul.f32 %v1258, 1.442695
          %v1261 = vpow.pop %v1260
          %v1262 = vmul.f32 %v1259, 1.442695
          %v1263 = vpow.pop %v1262
          %v1264 = vadd.f32 %v1261, 1.0
          %v1265 = vadd.f32 %v1263, 1.0
          %v1266 = vrcp.pop %v1264
          %v1267 = vmul.f32 1.0, %v1266
          %v1268 = vrcp.pop %v1265
          %v1269 = vmul.f32 1.0, %v1268
          %v1270 = vmul.f32 %v1253, %v503
          %v1271 = vmul.f32 %v1255, %v504
          %v1272 = vmul.f32 %v1241, %v1256
          %v1273 = vmul.f32 %v1243, %v1257
          %v1274 = vadd.f32 %v1270, %v1272
          %v1275 = vadd.f32 %v1271, %v1273
          %v1276 = vtanh.pop %v1274
          %v1277 = vtanh.pop %v1275
          %v1278 = vmul.f32 %v1267, %v1276
          %v1279 = vmul.f32 %v1269, %v1277
          %v1280 = vpack.c.bf16 %v1279, %v1278
          %s1281 = sadd.s32 %s505, 0
          %s1282 = sshra.s32 %s1281, 4
          %s1283 = sand.u32 %s1281, 15
          %s1284 = smul.addr %s1282, 8
          %s1285 = scalar_lea.vmem [#allocation3], %s1284
          %1286 = vst [vmem:[%s1285] sm:$0xff] %v1280
          %s1287 = smul.u32 2, 4
          %s1288 = smul.addr %s1287, 8
          %s1289 = scalar_lea.vmem [#allocation2], %s1288
          %v1290 = vld [vmem:[%s1289] sm:$0xff]
          %v1291 = vld [vmem:[%s1289 + $0x8] sm:$0xff]
          %v1292 = vld [vmem:[%s1289 + $0x10] sm:$0xff]
          %v1293 = vld [vmem:[%s1289 + $0x18] sm:$0xff]
          %v1294 = vld [vmem:[%s1289 + $0x20] sm:$0xff]
          %v1295 = vld [vmem:[%s1289 + $0x28] sm:$0xff]
          %v1296 = vld [vmem:[%s1289 + $0x30] sm:$0xff]
          %v1297 = vld [vmem:[%s1289 + $0x38] sm:$0xff]
          %v1298 = vld [vmem:[#allocation9] sm:$0xff]
          %v1299 = vld [vmem:[#allocation9 + $0x8] sm:$0xff]
          %v1300 = vld [vmem:[#allocation9 + $0x10] sm:$0xff]
          %v1301 = vld [vmem:[#allocation9 + $0x18] sm:$0xff]
          %v1302 = vld [vmem:[#allocation9 + $0x20] sm:$0xff]
          %v1303 = vld [vmem:[#allocation9 + $0x28] sm:$0xff]
          %v1304 = vld [vmem:[#allocation9 + $0x30] sm:$0xff]
          %v1305 = vld [vmem:[#allocation9 + $0x38] sm:$0xff]
          %v1306 = vld [vmem:[#allocation9 + $0x40] sm:$0xff]
          %v1307 = vld [vmem:[#allocation9 + $0x48] sm:$0xff]
          %v1308 = vld [vmem:[#allocation9 + $0x50] sm:$0xff]
          %v1309 = vld [vmem:[#allocation9 + $0x58] sm:$0xff]
          %v1310 = vld [vmem:[#allocation9 + $0x60] sm:$0xff]
          %v1311 = vld [vmem:[#allocation9 + $0x68] sm:$0xff]
          %v1312 = vld [vmem:[#allocation9 + $0x70] sm:$0xff]
          %v1313 = vld [vmem:[#allocation9 + $0x78] sm:$0xff]
          %v1314 = vld [vmem:[#allocation9 + $0x80] sm:$0xff]
          %v1315 = vld [vmem:[#allocation9 + $0x88] sm:$0xff]
          %v1316 = vld [vmem:[#allocation9 + $0x90] sm:$0xff]
          %v1317 = vld [vmem:[#allocation9 + $0x98] sm:$0xff]
          %v1318 = vld [vmem:[#allocation9 + $0xa0] sm:$0xff]
          %v1319 = vld [vmem:[#allocation9 + $0xa8] sm:$0xff]
          %v1320 = vld [vmem:[#allocation9 + $0xb0] sm:$0xff]
          %v1321 = vld [vmem:[#allocation9 + $0xb8] sm:$0xff]
          %v1322 = vld [vmem:[#allocation9 + $0xc0] sm:$0xff]
          %v1323 = vld [vmem:[#allocation9 + $0xc8] sm:$0xff]
          %v1324 = vld [vmem:[#allocation9 + $0xd0] sm:$0xff]
          %v1325 = vld [vmem:[#allocation9 + $0xd8] sm:$0xff]
          %v1326 = vld [vmem:[#allocation9 + $0xe0] sm:$0xff]
          %v1327 = vld [vmem:[#allocation9 + $0xe8] sm:$0xff]
          %v1328 = vld [vmem:[#allocation9 + $0xf0] sm:$0xff]
          %v1329 = vld [vmem:[#allocation9 + $0xf8] sm:$0xff]
          %v1362 = vunpack.c.l.b16 %v1298
          %v1363 = vunpack.c.h.b16 %v1298
          %v1364 = vunpack.c.l.b16 %v1299
          %v1365 = vunpack.c.h.b16 %v1299
          %v1366 = vunpack.c.l.b16 %v1300
          %v1367 = vunpack.c.h.b16 %v1300
          %v1368 = vunpack.c.l.b16 %v1301
          %v1369 = vunpack.c.h.b16 %v1301
          %v1370 = vunpack.c.l.b16 %v1302
          %v1371 = vunpack.c.h.b16 %v1302
          %v1372 = vunpack.c.l.b16 %v1303
          %v1373 = vunpack.c.h.b16 %v1303
          %v1374 = vunpack.c.l.b16 %v1304
          %v1375 = vunpack.c.h.b16 %v1304
          %v1376 = vunpack.c.l.b16 %v1305
          %v1377 = vunpack.c.h.b16 %v1305
          %v1378 = vunpack.c.l.b16 %v1306
          %v1379 = vunpack.c.h.b16 %v1306
          %v1380 = vunpack.c.l.b16 %v1307
          %v1381 = vunpack.c.h.b16 %v1307
          %v1382 = vunpack.c.l.b16 %v1308
          %v1383 = vunpack.c.h.b16 %v1308
          %v1384 = vunpack.c.l.b16 %v1309
          %v1385 = vunpack.c.h.b16 %v1309
          %v1386 = vunpack.c.l.b16 %v1310
          %v1387 = vunpack.c.h.b16 %v1310
          %v1388 = vunpack.c.l.b16 %v1311
          %v1389 = vunpack.c.h.b16 %v1311
          %v1390 = vunpack.c.l.b16 %v1312
          %v1391 = vunpack.c.h.b16 %v1312
          %v1392 = vunpack.c.l.b16 %v1313
          %v1393 = vunpack.c.h.b16 %v1313
          %v1394 = vunpack.c.l.b16 %v1314
          %v1395 = vunpack.c.h.b16 %v1314
          %v1396 = vunpack.c.l.b16 %v1315
          %v1397 = vunpack.c.h.b16 %v1315
          %v1398 = vunpack.c.l.b16 %v1316
          %v1399 = vunpack.c.h.b16 %v1316
          %v1400 = vunpack.c.l.b16 %v1317
          %v1401 = vunpack.c.h.b16 %v1317
          %v1402 = vunpack.c.l.b16 %v1318
          %v1403 = vunpack.c.h.b16 %v1318
          %v1404 = vunpack.c.l.b16 %v1319
          %v1405 = vunpack.c.h.b16 %v1319
          %v1406 = vunpack.c.l.b16 %v1320
          %v1407 = vunpack.c.h.b16 %v1320
          %v1408 = vunpack.c.l.b16 %v1321
          %v1409 = vunpack.c.h.b16 %v1321
          %v1410 = vunpack.c.l.b16 %v1322
          %v1411 = vunpack.c.h.b16 %v1322
          %v1412 = vunpack.c.l.b16 %v1323
          %v1413 = vunpack.c.h.b16 %v1323
          %v1414 = vunpack.c.l.b16 %v1324
          %v1415 = vunpack.c.h.b16 %v1324
          %v1416 = vunpack.c.l.b16 %v1325
          %v1417 = vunpack.c.h.b16 %v1325
          %v1418 = vunpack.c.l.b16 %v1326
          %v1419 = vunpack.c.h.b16 %v1326
          %v1420 = vunpack.c.l.b16 %v1327
          %v1421 = vunpack.c.h.b16 %v1327
          %v1422 = vunpack.c.l.b16 %v1328
          %v1423 = vunpack.c.h.b16 %v1328
          %v1424 = vunpack.c.l.b16 %v1329
          %v1425 = vunpack.c.h.b16 %v1329
          %v1426 = vpack.c.b16 %v1366, %v1362
          %v1427 = vpack.c.b16 %v1367, %v1363
          %v1428 = vpack.c.b16 %v1368, %v1364
          %v1429 = vpack.c.b16 %v1369, %v1365
          %v1430 = vpack.c.b16 %v1374, %v1370
          %v1431 = vpack.c.b16 %v1375, %v1371
          %v1432 = vpack.c.b16 %v1376, %v1372
          %v1433 = vpack.c.b16 %v1377, %v1373
          %v1434 = vpack.c.b16 %v1382, %v1378
          %v1435 = vpack.c.b16 %v1383, %v1379
          %v1436 = vpack.c.b16 %v1384, %v1380
          %v1437 = vpack.c.b16 %v1385, %v1381
          %v1438 = vpack.c.b16 %v1390, %v1386
          %v1439 = vpack.c.b16 %v1391, %v1387
          %v1440 = vpack.c.b16 %v1392, %v1388
          %v1441 = vpack.c.b16 %v1393, %v1389
          %v1442 = vpack.c.b16 %v1398, %v1394
          %v1443 = vpack.c.b16 %v1399, %v1395
          %v1444 = vpack.c.b16 %v1400, %v1396
          %v1445 = vpack.c.b16 %v1401, %v1397
          %v1446 = vpack.c.b16 %v1406, %v1402
          %v1447 = vpack.c.b16 %v1407, %v1403
          %v1448 = vpack.c.b16 %v1408, %v1404
          %v1449 = vpack.c.b16 %v1409, %v1405
          %v1450 = vpack.c.b16 %v1414, %v1410
          %v1451 = vpack.c.b16 %v1415, %v1411
          %v1452 = vpack.c.b16 %v1416, %v1412
          %v1453 = vpack.c.b16 %v1417, %v1413
          %v1454 = vpack.c.b16 %v1422, %v1418
          %v1455 = vpack.c.b16 %v1423, %v1419
          %v1456 = vpack.c.b16 %v1424, %v1420
          %v1457 = vpack.c.b16 %v1425, %v1421
          %1490 = vmatprep.subr.bf16.mxu0 %v1427
          %1491 = vmatpush1.bf16.msra.mxu0 %v1426
          %1492 = vmatprep.subr.bf16.mxu0 %v1431
          %1493 = vmatpush1.bf16.msra.mxu0 %v1430
          %1494 = vmatprep.subr.bf16.mxu0 %v1435
          %1495 = vmatpush1.bf16.msra.mxu0 %v1434
          %1496 = vmatprep.subr.bf16.mxu0 %v1439
          %1497 = vmatpush1.bf16.msra.mxu0 %v1438
          %1498 = vmatprep.subr.bf16.mxu0 %v1443
          %1499 = vmatpush1.bf16.msra.mxu0 %v1442
          %1500 = vmatprep.subr.bf16.mxu0 %v1447
          %1501 = vmatpush1.bf16.msra.mxu0 %v1446
          %1502 = vmatprep.subr.bf16.mxu0 %v1451
          %1503 = vmatpush1.bf16.msra.mxu0 %v1450
          %1504 = vmatprep.subr.bf16.mxu0 %v1455
          %1505 = vmatpush1.bf16.msra.mxu0 %v1454
          %1506 = vmatprep.subr.bf16.mxu0 0
          %1507 = vmatpush1.bf16.msra.mxu0 0
          %1508 = vmatprep.subr.bf16.mxu0 0
          %1509 = vmatpush1.bf16.msra.mxu0 0
          %1510 = vmatprep.subr.bf16.mxu0 0
          %1511 = vmatpush1.bf16.msra.mxu0 0
          %1512 = vmatprep.subr.bf16.mxu0 0
          %1513 = vmatpush1.bf16.msra.mxu0 0
          %1514 = vmatprep.subr.bf16.mxu0 0
          %1515 = vmatpush1.bf16.msra.mxu0 0
          %1516 = vmatprep.subr.bf16.mxu0 0
          %1517 = vmatpush1.bf16.msra.mxu0 0
          %1518 = vmatprep.subr.bf16.mxu0 0
          %1519 = vmatpush1.bf16.msra.mxu0 0
          %1520 = vmatprep.subr.bf16.mxu0 0
          %1521 = vmatpush1.bf16.msra.mxu0 0
          %1522 = vmatprep.mubr.bf16.mxu0 0
          %1523 = vmatmul.mubr.bf16.gmra.mrb[0].mxu0 %v1280
          %v1524 = vpop.f32.mrb[0].mxu0
          %v1525 = vadd.f32 0.0, %v1524
          %v1526 = vpop.f32.mrb[0].mxu0
          %v1527 = vadd.f32 0.0, %v1526
          %v1528 = vpop.f32.mrb[0].mxu0
          %v1529 = vadd.f32 0.0, %v1528
          %v1530 = vpop.f32.mrb[0].mxu0
          %v1531 = vadd.f32 0.0, %v1530
          %1532 = vdwg.mxu0
          %1533 = vmatprep.subr.bf16.mxu0 %v1429
          %1534 = vmatpush1.bf16.msra.mxu0 %v1428
          %1535 = vmatprep.subr.bf16.mxu0 %v1433
          %1536 = vmatpush1.bf16.msra.mxu0 %v1432
          %1537 = vmatprep.subr.bf16.mxu0 %v1437
          %1538 = vmatpush1.bf16.msra.mxu0 %v1436
          %1539 = vmatprep.subr.bf16.mxu0 %v1441
          %1540 = vmatpush1.bf16.msra.mxu0 %v1440
          %1541 = vmatprep.subr.bf16.mxu0 %v1445
          %1542 = vmatpush1.bf16.msra.mxu0 %v1444
          %1543 = vmatprep.subr.bf16.mxu0 %v1449
          %1544 = vmatpush1.bf16.msra.mxu0 %v1448
          %1545 = vmatprep.subr.bf16.mxu0 %v1453
          %1546 = vmatpush1.bf16.msra.mxu0 %v1452
          %1547 = vmatprep.subr.bf16.mxu0 %v1457
          %1548 = vmatpush1.bf16.msra.mxu0 %v1456
          %1549 = vmatprep.subr.bf16.mxu0 0
          %1550 = vmatpush1.bf16.msra.mxu0 0
          %1551 = vmatprep.subr.bf16.mxu0 0
          %1552 = vmatpush1.bf16.msra.mxu0 0
          %1553 = vmatprep.subr.bf16.mxu0 0
          %1554 = vmatpush1.bf16.msra.mxu0 0
          %1555 = vmatprep.subr.bf16.mxu0 0
          %1556 = vmatpush1.bf16.msra.mxu0 0
          %1557 = vmatprep.subr.bf16.mxu0 0
          %1558 = vmatpush1.bf16.msra.mxu0 0
          %1559 = vmatprep.subr.bf16.mxu0 0
          %1560 = vmatpush1.bf16.msra.mxu0 0
          %1561 = vmatprep.subr.bf16.mxu0 0
          %1562 = vmatpush1.bf16.msra.mxu0 0
          %1563 = vmatprep.subr.bf16.mxu0 0
          %1564 = vmatpush1.bf16.msra.mxu0 0
          %1565 = vmatprep.mubr.bf16.mxu0 0
          %1566 = vmatmul.mubr.bf16.gmra.mrb[0].mxu0 %v1280
          %v1567 = vpop.f32.mrb[0].mxu0
          %v1568 = vadd.f32 0.0, %v1567
          %v1569 = vpop.f32.mrb[0].mxu0
          %v1570 = vadd.f32 0.0, %v1569
          %v1571 = vpop.f32.mrb[0].mxu0
          %v1572 = vadd.f32 0.0, %v1571
          %v1573 = vpop.f32.mrb[0].mxu0
          %v1574 = vadd.f32 0.0, %v1573
          %1575 = vdwg.mxu0
          %v1576 = vadd.f32 %v1290, %v1525
          %v1577 = vadd.f32 %v1291, %v1527
          %v1578 = vadd.f32 %v1292, %v1568
          %v1579 = vadd.f32 %v1293, %v1570
          %v1580 = vadd.f32 %v1294, %v1529
          %v1581 = vadd.f32 %v1295, %v1531
          %v1582 = vadd.f32 %v1296, %v1572
          %v1583 = vadd.f32 %v1297, %v1574
          %v1584 = vxor.u32 %v1576, 2147483648
          %v1585 = vxor.u32 %v1580, 2147483648
          %v1586 = vmul.f32 %v1584, 1.442695
          %v1587 = vpow.pop %v1586
          %v1588 = vmul.f32 %v1585, 1.442695
          %v1589 = vpow.pop %v1588
          %v1590 = vadd.f32 %v1587, 1.0
          %v1591 = vadd.f32 %v1589, 1.0
          %v1592 = vrcp.pop %v1590
          %v1593 = vmul.f32 1.0, %v1592
          %v1594 = vrcp.pop %v1591
          %v1595 = vmul.f32 1.0, %v1594
          %v1596 = vxor.u32 %v1577, 2147483648
          %v1597 = vxor.u32 %v1581, 2147483648
          %v1598 = vmul.f32 %v1596, 1.442695
          %v1599 = vpow.pop %v1598
          %v1600 = vmul.f32 %v1597, 1.442695
          %v1601 = vpow.pop %v1600
          %v1602 = vadd.f32 %v1599, 1.0
          %v1603 = vadd.f32 %v1601, 1.0
          %v1604 = vrcp.pop %v1602
          %v1605 = vmul.f32 1.0, %v1604
          %v1606 = vrcp.pop %v1603
          %v1607 = vmul.f32 1.0, %v1606
          %v1608 = vtanh.pop %v1578
          %v1609 = vtanh.pop %v1582
          %v1610 = vxor.u32 %v1579, 2147483648
          %v1611 = vxor.u32 %v1583, 2147483648
          %v1612 = vmul.f32 %v1610, 1.442695
          %v1613 = vpow.pop %v1612
          %v1614 = vmul.f32 %v1611, 1.442695
          %v1615 = vpow.pop %v1614
          %v1616 = vadd.f32 %v1613, 1.0
          %v1617 = vadd.f32 %v1615, 1.0
          %v1618 = vrcp.pop %v1616
          %v1619 = vmul.f32 1.0, %v1618
          %v1620 = vrcp.pop %v1617
          %v1621 = vmul.f32 1.0, %v1620
          %v1622 = vmul.f32 %v1605, %v1274
          %v1623 = vmul.f32 %v1607, %v1275
          %v1624 = vmul.f32 %v1593, %v1608
          %v1625 = vmul.f32 %v1595, %v1609
          %v1626 = vadd.f32 %v1622, %v1624
          %v1627 = vadd.f32 %v1623, %v1625
          %v1628 = vtanh.pop %v1626
          %v1629 = vtanh.pop %v1627
          %v1630 = vmul.f32 %v1619, %v1628
          %v1631 = vmul.f32 %v1621, %v1629
          %v1632 = vpack.c.bf16 %v1631, %v1630
          %s1633 = sadd.s32 %s505, 16
          %s1634 = sshra.s32 %s1633, 4
          %s1635 = sand.u32 %s1633, 15
          %s1636 = smul.addr %s1634, 8
          %s1637 = scalar_lea.vmem [#allocation3], %s1636
          %1638 = vst [vmem:[%s1637] sm:$0xff] %v1632
          %s1639 = smul.u32 4, 4
          %s1640 = smul.addr %s1639, 8
          %s1641 = scalar_lea.vmem [#allocation2], %s1640
          %v1642 = vld [vmem:[%s1641] sm:$0xff]
          %v1643 = vld [vmem:[%s1641 + $0x8] sm:$0xff]
          %v1644 = vld [vmem:[%s1641 + $0x10] sm:$0xff]
          %v1645 = vld [vmem:[%s1641 + $0x18] sm:$0xff]
          %v1646 = vld [vmem:[%s1641 + $0x20] sm:$0xff]
          %v1647 = vld [vmem:[%s1641 + $0x28] sm:$0xff]
          %v1648 = vld [vmem:[%s1641 + $0x30] sm:$0xff]
          %v1649 = vld [vmem:[%s1641 + $0x38] sm:$0xff]
          %v1650 = vld [vmem:[#allocation9] sm:$0xff]
          %v1651 = vld [vmem:[#allocation9 + $0x8] sm:$0xff]
          %v1652 = vld [vmem:[#allocation9 + $0x10] sm:$0xff]
          %v1653 = vld [vmem:[#allocation9 + $0x18] sm:$0xff]
          %v1654 = vld [vmem:[#allocation9 + $0x20] sm:$0xff]
          %v1655 = vld [vmem:[#allocation9 + $0x28] sm:$0xff]
          %v1656 = vld [vmem:[#allocation9 + $0x30] sm:$0xff]
          %v1657 = vld [vmem:[#allocation9 + $0x38] sm:$0xff]
          %v1658 = vld [vmem:[#allocation9 + $0x40] sm:$0xff]
          %v1659 = vld [vmem:[#allocation9 + $0x48] sm:$0xff]
          %v1660 = vld [vmem:[#allocation9 + $0x50] sm:$0xff]
          %v1661 = vld [vmem:[#allocation9 + $0x58] sm:$0xff]
          %v1662 = vld [vmem:[#allocation9 + $0x60] sm:$0xff]
          %v1663 = vld [vmem:[#allocation9 + $0x68] sm:$0xff]
          %v1664 = vld [vmem:[#allocation9 + $0x70] sm:$0xff]
          %v1665 = vld [vmem:[#allocation9 + $0x78] sm:$0xff]
          %v1666 = vld [vmem:[#allocation9 + $0x80] sm:$0xff]
          %v1667 = vld [vmem:[#allocation9 + $0x88] sm:$0xff]
          %v1668 = vld [vmem:[#allocation9 + $0x90] sm:$0xff]
          %v1669 = vld [vmem:[#allocation9 + $0x98] sm:$0xff]
          %v1670 = vld [vmem:[#allocation9 + $0xa0] sm:$0xff]
          %v1671 = vld [vmem:[#allocation9 + $0xa8] sm:$0xff]
          %v1672 = vld [vmem:[#allocation9 + $0xb0] sm:$0xff]
          %v1673 = vld [vmem:[#allocation9 + $0xb8] sm:$0xff]
          %v1674 = vld [vmem:[#allocation9 + $0xc0] sm:$0xff]
          %v1675 = vld [vmem:[#allocation9 + $0xc8] sm:$0xff]
          %v1676 = vld [vmem:[#allocation9 + $0xd0] sm:$0xff]
          %v1677 = vld [vmem:[#allocation9 + $0xd8] sm:$0xff]
          %v1678 = vld [vmem:[#allocation9 + $0xe0] sm:$0xff]
          %v1679 = vld [vmem:[#allocation9 + $0xe8] sm:$0xff]
          %v1680 = vld [vmem:[#allocation9 + $0xf0] sm:$0xff]
          %v1681 = vld [vmem:[#allocation9 + $0xf8] sm:$0xff]
          %v1714 = vunpack.c.l.b16 %v1650
          %v1715 = vunpack.c.h.b16 %v1650
          %v1716 = vunpack.c.l.b16 %v1651
          %v1717 = vunpack.c.h.b16 %v1651
          %v1718 = vunpack.c.l.b16 %v1652
          %v1719 = vunpack.c.h.b16 %v1652
          %v1720 = vunpack.c.l.b16 %v1653
          %v1721 = vunpack.c.h.b16 %v1653
          %v1722 = vunpack.c.l.b16 %v1654
          %v1723 = vunpack.c.h.b16 %v1654
          %v1724 = vunpack.c.l.b16 %v1655
          %v1725 = vunpack.c.h.b16 %v1655
          %v1726 = vunpack.c.l.b16 %v1656
          %v1727 = vunpack.c.h.b16 %v1656
          %v1728 = vunpack.c.l.b16 %v1657
          %v1729 = vunpack.c.h.b16 %v1657
          %v1730 = vunpack.c.l.b16 %v1658
          %v1731 = vunpack.c.h.b16 %v1658
          %v1732 = vunpack.c.l.b16 %v1659
          %v1733 = vunpack.c.h.b16 %v1659
          %v1734 = vunpack.c.l.b16 %v1660
          %v1735 = vunpack.c.h.b16 %v1660
          %v1736 = vunpack.c.l.b16 %v1661
          %v1737 = vunpack.c.h.b16 %v1661
          %v1738 = vunpack.c.l.b16 %v1662
          %v1739 = vunpack.c.h.b16 %v1662
          %v1740 = vunpack.c.l.b16 %v1663
          %v1741 = vunpack.c.h.b16 %v1663
          %v1742 = vunpack.c.l.b16 %v1664
          %v1743 = vunpack.c.h.b16 %v1664
          %v1744 = vunpack.c.l.b16 %v1665
          %v1745 = vunpack.c.h.b16 %v1665
          %v1746 = vunpack.c.l.b16 %v1666
          %v1747 = vunpack.c.h.b16 %v1666
          %v1748 = vunpack.c.l.b16 %v1667
          %v1749 = vunpack.c.h.b16 %v1667
          %v1750 = vunpack.c.l.b16 %v1668
          %v1751 = vunpack.c.h.b16 %v1668
          %v1752 = vunpack.c.l.b16 %v1669
          %v1753 = vunpack.c.h.b16 %v1669
          %v1754 = vunpack.c.l.b16 %v1670
          %v1755 = vunpack.c.h.b16 %v1670
          %v1756 = vunpack.c.l.b16 %v1671
          %v1757 = vunpack.c.h.b16 %v1671
          %v1758 = vunpack.c.l.b16 %v1672
          %v1759 = vunpack.c.h.b16 %v1672
          %v1760 = vunpack.c.l.b16 %v1673
          %v1761 = vunpack.c.h.b16 %v1673
          %v1762 = vunpack.c.l.b16 %v1674
          %v1763 = vunpack.c.h.b16 %v1674
          %v1764 = vunpack.c.l.b16 %v1675
          %v1765 = vunpack.c.h.b16 %v1675
          %v1766 = vunpack.c.l.b16 %v1676
          %v1767 = vunpack.c.h.b16 %v1676
          %v1768 = vunpack.c.l.b16 %v1677
          %v1769 = vunpack.c.h.b16 %v1677
          %v1770 = vunpack.c.l.b16 %v1678
          %v1771 = vunpack.c.h.b16 %v1678
          %v1772 = vunpack.c.l.b16 %v1679
          %v1773 = vunpack.c.h.b16 %v1679
          %v1774 = vunpack.c.l.b16 %v1680
          %v1775 = vunpack.c.h.b16 %v1680
          %v1776 = vunpack.c.l.b16 %v1681
          %v1777 = vunpack.c.h.b16 %v1681
          %v1778 = vpack.c.b16 %v1718, %v1714
          %v1779 = vpack.c.b16 %v1719, %v1715
          %v1780 = vpack.c.b16 %v1720, %v1716
          %v1781 = vpack.c.b16 %v1721, %v1717
          %v1782 = vpack.c.b16 %v1726, %v1722
          %v1783 = vpack.c.b16 %v1727, %v1723
          %v1784 = vpack.c.b16 %v1728, %v1724
          %v1785 = vpack.c.b16 %v1729, %v1725
          %v1786 = vpack.c.b16 %v1734, %v1730
          %v1787 = vpack.c.b16 %v1735, %v1731
          %v1788 = vpack.c.b16 %v1736, %v1732
          %v1789 = vpack.c.b16 %v1737, %v1733
          %v1790 = vpack.c.b16 %v1742, %v1738
          %v1791 = vpack.c.b16 %v1743, %v1739
          %v1792 = vpack.c.b16 %v1744, %v1740
          %v1793 = vpack.c.b16 %v1745, %v1741
          %v1794 = vpack.c.b16 %v1750, %v1746
          %v1795 = vpack.c.b16 %v1751, %v1747
          %v1796 = vpack.c.b16 %v1752, %v1748
          %v1797 = vpack.c.b16 %v1753, %v1749
          %v1798 = vpack.c.b16 %v1758, %v1754
          %v1799 = vpack.c.b16 %v1759, %v1755
          %v1800 = vpack.c.b16 %v1760, %v1756
          %v1801 = vpack.c.b16 %v1761, %v1757
          %v1802 = vpack.c.b16 %v1766, %v1762
          %v1803 = vpack.c.b16 %v1767, %v1763
          %v1804 = vpack.c.b16 %v1768, %v1764
          %v1805 = vpack.c.b16 %v1769, %v1765
          %v1806 = vpack.c.b16 %v1774, %v1770
          %v1807 = vpack.c.b16 %v1775, %v1771
          %v1808 = vpack.c.b16 %v1776, %v1772
          %v1809 = vpack.c.b16 %v1777, %v1773
          %1842 = vmatprep.subr.bf16.mxu0 %v1779
          %1843 = vmatpush1.bf16.msra.mxu0 %v1778
          %1844 = vmatprep.subr.bf16.mxu0 %v1783
          %1845 = vmatpush1.bf16.msra.mxu0 %v1782
          %1846 = vmatprep.subr.bf16.mxu0 %v1787
          %1847 = vmatpush1.bf16.msra.mxu0 %v1786
          %1848 = vmatprep.subr.bf16.mxu0 %v1791
          %1849 = vmatpush1.bf16.msra.mxu0 %v1790
          %1850 = vmatprep.subr.bf16.mxu0 %v1795
          %1851 = vmatpush1.bf16.msra.mxu0 %v1794
          %1852 = vmatprep.subr.bf16.mxu0 %v1799
          %1853 = vmatpush1.bf16.msra.mxu0 %v1798
          %1854 = vmatprep.subr.bf16.mxu0 %v1803
          %1855 = vmatpush1.bf16.msra.mxu0 %v1802
          %1856 = vmatprep.subr.bf16.mxu0 %v1807
          %1857 = vmatpush1.bf16.msra.mxu0 %v1806
          %1858 = vmatprep.subr.bf16.mxu0 0
          %1859 = vmatpush1.bf16.msra.mxu0 0
          %1860 = vmatprep.subr.bf16.mxu0 0
          %1861 = vmatpush1.bf16.msra.mxu0 0
          %1862 = vmatprep.subr.bf16.mxu0 0
          %1863 = vmatpush1.bf16.msra.mxu0 0
          %1864 = vmatprep.subr.bf16.mxu0 0
          %1865 = vmatpush1.bf16.msra.mxu0 0
          %1866 = vmatprep.subr.bf16.mxu0 0
          %1867 = vmatpush1.bf16.msra.mxu0 0
          %1868 = vmatprep.subr.bf16.mxu0 0
          %1869 = vmatpush1.bf16.msra.mxu0 0
          %1870 = vmatprep.subr.bf16.mxu0 0
          %1871 = vmatpush1.bf16.msra.mxu0 0
          %1872 = vmatprep.subr.bf16.mxu0 0
          %1873 = vmatpush1.bf16.msra.mxu0 0
          %1874 = vmatprep.mubr.bf16.mxu0 0
          %1875 = vmatmul.mubr.bf16.gmra.mrb[0].mxu0 %v1632
          %v1876 = vpop.f32.mrb[0].mxu0
          %v1877 = vadd.f32 0.0, %v1876
          %v1878 = vpop.f32.mrb[0].mxu0
          %v1879 = vadd.f32 0.0, %v1878
          %v1880 = vpop.f32.mrb[0].mxu0
          %v1881 = vadd.f32 0.0, %v1880
          %v1882 = vpop.f32.mrb[0].mxu0
          %v1883 = vadd.f32 0.0, %v1882
          %1884 = vdwg.mxu0
          %1885 = vmatprep.subr.bf16.mxu0 %v1781
          %1886 = vmatpush1.bf16.msra.mxu0 %v1780
          %1887 = vmatprep.subr.bf16.mxu0 %v1785
          %1888 = vmatpush1.bf16.msra.mxu0 %v1784
          %1889 = vmatprep.subr.bf16.mxu0 %v1789
          %1890 = vmatpush1.bf16.msra.mxu0 %v1788
          %1891 = vmatprep.subr.bf16.mxu0 %v1793
          %1892 = vmatpush1.bf16.msra.mxu0 %v1792
          %1893 = vmatprep.subr.bf16.mxu0 %v1797
          %1894 = vmatpush1.bf16.msra.mxu0 %v1796
          %1895 = vmatprep.subr.bf16.mxu0 %v1801
          %1896 = vmatpush1.bf16.msra.mxu0 %v1800
          %1897 = vmatprep.subr.bf16.mxu0 %v1805
          %1898 = vmatpush1.bf16.msra.mxu0 %v1804
          %1899 = vmatprep.subr.bf16.mxu0 %v1809
          %1900 = vmatpush1.bf16.msra.mxu0 %v1808
          %1901 = vmatprep.subr.bf16.mxu0 0
          %1902 = vmatpush1.bf16.msra.mxu0 0
          %1903 = vmatprep.subr.bf16.mxu0 0
          %1904 = vmatpush1.bf16.msra.mxu0 0
          %1905 = vmatprep.subr.bf16.mxu0 0
          %1906 = vmatpush1.bf16.msra.mxu0 0
          %1907 = vmatprep.subr.bf16.mxu0 0
          %1908 = vmatpush1.bf16.msra.mxu0 0
          %1909 = vmatprep.subr.bf16.mxu0 0
          %1910 = vmatpush1.bf16.msra.mxu0 0
          %1911 = vmatprep.subr.bf16.mxu0 0
          %1912 = vmatpush1.bf16.msra.mxu0 0
          %1913 = vmatprep.subr.bf16.mxu0 0
          %1914 = vmatpush1.bf16.msra.mxu0 0
          %1915 = vmatprep.subr.bf16.mxu0 0
          %1916 = vmatpush1.bf16.msra.mxu0 0
          %1917 = vmatprep.mubr.bf16.mxu0 0
          %1918 = vmatmul.mubr.bf16.gmra.mrb[0].mxu0 %v1632
          %v1919 = vpop.f32.mrb[0].mxu0
          %v1920 = vadd.f32 0.0, %v1919
          %v1921 = vpop.f32.mrb[0].mxu0
          %v1922 = vadd.f32 0.0, %v1921
          %v1923 = vpop.f32.mrb[0].mxu0
          %v1924 = vadd.f32 0.0, %v1923
          %v1925 = vpop.f32.mrb[0].mxu0
          %v1926 = vadd.f32 0.0, %v1925
          %1927 = vdwg.mxu0
          %v1928 = vadd.f32 %v1642, %v1877
          %v1929 = vadd.f32 %v1643, %v1879
          %v1930 = vadd.f32 %v1644, %v1920
          %v1931 = vadd.f32 %v1645, %v1922
          %v1932 = vadd.f32 %v1646, %v1881
          %v1933 = vadd.f32 %v1647, %v1883
          %v1934 = vadd.f32 %v1648, %v1924
          %v1935 = vadd.f32 %v1649, %v1926
          %v1936 = vxor.u32 %v1928, 2147483648
          %v1937 = vxor.u32 %v1932, 2147483648
          %v1938 = vmul.f32 %v1936, 1.442695
          %v1939 = vpow.pop %v1938
          %v1940 = vmul.f32 %v1937, 1.442695
          %v1941 = vpow.pop %v1940
          %v1942 = vadd.f32 %v1939, 1.0
          %v1943 = vadd.f32 %v1941, 1.0
          %v1944 = vrcp.pop %v1942
          %v1945 = vmul.f32 1.0, %v1944
          %v1946 = vrcp.pop %v1943
          %v1947 = vmul.f32 1.0, %v1946
          %v1948 = vxor.u32 %v1929, 2147483648
          %v1949 = vxor.u32 %v1933, 2147483648
          %v1950 = vmul.f32 %v1948, 1.442695
          %v1951 = vpow.pop %v1950
          %v1952 = vmul.f32 %v1949, 1.442695
          %v1953 = vpow.pop %v1952
          %v1954 = vadd.f32 %v1951, 1.0
          %v1955 = vadd.f32 %v1953, 1.0
          %v1956 = vrcp.pop %v1954
          %v1957 = vmul.f32 1.0, %v1956
          %v1958 = vrcp.pop %v1955
          %v1959 = vmul.f32 1.0, %v1958
          %v1960 = vtanh.pop %v1930
          %v1961 = vtanh.pop %v1934
          %v1962 = vxor.u32 %v1931, 2147483648
          %v1963 = vxor.u32 %v1935, 2147483648
          %v1964 = vmul.f32 %v1962, 1.442695
          %v1965 = vpow.pop %v1964
          %v1966 = vmul.f32 %v1963, 1.442695
          %v1967 = vpow.pop %v1966
          %v1968 = vadd.f32 %v1965, 1.0
          %v1969 = vadd.f32 %v1967, 1.0
          %v1970 = vrcp.pop %v1968
          %v1971 = vmul.f32 1.0, %v1970
          %v1972 = vrcp.pop %v1969
          %v1973 = vmul.f32 1.0, %v1972
          %v1974 = vmul.f32 %v1957, %v1626
          %v1975 = vmul.f32 %v1959, %v1627
          %v1976 = vmul.f32 %v1945, %v1960
          %v1977 = vmul.f32 %v1947, %v1961
          %v1978 = vadd.f32 %v1974, %v1976
          %v1979 = vadd.f32 %v1975, %v1977
          %v1980 = vtanh.pop %v1978
          %v1981 = vtanh.pop %v1979
          %v1982 = vmul.f32 %v1971, %v1980
          %v1983 = vmul.f32 %v1973, %v1981
          %v1984 = vpack.c.bf16 %v1983, %v1982
          %s1985 = sadd.s32 %s505, 32
          %s1986 = sshra.s32 %s1985, 4
          %s1987 = sand.u32 %s1985, 15
          %s1988 = smul.addr %s1986, 8
          %s1989 = scalar_lea.vmem [#allocation3], %s1988
          %1990 = vst [vmem:[%s1989] sm:$0xff] %v1984
          %s1991 = smul.u32 6, 4
          %s1992 = smul.addr %s1991, 8
          %s1993 = scalar_lea.vmem [#allocation2], %s1992
          %v1994 = vld [vmem:[%s1993] sm:$0xff]
          %v1995 = vld [vmem:[%s1993 + $0x8] sm:$0xff]
          %v1996 = vld [vmem:[%s1993 + $0x10] sm:$0xff]
          %v1997 = vld [vmem:[%s1993 + $0x18] sm:$0xff]
          %v1998 = vld [vmem:[%s1993 + $0x20] sm:$0xff]
          %v1999 = vld [vmem:[%s1993 + $0x28] sm:$0xff]
          %v2000 = vld [vmem:[%s1993 + $0x30] sm:$0xff]
          %v2001 = vld [vmem:[%s1993 + $0x38] sm:$0xff]
          %v2002 = vld [vmem:[#allocation9] sm:$0xff]
          %v2003 = vld [vmem:[#allocation9 + $0x8] sm:$0xff]
          %v2004 = vld [vmem:[#allocation9 + $0x10] sm:$0xff]
          %v2005 = vld [vmem:[#allocation9 + $0x18] sm:$0xff]
          %v2006 = vld [vmem:[#allocation9 + $0x20] sm:$0xff]
          %v2007 = vld [vmem:[#allocation9 + $0x28] sm:$0xff]
          %v2008 = vld [vmem:[#allocation9 + $0x30] sm:$0xff]
          %v2009 = vld [vmem:[#allocation9 + $0x38] sm:$0xff]
          %v2010 = vld [vmem:[#allocation9 + $0x40] sm:$0xff]
          %v2011 = vld [vmem:[#allocation9 + $0x48] sm:$0xff]
          %v2012 = vld [vmem:[#allocation9 + $0x50] sm:$0xff]
          %v2013 = vld [vmem:[#allocation9 + $0x58] sm:$0xff]
          %v2014 = vld [vmem:[#allocation9 + $0x60] sm:$0xff]
          %v2015 = vld [vmem:[#allocation9 + $0x68] sm:$0xff]
          %v2016 = vld [vmem:[#allocation9 + $0x70] sm:$0xff]
          %v2017 = vld [vmem:[#allocation9 + $0x78] sm:$0xff]
          %v2018 = vld [vmem:[#allocation9 + $0x80] sm:$0xff]
          %v2019 = vld [vmem:[#allocation9 + $0x88] sm:$0xff]
          %v2020 = vld [vmem:[#allocation9 + $0x90] sm:$0xff]
          %v2021 = vld [vmem:[#allocation9 + $0x98] sm:$0xff]
          %v2022 = vld [vmem:[#allocation9 + $0xa0] sm:$0xff]
          %v2023 = vld [vmem:[#allocation9 + $0xa8] sm:$0xff]
          %v2024 = vld [vmem:[#allocation9 + $0xb0] sm:$0xff]
          %v2025 = vld [vmem:[#allocation9 + $0xb8] sm:$0xff]
          %v2026 = vld [vmem:[#allocation9 + $0xc0] sm:$0xff]
          %v2027 = vld [vmem:[#allocation9 + $0xc8] sm:$0xff]
          %v2028 = vld [vmem:[#allocation9 + $0xd0] sm:$0xff]
          %v2029 = vld [vmem:[#allocation9 + $0xd8] sm:$0xff]
          %v2030 = vld [vmem:[#allocation9 + $0xe0] sm:$0xff]
          %v2031 = vld [vmem:[#allocation9 + $0xe8] sm:$0xff]
          %v2032 = vld [vmem:[#allocation9 + $0xf0] sm:$0xff]
          %v2033 = vld [vmem:[#allocation9 + $0xf8] sm:$0xff]
          %v2066 = vunpack.c.l.b16 %v2002
          %v2067 = vunpack.c.h.b16 %v2002
          %v2068 = vunpack.c.l.b16 %v2003
          %v2069 = vunpack.c.h.b16 %v2003
          %v2070 = vunpack.c.l.b16 %v2004
          %v2071 = vunpack.c.h.b16 %v2004
          %v2072 = vunpack.c.l.b16 %v2005
          %v2073 = vunpack.c.h.b16 %v2005
          %v2074 = vunpack.c.l.b16 %v2006
          %v2075 = vunpack.c.h.b16 %v2006
          %v2076 = vunpack.c.l.b16 %v2007
          %v2077 = vunpack.c.h.b16 %v2007
          %v2078 = vunpack.c.l.b16 %v2008
          %v2079 = vunpack.c.h.b16 %v2008
          %v2080 = vunpack.c.l.b16 %v2009
          %v2081 = vunpack.c.h.b16 %v2009
          %v2082 = vunpack.c.l.b16 %v2010
          %v2083 = vunpack.c.h.b16 %v2010
          %v2084 = vunpack.c.l.b16 %v2011
          %v2085 = vunpack.c.h.b16 %v2011
          %v2086 = vunpack.c.l.b16 %v2012
          %v2087 = vunpack.c.h.b16 %v2012
          %v2088 = vunpack.c.l.b16 %v2013
          %v2089 = vunpack.c.h.b16 %v2013
          %v2090 = vunpack.c.l.b16 %v2014
          %v2091 = vunpack.c.h.b16 %v2014
          %v2092 = vunpack.c.l.b16 %v2015
          %v2093 = vunpack.c.h.b16 %v2015
          %v2094 = vunpack.c.l.b16 %v2016
          %v2095 = vunpack.c.h.b16 %v2016
          %v2096 = vunpack.c.l.b16 %v2017
          %v2097 = vunpack.c.h.b16 %v2017
          %v2098 = vunpack.c.l.b16 %v2018
          %v2099 = vunpack.c.h.b16 %v2018
          %v2100 = vunpack.c.l.b16 %v2019
          %v2101 = vunpack.c.h.b16 %v2019
          %v2102 = vunpack.c.l.b16 %v2020
          %v2103 = vunpack.c.h.b16 %v2020
          %v2104 = vunpack.c.l.b16 %v2021
          %v2105 = vunpack.c.h.b16 %v2021
          %v2106 = vunpack.c.l.b16 %v2022
          %v2107 = vunpack.c.h.b16 %v2022
          %v2108 = vunpack.c.l.b16 %v2023
          %v2109 = vunpack.c.h.b16 %v2023
          %v2110 = vunpack.c.l.b16 %v2024
          %v2111 = vunpack.c.h.b16 %v2024
          %v2112 = vunpack.c.l.b16 %v2025
          %v2113 = vunpack.c.h.b16 %v2025
          %v2114 = vunpack.c.l.b16 %v2026
          %v2115 = vunpack.c.h.b16 %v2026
          %v2116 = vunpack.c.l.b16 %v2027
          %v2117 = vunpack.c.h.b16 %v2027
          %v2118 = vunpack.c.l.b16 %v2028
          %v2119 = vunpack.c.h.b16 %v2028
          %v2120 = vunpack.c.l.b16 %v2029
          %v2121 = vunpack.c.h.b16 %v2029
          %v2122 = vunpack.c.l.b16 %v2030
          %v2123 = vunpack.c.h.b16 %v2030
          %v2124 = vunpack.c.l.b16 %v2031
          %v2125 = vunpack.c.h.b16 %v2031
          %v2126 = vunpack.c.l.b16 %v2032
          %v2127 = vunpack.c.h.b16 %v2032
          %v2128 = vunpack.c.l.b16 %v2033
          %v2129 = vunpack.c.h.b16 %v2033
          %v2130 = vpack.c.b16 %v2070, %v2066
          %v2131 = vpack.c.b16 %v2071, %v2067
          %v2132 = vpack.c.b16 %v2072, %v2068
          %v2133 = vpack.c.b16 %v2073, %v2069
          %v2134 = vpack.c.b16 %v2078, %v2074
          %v2135 = vpack.c.b16 %v2079, %v2075
          %v2136 = vpack.c.b16 %v2080, %v2076
          %v2137 = vpack.c.b16 %v2081, %v2077
          %v2138 = vpack.c.b16 %v2086, %v2082
          %v2139 = vpack.c.b16 %v2087, %v2083
          %v2140 = vpack.c.b16 %v2088, %v2084
          %v2141 = vpack.c.b16 %v2089, %v2085
          %v2142 = vpack.c.b16 %v2094, %v2090
          %v2143 = vpack.c.b16 %v2095, %v2091
          %v2144 = vpack.c.b16 %v2096, %v2092
          %v2145 = vpack.c.b16 %v2097, %v2093
          %v2146 = vpack.c.b16 %v2102, %v2098
          %v2147 = vpack.c.b16 %v2103, %v2099
          %v2148 = vpack.c.b16 %v2104, %v2100
          %v2149 = vpack.c.b16 %v2105, %v2101
          %v2150 = vpack.c.b16 %v2110, %v2106
          %v2151 = vpack.c.b16 %v2111, %v2107
          %v2152 = vpack.c.b16 %v2112, %v2108
          %v2153 = vpack.c.b16 %v2113, %v2109
          %v2154 = vpack.c.b16 %v2118, %v2114
          %v2155 = vpack.c.b16 %v2119, %v2115
          %v2156 = vpack.c.b16 %v2120, %v2116
          %v2157 = vpack.c.b16 %v2121, %v2117
          %v2158 = vpack.c.b16 %v2126, %v2122
          %v2159 = vpack.c.b16 %v2127, %v2123
          %v2160 = vpack.c.b16 %v2128, %v2124
          %v2161 = vpack.c.b16 %v2129, %v2125
          %2194 = vmatprep.subr.bf16.mxu0 %v2131
          %2195 = vmatpush1.bf16.msra.mxu0 %v2130
          %2196 = vmatprep.subr.bf16.mxu0 %v2135
          %2197 = vmatpush1.bf16.msra.mxu0 %v2134
          %2198 = vmatprep.subr.bf16.mxu0 %v2139
          %2199 = vmatpush1.bf16.msra.mxu0 %v2138
          %2200 = vmatprep.subr.bf16.mxu0 %v2143
          %2201 = vmatpush1.bf16.msra.mxu0 %v2142
          %2202 = vmatprep.subr.bf16.mxu0 %v2147
          %2203 = vmatpush1.bf16.msra.mxu0 %v2146
          %2204 = vmatprep.subr.bf16.mxu0 %v2151
          %2205 = vmatpush1.bf16.msra.mxu0 %v2150
          %2206 = vmatprep.subr.bf16.mxu0 %v2155
          %2207 = vmatpush1.bf16.msra.mxu0 %v2154
          %2208 = vmatprep.subr.bf16.mxu0 %v2159
          %2209 = vmatpush1.bf16.msra.mxu0 %v2158
          %2210 = vmatprep.subr.bf16.mxu0 0
          %2211 = vmatpush1.bf16.msra.mxu0 0
          %2212 = vmatprep.subr.bf16.mxu0 0
          %2213 = vmatpush1.bf16.msra.mxu0 0
          %2214 = vmatprep.subr.bf16.mxu0 0
          %2215 = vmatpush1.bf16.msra.mxu0 0
          %2216 = vmatprep.subr.bf16.mxu0 0
          %2217 = vmatpush1.bf16.msra.mxu0 0
          %2218 = vmatprep.subr.bf16.mxu0 0
          %2219 = vmatpush1.bf16.msra.mxu0 0
          %2220 = vmatprep.subr.bf16.mxu0 0
          %2221 = vmatpush1.bf16.msra.mxu0 0
          %2222 = vmatprep.subr.bf16.mxu0 0
          %2223 = vmatpush1.bf16.msra.mxu0 0
          %2224 = vmatprep.subr.bf16.mxu0 0
          %2225 = vmatpush1.bf16.msra.mxu0 0
          %2226 = vmatprep.mubr.bf16.mxu0 0
          %2227 = vmatmul.mubr.bf16.gmra.mrb[0].mxu0 %v1984
          %v2228 = vpop.f32.mrb[0].mxu0
          %v2229 = vadd.f32 0.0, %v2228
          %v2230 = vpop.f32.mrb[0].mxu0
          %v2231 = vadd.f32 0.0, %v2230
          %v2232 = vpop.f32.mrb[0].mxu0
          %v2233 = vadd.f32 0.0, %v2232
          %v2234 = vpop.f32.mrb[0].mxu0
          %v2235 = vadd.f32 0.0, %v2234
          %2236 = vdwg.mxu0
          %2237 = vmatprep.subr.bf16.mxu0 %v2133
          %2238 = vmatpush1.bf16.msra.mxu0 %v2132
          %2239 = vmatprep.subr.bf16.mxu0 %v2137
          %2240 = vmatpush1.bf16.msra.mxu0 %v2136
          %2241 = vmatprep.subr.bf16.mxu0 %v2141
          %2242 = vmatpush1.bf16.msra.mxu0 %v2140
          %2243 = vmatprep.subr.bf16.mxu0 %v2145
          %2244 = vmatpush1.bf16.msra.mxu0 %v2144
          %2245 = vmatprep.subr.bf16.mxu0 %v2149
          %2246 = vmatpush1.bf16.msra.mxu0 %v2148
          %2247 = vmatprep.subr.bf16.mxu0 %v2153
          %2248 = vmatpush1.bf16.msra.mxu0 %v2152
          %2249 = vmatprep.subr.bf16.mxu0 %v2157
          %2250 = vmatpush1.bf16.msra.mxu0 %v2156
          %2251 = vmatprep.subr.bf16.mxu0 %v2161
          %2252 = vmatpush1.bf16.msra.mxu0 %v2160
          %2253 = vmatprep.subr.bf16.mxu0 0
          %2254 = vmatpush1.bf16.msra.mxu0 0
          %2255 = vmatprep.subr.bf16.mxu0 0
          %2256 = vmatpush1.bf16.msra.mxu0 0
          %2257 = vmatprep.subr.bf16.mxu0 0
          %2258 = vmatpush1.bf16.msra.mxu0 0
          %2259 = vmatprep.subr.bf16.mxu0 0
          %2260 = vmatpush1.bf16.msra.mxu0 0
          %2261 = vmatprep.subr.bf16.mxu0 0
          %2262 = vmatpush1.bf16.msra.mxu0 0
          %2263 = vmatprep.subr.bf16.mxu0 0
          %2264 = vmatpush1.bf16.msra.mxu0 0
          %2265 = vmatprep.subr.bf16.mxu0 0
          %2266 = vmatpush1.bf16.msra.mxu0 0
          %2267 = vmatprep.subr.bf16.mxu0 0
          %2268 = vmatpush1.bf16.msra.mxu0 0
          %2269 = vmatprep.mubr.bf16.mxu0 0
          %2270 = vmatmul.mubr.bf16.gmra.mrb[0].mxu0 %v1984
          %v2271 = vpop.f32.mrb[0].mxu0
          %v2272 = vadd.f32 0.0, %v2271
          %v2273 = vpop.f32.mrb[0].mxu0
          %v2274 = vadd.f32 0.0, %v2273
          %v2275 = vpop.f32.mrb[0].mxu0
          %v2276 = vadd.f32 0.0, %v2275
          %v2277 = vpop.f32.mrb[0].mxu0
          %v2278 = vadd.f32 0.0, %v2277
          %2279 = vdwg.mxu0
          %v2280 = vadd.f32 %v1994, %v2229
          %v2281 = vadd.f32 %v1995, %v2231
          %v2282 = vadd.f32 %v1996, %v2272
          %v2283 = vadd.f32 %v1997, %v2274
          %v2284 = vadd.f32 %v1998, %v2233
          %v2285 = vadd.f32 %v1999, %v2235
          %v2286 = vadd.f32 %v2000, %v2276
          %v2287 = vadd.f32 %v2001, %v2278
          %v2288 = vxor.u32 %v2280, 2147483648
          %v2289 = vxor.u32 %v2284, 2147483648
          %v2290 = vmul.f32 %v2288, 1.442695
          %v2291 = vpow.pop %v2290
          %v2292 = vmul.f32 %v2289, 1.442695
          %v2293 = vpow.pop %v2292
          %v2294 = vadd.f32 %v2291, 1.0
          %v2295 = vadd.f32 %v2293, 1.0
          %v2296 = vrcp.pop %v2294
          %v2297 = vmul.f32 1.0, %v2296
          %v2298 = vrcp.pop %v2295
          %v2299 = vmul.f32 1.0, %v2298
          %v2300 = vxor.u32 %v2281, 2147483648
          %v2301 = vxor.u32 %v2285, 2147483648
          %v2302 = vmul.f32 %v2300, 1.442695
          %v2303 = vpow.pop %v2302
          %v2304 = vmul.f32 %v2301, 1.442695
          %v2305 = vpow.pop %v2304
          %v2306 = vadd.f32 %v2303, 1.0
          %v2307 = vadd.f32 %v2305, 1.0
          %v2308 = vrcp.pop %v2306
          %v2309 = vmul.f32 1.0, %v2308
          %v2310 = vrcp.pop %v2307
          %v2311 = vmul.f32 1.0, %v2310
          %v2312 = vtanh.pop %v2282
          %v2313 = vtanh.pop %v2286
          %v2314 = vxor.u32 %v2283, 2147483648
          %v2315 = vxor.u32 %v2287, 2147483648
          %v2316 = vmul.f32 %v2314, 1.442695
          %v2317 = vpow.pop %v2316
          %v2318 = vmul.f32 %v2315, 1.442695
          %v2319 = vpow.pop %v2318
          %v2320 = vadd.f32 %v2317, 1.0
          %v2321 = vadd.f32 %v2319, 1.0
          %v2322 = vrcp.pop %v2320
          %v2323 = vmul.f32 1.0, %v2322
          %v2324 = vrcp.pop %v2321
          %v2325 = vmul.f32 1.0, %v2324
          %v2326 = vmul.f32 %v2309, %v1978
          %v2327 = vmul.f32 %v2311, %v1979
          %v2328 = vmul.f32 %v2297, %v2312
          %v2329 = vmul.f32 %v2299, %v2313
          %v2330 = vadd.f32 %v2326, %v2328
          %v2331 = vadd.f32 %v2327, %v2329
          %v2332 = vtanh.pop %v2330
          %v2333 = vtanh.pop %v2331
          %v2334 = vmul.f32 %v2323, %v2332
          %v2335 = vmul.f32 %v2325, %v2333
          %v2336 = vpack.c.bf16 %v2335, %v2334
          %s2337 = sadd.s32 %s505, 48
          %s2338 = sshra.s32 %s2337, 4
          %s2339 = sand.u32 %s2337, 15
          %s2340 = smul.addr %s2338, 8
          %s2341 = scalar_lea.vmem [#allocation3], %s2340
          %2342 = vst [vmem:[%s2341] sm:$0xff] %v2336
        $region97: #{tpu_custom_call.1} parent=63 // loop_footer
          %s500 = sadd.s32 1, %s496
        $region98: #{tpu_custom_call.1} parent=63 // loop_footer_branch
          %495 = sbr.rel target = $region94
        $region99: #{tpu_custom_call.1} parent=63 // loop_exit
          _
        loop: start=0, step=1, limit=2
        $region100: #{tpu_custom_call.1} parent=63 // loop_pre_header
          _
        $region101: #{tpu_custom_call.1} parent=63 // loop_header
          %s2344 = sphi 0, %s2348
          %p2345 = scmp.ge.s32.totalorder %s2344, 2
          %v2349 = vphi 0.0, %v3560
          %v2350 = vphi 0.0, %v3561
          %v2351 = vphi 0.0, %v3556
          %v2352 = vphi 0.0, %v3557
        $region102: #{tpu_custom_call.1} parent=63 // loop_header_branch
          %2347 = sbr.rel (%p2345) target = $region106
        $region103: #{tpu_custom_call.1} parent=63 // loop_body
          %s2353 = smul.u32 %s2344, 64
          %s2354 = sshra.s32 %s2353, 4
          %s2355 = sand.u32 %s2353, 15
          %s2356 = smul.addr %s2354, 8
          %s2357 = scalar_lea.vmem [#allocation3], %s2356
          %v2358 = vld [vmem:[%s2357] sm:$0xff]
          %v2359 = vld [vmem:[%s2357 + $0x8] sm:$0xff]
          %v2360 = vld [vmem:[%s2357 + $0x10] sm:$0xff]
          %v2361 = vld [vmem:[%s2357 + $0x18] sm:$0xff]
          %v2362 = vld [vmem:[#allocation10] sm:$0xff]
          %v2363 = vld [vmem:[#allocation10 + $0x8] sm:$0xff]
          %v2364 = vld [vmem:[#allocation10 + $0x10] sm:$0xff]
          %v2365 = vld [vmem:[#allocation10 + $0x18] sm:$0xff]
          %v2366 = vld [vmem:[#allocation10 + $0x20] sm:$0xff]
          %v2367 = vld [vmem:[#allocation10 + $0x28] sm:$0xff]
          %v2368 = vld [vmem:[#allocation10 + $0x30] sm:$0xff]
          %v2369 = vld [vmem:[#allocation10 + $0x38] sm:$0xff]
          %v2370 = vld [vmem:[#allocation10 + $0x40] sm:$0xff]
          %v2371 = vld [vmem:[#allocation10 + $0x48] sm:$0xff]
          %v2372 = vld [vmem:[#allocation10 + $0x50] sm:$0xff]
          %v2373 = vld [vmem:[#allocation10 + $0x58] sm:$0xff]
          %v2374 = vld [vmem:[#allocation10 + $0x60] sm:$0xff]
          %v2375 = vld [vmem:[#allocation10 + $0x68] sm:$0xff]
          %v2376 = vld [vmem:[#allocation10 + $0x70] sm:$0xff]
          %v2377 = vld [vmem:[#allocation10 + $0x78] sm:$0xff]
          %v2378 = vld [vmem:[#allocation10 + $0x80] sm:$0xff]
          %v2379 = vld [vmem:[#allocation10 + $0x88] sm:$0xff]
          %v2380 = vld [vmem:[#allocation10 + $0x90] sm:$0xff]
          %v2381 = vld [vmem:[#allocation10 + $0x98] sm:$0xff]
          %v2382 = vld [vmem:[#allocation10 + $0xa0] sm:$0xff]
          %v2383 = vld [vmem:[#allocation10 + $0xa8] sm:$0xff]
          %v2384 = vld [vmem:[#allocation10 + $0xb0] sm:$0xff]
          %v2385 = vld [vmem:[#allocation10 + $0xb8] sm:$0xff]
          %v2386 = vld [vmem:[#allocation10 + $0xc0] sm:$0xff]
          %v2387 = vld [vmem:[#allocation10 + $0xc8] sm:$0xff]
          %v2388 = vld [vmem:[#allocation10 + $0xd0] sm:$0xff]
          %v2389 = vld [vmem:[#allocation10 + $0xd8] sm:$0xff]
          %v2390 = vld [vmem:[#allocation10 + $0xe0] sm:$0xff]
          %v2391 = vld [vmem:[#allocation10 + $0xe8] sm:$0xff]
          %v2392 = vld [vmem:[#allocation10 + $0xf0] sm:$0xff]
          %v2393 = vld [vmem:[#allocation10 + $0xf8] sm:$0xff]
          %v2394 = vld [vmem:[%s6] sm:$0xf]
          %v2396 = vlaneseq
          %v2397 = vshrl.u32 %v2396, 7
          %v2398 = vsub.s32 0, %v2397
          %v2399 = vrot.slane %v2394, %v2398
          %v2400 = vlaneseq
          %v2401 = vshrl.u32 %v2400, 7
          %v2402 = vsub.s32 1, %v2401
          %v2403 = vrot.slane %v2394, %v2402
          %v2404 = vlaneseq
          %v2405 = vshrl.u32 %v2404, 7
          %v2406 = vsub.s32 2, %v2405
          %v2407 = vrot.slane %v2394, %v2406
          %v2408 = vlaneseq
          %v2409 = vshrl.u32 %v2408, 7
          %v2410 = vsub.s32 3, %v2409
          %v2411 = vrot.slane %v2394, %v2410
          %v2448 = vunpack.c.l.b16 %v2362
          %v2449 = vunpack.c.h.b16 %v2362
          %v2450 = vunpack.c.l.b16 %v2363
          %v2451 = vunpack.c.h.b16 %v2363
          %v2452 = vunpack.c.l.b16 %v2364
          %v2453 = vunpack.c.h.b16 %v2364
          %v2454 = vunpack.c.l.b16 %v2365
          %v2455 = vunpack.c.h.b16 %v2365
          %v2456 = vunpack.c.l.b16 %v2366
          %v2457 = vunpack.c.h.b16 %v2366
          %v2458 = vunpack.c.l.b16 %v2367
          %v2459 = vunpack.c.h.b16 %v2367
          %v2460 = vunpack.c.l.b16 %v2368
          %v2461 = vunpack.c.h.b16 %v2368
          %v2462 = vunpack.c.l.b16 %v2369
          %v2463 = vunpack.c.h.b16 %v2369
          %v2464 = vunpack.c.l.b16 %v2370
          %v2465 = vunpack.c.h.b16 %v2370
          %v2466 = vunpack.c.l.b16 %v2371
          %v2467 = vunpack.c.h.b16 %v2371
          %v2468 = vunpack.c.l.b16 %v2372
          %v2469 = vunpack.c.h.b16 %v2372
          %v2470 = vunpack.c.l.b16 %v2373
          %v2471 = vunpack.c.h.b16 %v2373
          %v2472 = vunpack.c.l.b16 %v2374
          %v2473 = vunpack.c.h.b16 %v2374
          %v2474 = vunpack.c.l.b16 %v2375
          %v2475 = vunpack.c.h.b16 %v2375
          %v2476 = vunpack.c.l.b16 %v2376
          %v2477 = vunpack.c.h.b16 %v2376
          %v2478 = vunpack.c.l.b16 %v2377
          %v2479 = vunpack.c.h.b16 %v2377
          %v2480 = vunpack.c.l.b16 %v2378
          %v2481 = vunpack.c.h.b16 %v2378
          %v2482 = vunpack.c.l.b16 %v2379
          %v2483 = vunpack.c.h.b16 %v2379
          %v2484 = vunpack.c.l.b16 %v2380
          %v2485 = vunpack.c.h.b16 %v2380
          %v2486 = vunpack.c.l.b16 %v2381
          %v2487 = vunpack.c.h.b16 %v2381
          %v2488 = vunpack.c.l.b16 %v2382
          %v2489 = vunpack.c.h.b16 %v2382
          %v2490 = vunpack.c.l.b16 %v2383
          %v2491 = vunpack.c.h.b16 %v2383
          %v2492 = vunpack.c.l.b16 %v2384
          %v2493 = vunpack.c.h.b16 %v2384
          %v2494 = vunpack.c.l.b16 %v2385
          %v2495 = vunpack.c.h.b16 %v2385
          %v2496 = vunpack.c.l.b16 %v2386
          %v2497 = vunpack.c.h.b16 %v2386
          %v2498 = vunpack.c.l.b16 %v2387
          %v2499 = vunpack.c.h.b16 %v2387
          %v2500 = vunpack.c.l.b16 %v2388
          %v2501 = vunpack.c.h.b16 %v2388
          %v2502 = vunpack.c.l.b16 %v2389
          %v2503 = vunpack.c.h.b16 %v2389
          %v2504 = vunpack.c.l.b16 %v2390
          %v2505 = vunpack.c.h.b16 %v2390
          %v2506 = vunpack.c.l.b16 %v2391
          %v2507 = vunpack.c.h.b16 %v2391
          %v2508 = vunpack.c.l.b16 %v2392
          %v2509 = vunpack.c.h.b16 %v2392
          %v2510 = vunpack.c.l.b16 %v2393
          %v2511 = vunpack.c.h.b16 %v2393
          %v2512 = vpack.c.b16 %v2452, %v2448
          %v2513 = vpack.c.b16 %v2453, %v2449
          %v2514 = vpack.c.b16 %v2454, %v2450
          %v2515 = vpack.c.b16 %v2455, %v2451
          %v2516 = vpack.c.b16 %v2460, %v2456
          %v2517 = vpack.c.b16 %v2461, %v2457
          %v2518 = vpack.c.b16 %v2462, %v2458
          %v2519 = vpack.c.b16 %v2463, %v2459
          %v2520 = vpack.c.b16 %v2468, %v2464
          %v2521 = vpack.c.b16 %v2469, %v2465
          %v2522 = vpack.c.b16 %v2470, %v2466
          %v2523 = vpack.c.b16 %v2471, %v2467
          %v2524 = vpack.c.b16 %v2476, %v2472
          %v2525 = vpack.c.b16 %v2477, %v2473
          %v2526 = vpack.c.b16 %v2478, %v2474
          %v2527 = vpack.c.b16 %v2479, %v2475
          %v2528 = vpack.c.b16 %v2484, %v2480
          %v2529 = vpack.c.b16 %v2485, %v2481
          %v2530 = vpack.c.b16 %v2486, %v2482
          %v2531 = vpack.c.b16 %v2487, %v2483
          %v2532 = vpack.c.b16 %v2492, %v2488
          %v2533 = vpack.c.b16 %v2493, %v2489
          %v2534 = vpack.c.b16 %v2494, %v2490
          %v2535 = vpack.c.b16 %v2495, %v2491
          %v2536 = vpack.c.b16 %v2500, %v2496
          %v2537 = vpack.c.b16 %v2501, %v2497
          %v2538 = vpack.c.b16 %v2502, %v2498
          %v2539 = vpack.c.b16 %v2503, %v2499
          %v2540 = vpack.c.b16 %v2508, %v2504
          %v2541 = vpack.c.b16 %v2509, %v2505
          %v2542 = vpack.c.b16 %v2510, %v2506
          %v2543 = vpack.c.b16 %v2511, %v2507
          %2576 = vmatprep.subr.bf16.mxu0 %v2513
          %2577 = vmatpush1.bf16.msra.mxu0 %v2512
          %2578 = vmatprep.subr.bf16.mxu0 %v2517
          %2579 = vmatpush1.bf16.msra.mxu0 %v2516
          %2580 = vmatprep.subr.bf16.mxu0 %v2521
          %2581 = vmatpush1.bf16.msra.mxu0 %v2520
          %2582 = vmatprep.subr.bf16.mxu0 %v2525
          %2583 = vmatpush1.bf16.msra.mxu0 %v2524
          %2584 = vmatprep.subr.bf16.mxu0 %v2529
          %2585 = vmatpush1.bf16.msra.mxu0 %v2528
          %2586 = vmatprep.subr.bf16.mxu0 %v2533
          %2587 = vmatpush1.bf16.msra.mxu0 %v2532
          %2588 = vmatprep.subr.bf16.mxu0 %v2537
          %2589 = vmatpush1.bf16.msra.mxu0 %v2536
          %2590 = vmatprep.subr.bf16.mxu0 %v2541
          %2591 = vmatpush1.bf16.msra.mxu0 %v2540
          %2592 = vmatprep.subr.bf16.mxu0 0
          %2593 = vmatpush1.bf16.msra.mxu0 0
          %2594 = vmatprep.subr.bf16.mxu0 0
          %2595 = vmatpush1.bf16.msra.mxu0 0
          %2596 = vmatprep.subr.bf16.mxu0 0
          %2597 = vmatpush1.bf16.msra.mxu0 0
          %2598 = vmatprep.subr.bf16.mxu0 0
          %2599 = vmatpush1.bf16.msra.mxu0 0
          %2600 = vmatprep.subr.bf16.mxu0 0
          %2601 = vmatpush1.bf16.msra.mxu0 0
          %2602 = vmatprep.subr.bf16.mxu0 0
          %2603 = vmatpush1.bf16.msra.mxu0 0
          %2604 = vmatprep.subr.bf16.mxu0 0
          %2605 = vmatpush1.bf16.msra.mxu0 0
          %2606 = vmatprep.subr.bf16.mxu0 0
          %2607 = vmatpush1.bf16.msra.mxu0 0
          %2608 = vmatprep.mubr.bf16.mxu0 0
          %2609 = vmatmul.mubr.bf16.gmra.mrb[0].mxu0 %v2358
          %v2610 = vpop.f32.mrb[0].mxu0
          %v2611 = vadd.f32 %v2399, %v2610
          %v2612 = vpop.f32.mrb[0].mxu0
          %v2613 = vadd.f32 %v2403, %v2612
          %v2614 = vpop.f32.mrb[0].mxu0
          %v2615 = vadd.f32 %v2399, %v2614
          %v2616 = vpop.f32.mrb[0].mxu0
          %v2617 = vadd.f32 %v2403, %v2616
          %2618 = vmatprep.mubr.bf16.mxu0 0
          %2619 = vmatmul.mubr.bf16.gmra.mrb[0].mxu0 %v2359
          %v2620 = vpop.f32.mrb[0].mxu0
          %v2621 = vadd.f32 %v2399, %v2620
          %v2622 = vpop.f32.mrb[0].mxu0
          %v2623 = vadd.f32 %v2403, %v2622
          %v2624 = vpop.f32.mrb[0].mxu0
          %v2625 = vadd.f32 %v2399, %v2624
          %v2626 = vpop.f32.mrb[0].mxu0
          %v2627 = vadd.f32 %v2403, %v2626
          %2628 = vmatprep.mubr.bf16.mxu0 0
          %2629 = vmatmul.mubr.bf16.gmra.mrb[0].mxu0 %v2360
          %v2630 = vpop.f32.mrb[0].mxu0
          %v2631 = vadd.f32 %v2399, %v2630
          %v2632 = vpop.f32.mrb[0].mxu0
          %v2633 = vadd.f32 %v2403, %v2632
          %v2634 = vpop.f32.mrb[0].mxu0
          %v2635 = vadd.f32 %v2399, %v2634
          %v2636 = vpop.f32.mrb[0].mxu0
          %v2637 = vadd.f32 %v2403, %v2636
          %2638 = vmatprep.mubr.bf16.mxu0 0
          %2639 = vmatmul.mubr.bf16.gmra.mrb[0].mxu0 %v2361
          %v2640 = vpop.f32.mrb[0].mxu0
          %v2641 = vadd.f32 %v2399, %v2640
          %v2642 = vpop.f32.mrb[0].mxu0
          %v2643 = vadd.f32 %v2403, %v2642
          %v2644 = vpop.f32.mrb[0].mxu0
          %v2645 = vadd.f32 %v2399, %v2644
          %v2646 = vpop.f32.mrb[0].mxu0
          %v2647 = vadd.f32 %v2403, %v2646
          %2648 = vdwg.mxu0
          %2649 = vmatprep.subr.bf16.mxu0 %v2515
          %2650 = vmatpush1.bf16.msra.mxu0 %v2514
          %2651 = vmatprep.subr.bf16.mxu0 %v2519
          %2652 = vmatpush1.bf16.msra.mxu0 %v2518
          %2653 = vmatprep.subr.bf16.mxu0 %v2523
          %2654 = vmatpush1.bf16.msra.mxu0 %v2522
          %2655 = vmatprep.subr.bf16.mxu0 %v2527
          %2656 = vmatpush1.bf16.msra.mxu0 %v2526
          %2657 = vmatprep.subr.bf16.mxu0 %v2531
          %2658 = vmatpush1.bf16.msra.mxu0 %v2530
          %2659 = vmatprep.subr.bf16.mxu0 %v2535
          %2660 = vmatpush1.bf16.msra.mxu0 %v2534
          %2661 = vmatprep.subr.bf16.mxu0 %v2539
          %2662 = vmatpush1.bf16.msra.mxu0 %v2538
          %2663 = vmatprep.subr.bf16.mxu0 %v2543
          %2664 = vmatpush1.bf16.msra.mxu0 %v2542
          %2665 = vmatprep.subr.bf16.mxu0 0
          %2666 = vmatpush1.bf16.msra.mxu0 0
          %2667 = vmatprep.subr.bf16.mxu0 0
          %2668 = vmatpush1.bf16.msra.mxu0 0
          %2669 = vmatprep.subr.bf16.mxu0 0
          %2670 = vmatpush1.bf16.msra.mxu0 0
          %2671 = vmatprep.subr.bf16.mxu0 0
          %2672 = vmatpush1.bf16.msra.mxu0 0
          %2673 = vmatprep.subr.bf16.mxu0 0
          %2674 = vmatpush1.bf16.msra.mxu0 0
          %2675 = vmatprep.subr.bf16.mxu0 0
          %2676 = vmatpush1.bf16.msra.mxu0 0
          %2677 = vmatprep.subr.bf16.mxu0 0
          %2678 = vmatpush1.bf16.msra.mxu0 0
          %2679 = vmatprep.subr.bf16.mxu0 0
          %2680 = vmatpush1.bf16.msra.mxu0 0
          %2681 = vmatprep.mubr.bf16.mxu0 0
          %2682 = vmatmul.mubr.bf16.gmra.mrb[0].mxu0 %v2358
          %v2683 = vpop.f32.mrb[0].mxu0
          %v2684 = vadd.f32 %v2407, %v2683
          %v2685 = vpop.f32.mrb[0].mxu0
          %v2686 = vadd.f32 %v2411, %v2685
          %v2687 = vpop.f32.mrb[0].mxu0
          %v2688 = vadd.f32 %v2407, %v2687
          %v2689 = vpop.f32.mrb[0].mxu0
          %v2690 = vadd.f32 %v2411, %v2689
          %2691 = vmatprep.mubr.bf16.mxu0 0
          %2692 = vmatmul.mubr.bf16.gmra.mrb[0].mxu0 %v2359
          %v2693 = vpop.f32.mrb[0].mxu0
          %v2694 = vadd.f32 %v2407, %v2693
          %v2695 = vpop.f32.mrb[0].mxu0
          %v2696 = vadd.f32 %v2411, %v2695
          %v2697 = vpop.f32.mrb[0].mxu0
          %v2698 = vadd.f32 %v2407, %v2697
          %v2699 = vpop.f32.mrb[0].mxu0
          %v2700 = vadd.f32 %v2411, %v2699
          %2701 = vmatprep.mubr.bf16.mxu0 0
          %2702 = vmatmul.mubr.bf16.gmra.mrb[0].mxu0 %v2360
          %v2703 = vpop.f32.mrb[0].mxu0
          %v2704 = vadd.f32 %v2407, %v2703
          %v2705 = vpop.f32.mrb[0].mxu0
          %v2706 = vadd.f32 %v2411, %v2705
          %v2707 = vpop.f32.mrb[0].mxu0
          %v2708 = vadd.f32 %v2407, %v2707
          %v2709 = vpop.f32.mrb[0].mxu0
          %v2710 = vadd.f32 %v2411, %v2709
          %2711 = vmatprep.mubr.bf16.mxu0 0
          %2712 = vmatmul.mubr.bf16.gmra.mrb[0].mxu0 %v2361
          %v2713 = vpop.f32.mrb[0].mxu0
          %v2714 = vadd.f32 %v2407, %v2713
          %v2715 = vpop.f32.mrb[0].mxu0
          %v2716 = vadd.f32 %v2411, %v2715
          %v2717 = vpop.f32.mrb[0].mxu0
          %v2718 = vadd.f32 %v2407, %v2717
          %v2719 = vpop.f32.mrb[0].mxu0
          %v2720 = vadd.f32 %v2411, %v2719
          %2721 = vdwg.mxu0
          %2722 = vst [vmem:[#allocation2] sm:$0xff] %v2611
          %2723 = vst [vmem:[#allocation2 + $0x8] sm:$0xff] %v2613
          %2724 = vst [vmem:[#allocation2 + $0x10] sm:$0xff] %v2684
          %2725 = vst [vmem:[#allocation2 + $0x18] sm:$0xff] %v2686
          %2726 = vst [vmem:[#allocation2 + $0x20] sm:$0xff] %v2615
          %2727 = vst [vmem:[#allocation2 + $0x28] sm:$0xff] %v2617
          %2728 = vst [vmem:[#allocation2 + $0x30] sm:$0xff] %v2688
          %2729 = vst [vmem:[#allocation2 + $0x38] sm:$0xff] %v2690
          %2730 = vst [vmem:[#allocation2 + $0x40] sm:$0xff] %v2621
          %2731 = vst [vmem:[#allocation2 + $0x48] sm:$0xff] %v2623
          %2732 = vst [vmem:[#allocation2 + $0x50] sm:$0xff] %v2694
          %2733 = vst [vmem:[#allocation2 + $0x58] sm:$0xff] %v2696
          %2734 = vst [vmem:[#allocation2 + $0x60] sm:$0xff] %v2625
          %2735 = vst [vmem:[#allocation2 + $0x68] sm:$0xff] %v2627
          %2736 = vst [vmem:[#allocation2 + $0x70] sm:$0xff] %v2698
          %2737 = vst [vmem:[#allocation2 + $0x78] sm:$0xff] %v2700
          %2738 = vst [vmem:[#allocation2 + $0x80] sm:$0xff] %v2631
          %2739 = vst [vmem:[#allocation2 + $0x88] sm:$0xff] %v2633
          %2740 = vst [vmem:[#allocation2 + $0x90] sm:$0xff] %v2704
          %2741 = vst [vmem:[#allocation2 + $0x98] sm:$0xff] %v2706
          %2742 = vst [vmem:[#allocation2 + $0xa0] sm:$0xff] %v2635
          %2743 = vst [vmem:[#allocation2 + $0xa8] sm:$0xff] %v2637
          %2744 = vst [vmem:[#allocation2 + $0xb0] sm:$0xff] %v2708
          %2745 = vst [vmem:[#allocation2 + $0xb8] sm:$0xff] %v2710
          %2746 = vst [vmem:[#allocation2 + $0xc0] sm:$0xff] %v2641
          %2747 = vst [vmem:[#allocation2 + $0xc8] sm:$0xff] %v2643
          %2748 = vst [vmem:[#allocation2 + $0xd0] sm:$0xff] %v2714
          %2749 = vst [vmem:[#allocation2 + $0xd8] sm:$0xff] %v2716
          %2750 = vst [vmem:[#allocation2 + $0xe0] sm:$0xff] %v2645
          %2751 = vst [vmem:[#allocation2 + $0xe8] sm:$0xff] %v2647
          %2752 = vst [vmem:[#allocation2 + $0xf0] sm:$0xff] %v2718
          %2753 = vst [vmem:[#allocation2 + $0xf8] sm:$0xff] %v2720
          %s2754 = smul.u32 0, 4
          %s2755 = smul.addr %s2754, 8
          %s2756 = scalar_lea.vmem [#allocation2], %s2755
          %v2757 = vld [vmem:[%s2756] sm:$0xff]
          %v2758 = vld [vmem:[%s2756 + $0x8] sm:$0xff]
          %v2759 = vld [vmem:[%s2756 + $0x10] sm:$0xff]
          %v2760 = vld [vmem:[%s2756 + $0x18] sm:$0xff]
          %v2761 = vld [vmem:[%s2756 + $0x20] sm:$0xff]
          %v2762 = vld [vmem:[%s2756 + $0x28] sm:$0xff]
          %v2763 = vld [vmem:[%s2756 + $0x30] sm:$0xff]
          %v2764 = vld [vmem:[%s2756 + $0x38] sm:$0xff]
          %v2765 = vpack.c.bf16 %v2350, %v2349
          %v2766 = vld [vmem:[#allocation12] sm:$0xff]
          %v2767 = vld [vmem:[#allocation12 + $0x8] sm:$0xff]
          %v2768 = vld [vmem:[#allocation12 + $0x10] sm:$0xff]
          %v2769 = vld [vmem:[#allocation12 + $0x18] sm:$0xff]
          %v2770 = vld [vmem:[#allocation12 + $0x20] sm:$0xff]
          %v2771 = vld [vmem:[#allocation12 + $0x28] sm:$0xff]
          %v2772 = vld [vmem:[#allocation12 + $0x30] sm:$0xff]
          %v2773 = vld [vmem:[#allocation12 + $0x38] sm:$0xff]
          %v2774 = vld [vmem:[#allocation12 + $0x40] sm:$0xff]
          %v2775 = vld [vmem:[#allocation12 + $0x48] sm:$0xff]
          %v2776 = vld [vmem:[#allocation12 + $0x50] sm:$0xff]
          %v2777 = vld [vmem:[#allocation12 + $0x58] sm:$0xff]
          %v2778 = vld [vmem:[#allocation12 + $0x60] sm:$0xff]
          %v2779 = vld [vmem:[#allocation12 + $0x68] sm:$0xff]
          %v2780 = vld [vmem:[#allocation12 + $0x70] sm:$0xff]
          %v2781 = vld [vmem:[#allocation12 + $0x78] sm:$0xff]
          %v2782 = vld [vmem:[#allocation12 + $0x80] sm:$0xff]
          %v2783 = vld [vmem:[#allocation12 + $0x88] sm:$0xff]
          %v2784 = vld [vmem:[#allocation12 + $0x90] sm:$0xff]
          %v2785 = vld [vmem:[#allocation12 + $0x98] sm:$0xff]
          %v2786 = vld [vmem:[#allocation12 + $0xa0] sm:$0xff]
          %v2787 = vld [vmem:[#allocation12 + $0xa8] sm:$0xff]
          %v2788 = vld [vmem:[#allocation12 + $0xb0] sm:$0xff]
          %v2789 = vld [vmem:[#allocation12 + $0xb8] sm:$0xff]
          %v2790 = vld [vmem:[#allocation12 + $0xc0] sm:$0xff]
          %v2791 = vld [vmem:[#allocation12 + $0xc8] sm:$0xff]
          %v2792 = vld [vmem:[#allocation12 + $0xd0] sm:$0xff]
          %v2793 = vld [vmem:[#allocation12 + $0xd8] sm:$0xff]
          %v2794 = vld [vmem:[#allocation12 + $0xe0] sm:$0xff]
          %v2795 = vld [vmem:[#allocation12 + $0xe8] sm:$0xff]
          %v2796 = vld [vmem:[#allocation12 + $0xf0] sm:$0xff]
          %v2797 = vld [vmem:[#allocation12 + $0xf8] sm:$0xff]
          %v2830 = vunpack.c.l.b16 %v2766
          %v2831 = vunpack.c.h.b16 %v2766
          %v2832 = vunpack.c.l.b16 %v2767
          %v2833 = vunpack.c.h.b16 %v2767
          %v2834 = vunpack.c.l.b16 %v2768
          %v2835 = vunpack.c.h.b16 %v2768
          %v2836 = vunpack.c.l.b16 %v2769
          %v2837 = vunpack.c.h.b16 %v2769
          %v2838 = vunpack.c.l.b16 %v2770
          %v2839 = vunpack.c.h.b16 %v2770
          %v2840 = vunpack.c.l.b16 %v2771
          %v2841 = vunpack.c.h.b16 %v2771
          %v2842 = vunpack.c.l.b16 %v2772
          %v2843 = vunpack.c.h.b16 %v2772
          %v2844 = vunpack.c.l.b16 %v2773
          %v2845 = vunpack.c.h.b16 %v2773
          %v2846 = vunpack.c.l.b16 %v2774
          %v2847 = vunpack.c.h.b16 %v2774
          %v2848 = vunpack.c.l.b16 %v2775
          %v2849 = vunpack.c.h.b16 %v2775
          %v2850 = vunpack.c.l.b16 %v2776
          %v2851 = vunpack.c.h.b16 %v2776
          %v2852 = vunpack.c.l.b16 %v2777
          %v2853 = vunpack.c.h.b16 %v2777
          %v2854 = vunpack.c.l.b16 %v2778
          %v2855 = vunpack.c.h.b16 %v2778
          %v2856 = vunpack.c.l.b16 %v2779
          %v2857 = vunpack.c.h.b16 %v2779
          %v2858 = vunpack.c.l.b16 %v2780
          %v2859 = vunpack.c.h.b16 %v2780
          %v2860 = vunpack.c.l.b16 %v2781
          %v2861 = vunpack.c.h.b16 %v2781
          %v2862 = vunpack.c.l.b16 %v2782
          %v2863 = vunpack.c.h.b16 %v2782
          %v2864 = vunpack.c.l.b16 %v2783
          %v2865 = vunpack.c.h.b16 %v2783
          %v2866 = vunpack.c.l.b16 %v2784
          %v2867 = vunpack.c.h.b16 %v2784
          %v2868 = vunpack.c.l.b16 %v2785
          %v2869 = vunpack.c.h.b16 %v2785
          %v2870 = vunpack.c.l.b16 %v2786
          %v2871 = vunpack.c.h.b16 %v2786
          %v2872 = vunpack.c.l.b16 %v2787
          %v2873 = vunpack.c.h.b16 %v2787
          %v2874 = vunpack.c.l.b16 %v2788
          %v2875 = vunpack.c.h.b16 %v2788
          %v2876 = vunpack.c.l.b16 %v2789
          %v2877 = vunpack.c.h.b16 %v2789
          %v2878 = vunpack.c.l.b16 %v2790
          %v2879 = vunpack.c.h.b16 %v2790
          %v2880 = vunpack.c.l.b16 %v2791
          %v2881 = vunpack.c.h.b16 %v2791
          %v2882 = vunpack.c.l.b16 %v2792
          %v2883 = vunpack.c.h.b16 %v2792
          %v2884 = vunpack.c.l.b16 %v2793
          %v2885 = vunpack.c.h.b16 %v2793
          %v2886 = vunpack.c.l.b16 %v2794
          %v2887 = vunpack.c.h.b16 %v2794
          %v2888 = vunpack.c.l.b16 %v2795
          %v2889 = vunpack.c.h.b16 %v2795
          %v2890 = vunpack.c.l.b16 %v2796
          %v2891 = vunpack.c.h.b16 %v2796
          %v2892 = vunpack.c.l.b16 %v2797
          %v2893 = vunpack.c.h.b16 %v2797
          %v2894 = vpack.c.b16 %v2834, %v2830
          %v2895 = vpack.c.b16 %v2835, %v2831
          %v2896 = vpack.c.b16 %v2836, %v2832
          %v2897 = vpack.c.b16 %v2837, %v2833
          %v2898 = vpack.c.b16 %v2842, %v2838
          %v2899 = vpack.c.b16 %v2843, %v2839
          %v2900 = vpack.c.b16 %v2844, %v2840
          %v2901 = vpack.c.b16 %v2845, %v2841
          %v2902 = vpack.c.b16 %v2850, %v2846
          %v2903 = vpack.c.b16 %v2851, %v2847
          %v2904 = vpack.c.b16 %v2852, %v2848
          %v2905 = vpack.c.b16 %v2853, %v2849
          %v2906 = vpack.c.b16 %v2858, %v2854
          %v2907 = vpack.c.b16 %v2859, %v2855
          %v2908 = vpack.c.b16 %v2860, %v2856
          %v2909 = vpack.c.b16 %v2861, %v2857
          %v2910 = vpack.c.b16 %v2866, %v2862
          %v2911 = vpack.c.b16 %v2867, %v2863
          %v2912 = vpack.c.b16 %v2868, %v2864
          %v2913 = vpack.c.b16 %v2869, %v2865
          %v2914 = vpack.c.b16 %v2874, %v2870
          %v2915 = vpack.c.b16 %v2875, %v2871
          %v2916 = vpack.c.b16 %v2876, %v2872
          %v2917 = vpack.c.b16 %v2877, %v2873
          %v2918 = vpack.c.b16 %v2882, %v2878
          %v2919 = vpack.c.b16 %v2883, %v2879
          %v2920 = vpack.c.b16 %v2884, %v2880
          %v2921 = vpack.c.b16 %v2885, %v2881
          %v2922 = vpack.c.b16 %v2890, %v2886
          %v2923 = vpack.c.b16 %v2891, %v2887
          %v2924 = vpack.c.b16 %v2892, %v2888
          %v2925 = vpack.c.b16 %v2893, %v2889
          %2958 = vmatprep.subr.bf16.mxu0 %v2895
          %2959 = vmatpush1.bf16.msra.mxu0 %v2894
          %2960 = vmatprep.subr.bf16.mxu0 %v2899
          %2961 = vmatpush1.bf16.msra.mxu0 %v2898
          %2962 = vmatprep.subr.bf16.mxu0 %v2903
          %2963 = vmatpush1.bf16.msra.mxu0 %v2902
          %2964 = vmatprep.subr.bf16.mxu0 %v2907
          %2965 = vmatpush1.bf16.msra.mxu0 %v2906
          %2966 = vmatprep.subr.bf16.mxu0 %v2911
          %2967 = vmatpush1.bf16.msra.mxu0 %v2910
          %2968 = vmatprep.subr.bf16.mxu0 %v2915
          %2969 = vmatpush1.bf16.msra.mxu0 %v2914
          %2970 = vmatprep.subr.bf16.mxu0 %v2919
          %2971 = vmatpush1.bf16.msra.mxu0 %v2918
          %2972 = vmatprep.subr.bf16.mxu0 %v2923
          %2973 = vmatpush1.bf16.msra.mxu0 %v2922
          %2974 = vmatprep.subr.bf16.mxu0 0
          %2975 = vmatpush1.bf16.msra.mxu0 0
          %2976 = vmatprep.subr.bf16.mxu0 0
          %2977 = vmatpush1.bf16.msra.mxu0 0
          %2978 = vmatprep.subr.bf16.mxu0 0
          %2979 = vmatpush1.bf16.msra.mxu0 0
          %2980 = vmatprep.subr.bf16.mxu0 0
          %2981 = vmatpush1.bf16.msra.mxu0 0
          %2982 = vmatprep.subr.bf16.mxu0 0
          %2983 = vmatpush1.bf16.msra.mxu0 0
          %2984 = vmatprep.subr.bf16.mxu0 0
          %2985 = vmatpush1.bf16.msra.mxu0 0
          %2986 = vmatprep.subr.bf16.mxu0 0
          %2987 = vmatpush1.bf16.msra.mxu0 0
          %2988 = vmatprep.subr.bf16.mxu0 0
          %2989 = vmatpush1.bf16.msra.mxu0 0
          %2990 = vmatprep.mubr.bf16.mxu0 0
          %2991 = vmatmul.mubr.bf16.gmra.mrb[0].mxu0 %v2765
          %v2992 = vpop.f32.mrb[0].mxu0
          %v2993 = vadd.f32 0.0, %v2992
          %v2994 = vpop.f32.mrb[0].mxu0
          %v2995 = vadd.f32 0.0, %v2994
          %v2996 = vpop.f32.mrb[0].mxu0
          %v2997 = vadd.f32 0.0, %v2996
          %v2998 = vpop.f32.mrb[0].mxu0
          %v2999 = vadd.f32 0.0, %v2998
          %3000 = vdwg.mxu0
          %3001 = vmatprep.subr.bf16.mxu0 %v2897
          %3002 = vmatpush1.bf16.msra.mxu0 %v2896
          %3003 = vmatprep.subr.bf16.mxu0 %v2901
          %3004 = vmatpush1.bf16.msra.mxu0 %v2900
          %3005 = vmatprep.subr.bf16.mxu0 %v2905
          %3006 = vmatpush1.bf16.msra.mxu0 %v2904
          %3007 = vmatprep.subr.bf16.mxu0 %v2909
          %3008 = vmatpush1.bf16.msra.mxu0 %v2908
          %3009 = vmatprep.subr.bf16.mxu0 %v2913
          %3010 = vmatpush1.bf16.msra.mxu0 %v2912
          %3011 = vmatprep.subr.bf16.mxu0 %v2917
          %3012 = vmatpush1.bf16.msra.mxu0 %v2916
          %3013 = vmatprep.subr.bf16.mxu0 %v2921
          %3014 = vmatpush1.bf16.msra.mxu0 %v2920
          %3015 = vmatprep.subr.bf16.mxu0 %v2925
          %3016 = vmatpush1.bf16.msra.mxu0 %v2924
          %3017 = vmatprep.subr.bf16.mxu0 0
          %3018 = vmatpush1.bf16.msra.mxu0 0
          %3019 = vmatprep.subr.bf16.mxu0 0
          %3020 = vmatpush1.bf16.msra.mxu0 0
          %3021 = vmatprep.subr.bf16.mxu0 0
          %3022 = vmatpush1.bf16.msra.mxu0 0
          %3023 = vmatprep.subr.bf16.mxu0 0
          %3024 = vmatpush1.bf16.msra.mxu0 0
          %3025 = vmatprep.subr.bf16.mxu0 0
          %3026 = vmatpush1.bf16.msra.mxu0 0
          %3027 = vmatprep.subr.bf16.mxu0 0
          %3028 = vmatpush1.bf16.msra.mxu0 0
          %3029 = vmatprep.subr.bf16.mxu0 0
          %3030 = vmatpush1.bf16.msra.mxu0 0
          %3031 = vmatprep.subr.bf16.mxu0 0
          %3032 = vmatpush1.bf16.msra.mxu0 0
          %3033 = vmatprep.mubr.bf16.mxu0 0
          %3034 = vmatmul.mubr.bf16.gmra.mrb[0].mxu0 %v2765
          %v3035 = vpop.f32.mrb[0].mxu0
          %v3036 = vadd.f32 0.0, %v3035
          %v3037 = vpop.f32.mrb[0].mxu0
          %v3038 = vadd.f32 0.0, %v3037
          %v3039 = vpop.f32.mrb[0].mxu0
          %v3040 = vadd.f32 0.0, %v3039
          %v3041 = vpop.f32.mrb[0].mxu0
          %v3042 = vadd.f32 0.0, %v3041
          %3043 = vdwg.mxu0
          %v3044 = vadd.f32 %v2757, %v2993
          %v3045 = vadd.f32 %v2758, %v2995
          %v3046 = vadd.f32 %v2759, %v3036
          %v3047 = vadd.f32 %v2760, %v3038
          %v3048 = vadd.f32 %v2761, %v2997
          %v3049 = vadd.f32 %v2762, %v2999
          %v3050 = vadd.f32 %v2763, %v3040
          %v3051 = vadd.f32 %v2764, %v3042
          %v3052 = vxor.u32 %v3044, 2147483648
          %v3053 = vxor.u32 %v3048, 2147483648
          %v3054 = vmul.f32 %v3052, 1.442695
          %v3055 = vpow.pop %v3054
          %v3056 = vmul.f32 %v3053, 1.442695
          %v3057 = vpow.pop %v3056
          %v3058 = vadd.f32 %v3055, 1.0
          %v3059 = vadd.f32 %v3057, 1.0
          %v3060 = vrcp.pop %v3058
          %v3061 = vmul.f32 1.0, %v3060
          %v3062 = vrcp.pop %v3059
          %v3063 = vmul.f32 1.0, %v3062
          %v3064 = vxor.u32 %v3045, 2147483648
          %v3065 = vxor.u32 %v3049, 2147483648
          %v3066 = vmul.f32 %v3064, 1.442695
          %v3067 = vpow.pop %v3066
          %v3068 = vmul.f32 %v3065, 1.442695
          %v3069 = vpow.pop %v3068
          %v3070 = vadd.f32 %v3067, 1.0
          %v3071 = vadd.f32 %v3069, 1.0
          %v3072 = vrcp.pop %v3070
          %v3073 = vmul.f32 1.0, %v3072
          %v3074 = vrcp.pop %v3071
          %v3075 = vmul.f32 1.0, %v3074
          %v3076 = vtanh.pop %v3046
          %v3077 = vtanh.pop %v3050
          %v3078 = vxor.u32 %v3047, 2147483648
          %v3079 = vxor.u32 %v3051, 2147483648
          %v3080 = vmul.f32 %v3078, 1.442695
          %v3081 = vpow.pop %v3080
          %v3082 = vmul.f32 %v3079, 1.442695
          %v3083 = vpow.pop %v3082
          %v3084 = vadd.f32 %v3081, 1.0
          %v3085 = vadd.f32 %v3083, 1.0
          %v3086 = vrcp.pop %v3084
          %v3087 = vmul.f32 1.0, %v3086
          %v3088 = vrcp.pop %v3085
          %v3089 = vmul.f32 1.0, %v3088
          %v3090 = vmul.f32 %v3073, %v2351
          %v3091 = vmul.f32 %v3075, %v2352
          %v3092 = vmul.f32 %v3061, %v3076
          %v3093 = vmul.f32 %v3063, %v3077
          %v3094 = vadd.f32 %v3090, %v3092
          %v3095 = vadd.f32 %v3091, %v3093
          %v3096 = vtanh.pop %v3094
          %v3097 = vtanh.pop %v3095
          %v3098 = vmul.f32 %v3087, %v3096
          %v3099 = vmul.f32 %v3089, %v3097
          %s3100 = smul.u32 2, 4
          %s3101 = smul.addr %s3100, 8
          %s3102 = scalar_lea.vmem [#allocation2], %s3101
          %v3103 = vld [vmem:[%s3102] sm:$0xff]
          %v3104 = vld [vmem:[%s3102 + $0x8] sm:$0xff]
          %v3105 = vld [vmem:[%s3102 + $0x10] sm:$0xff]
          %v3106 = vld [vmem:[%s3102 + $0x18] sm:$0xff]
          %v3107 = vld [vmem:[%s3102 + $0x20] sm:$0xff]
          %v3108 = vld [vmem:[%s3102 + $0x28] sm:$0xff]
          %v3109 = vld [vmem:[%s3102 + $0x30] sm:$0xff]
          %v3110 = vld [vmem:[%s3102 + $0x38] sm:$0xff]
          %v3111 = vpack.c.bf16 %v3099, %v3098
          %3112 = vmatprep.subr.bf16.mxu0 %v2895
          %3113 = vmatpush1.bf16.msra.mxu0 %v2894
          %3114 = vmatprep.subr.bf16.mxu0 %v2899
          %3115 = vmatpush1.bf16.msra.mxu0 %v2898
          %3116 = vmatprep.subr.bf16.mxu0 %v2903
          %3117 = vmatpush1.bf16.msra.mxu0 %v2902
          %3118 = vmatprep.subr.bf16.mxu0 %v2907
          %3119 = vmatpush1.bf16.msra.mxu0 %v2906
          %3120 = vmatprep.subr.bf16.mxu0 %v2911
          %3121 = vmatpush1.bf16.msra.mxu0 %v2910
          %3122 = vmatprep.subr.bf16.mxu0 %v2915
          %3123 = vmatpush1.bf16.msra.mxu0 %v2914
          %3124 = vmatprep.subr.bf16.mxu0 %v2919
          %3125 = vmatpush1.bf16.msra.mxu0 %v2918
          %3126 = vmatprep.subr.bf16.mxu0 %v2923
          %3127 = vmatpush1.bf16.msra.mxu0 %v2922
          %3128 = vmatprep.subr.bf16.mxu0 0
          %3129 = vmatpush1.bf16.msra.mxu0 0
          %3130 = vmatprep.subr.bf16.mxu0 0
          %3131 = vmatpush1.bf16.msra.mxu0 0
          %3132 = vmatprep.subr.bf16.mxu0 0
          %3133 = vmatpush1.bf16.msra.mxu0 0
          %3134 = vmatprep.subr.bf16.mxu0 0
          %3135 = vmatpush1.bf16.msra.mxu0 0
          %3136 = vmatprep.subr.bf16.mxu0 0
          %3137 = vmatpush1.bf16.msra.mxu0 0
          %3138 = vmatprep.subr.bf16.mxu0 0
          %3139 = vmatpush1.bf16.msra.mxu0 0
          %3140 = vmatprep.subr.bf16.mxu0 0
          %3141 = vmatpush1.bf16.msra.mxu0 0
          %3142 = vmatprep.subr.bf16.mxu0 0
          %3143 = vmatpush1.bf16.msra.mxu0 0
          %3144 = vmatprep.mubr.bf16.mxu0 0
          %3145 = vmatmul.mubr.bf16.gmra.mrb[0].mxu0 %v3111
          %v3146 = vpop.f32.mrb[0].mxu0
          %v3147 = vadd.f32 0.0, %v3146
          %v3148 = vpop.f32.mrb[0].mxu0
          %v3149 = vadd.f32 0.0, %v3148
          %v3150 = vpop.f32.mrb[0].mxu0
          %v3151 = vadd.f32 0.0, %v3150
          %v3152 = vpop.f32.mrb[0].mxu0
          %v3153 = vadd.f32 0.0, %v3152
          %3154 = vdwg.mxu0
          %3155 = vmatprep.subr.bf16.mxu0 %v2897
          %3156 = vmatpush1.bf16.msra.mxu0 %v2896
          %3157 = vmatprep.subr.bf16.mxu0 %v2901
          %3158 = vmatpush1.bf16.msra.mxu0 %v2900
          %3159 = vmatprep.subr.bf16.mxu0 %v2905
          %3160 = vmatpush1.bf16.msra.mxu0 %v2904
          %3161 = vmatprep.subr.bf16.mxu0 %v2909
          %3162 = vmatpush1.bf16.msra.mxu0 %v2908
          %3163 = vmatprep.subr.bf16.mxu0 %v2913
          %3164 = vmatpush1.bf16.msra.mxu0 %v2912
          %3165 = vmatprep.subr.bf16.mxu0 %v2917
          %3166 = vmatpush1.bf16.msra.mxu0 %v2916
          %3167 = vmatprep.subr.bf16.mxu0 %v2921
          %3168 = vmatpush1.bf16.msra.mxu0 %v2920
          %3169 = vmatprep.subr.bf16.mxu0 %v2925
          %3170 = vmatpush1.bf16.msra.mxu0 %v2924
          %3171 = vmatprep.subr.bf16.mxu0 0
          %3172 = vmatpush1.bf16.msra.mxu0 0
          %3173 = vmatprep.subr.bf16.mxu0 0
          %3174 = vmatpush1.bf16.msra.mxu0 0
          %3175 = vmatprep.subr.bf16.mxu0 0
          %3176 = vmatpush1.bf16.msra.mxu0 0
          %3177 = vmatprep.subr.bf16.mxu0 0
          %3178 = vmatpush1.bf16.msra.mxu0 0
          %3179 = vmatprep.subr.bf16.mxu0 0
          %3180 = vmatpush1.bf16.msra.mxu0 0
          %3181 = vmatprep.subr.bf16.mxu0 0
          %3182 = vmatpush1.bf16.msra.mxu0 0
          %3183 = vmatprep.subr.bf16.mxu0 0
          %3184 = vmatpush1.bf16.msra.mxu0 0
          %3185 = vmatprep.subr.bf16.mxu0 0
          %3186 = vmatpush1.bf16.msra.mxu0 0
          %3187 = vmatprep.mubr.bf16.mxu0 0
          %3188 = vmatmul.mubr.bf16.gmra.mrb[0].mxu0 %v3111
          %v3189 = vpop.f32.mrb[0].mxu0
          %v3190 = vadd.f32 0.0, %v3189
          %v3191 = vpop.f32.mrb[0].mxu0
          %v3192 = vadd.f32 0.0, %v3191
          %v3193 = vpop.f32.mrb[0].mxu0
          %v3194 = vadd.f32 0.0, %v3193
          %v3195 = vpop.f32.mrb[0].mxu0
          %v3196 = vadd.f32 0.0, %v3195
          %3197 = vdwg.mxu0
          %v3198 = vadd.f32 %v3103, %v3147
          %v3199 = vadd.f32 %v3104, %v3149
          %v3200 = vadd.f32 %v3105, %v3190
          %v3201 = vadd.f32 %v3106, %v3192
          %v3202 = vadd.f32 %v3107, %v3151
          %v3203 = vadd.f32 %v3108, %v3153
          %v3204 = vadd.f32 %v3109, %v3194
          %v3205 = vadd.f32 %v3110, %v3196
          %v3206 = vxor.u32 %v3198, 2147483648
          %v3207 = vxor.u32 %v3202, 2147483648
          %v3208 = vmul.f32 %v3206, 1.442695
          %v3209 = vpow.pop %v3208
          %v3210 = vmul.f32 %v3207, 1.442695
          %v3211 = vpow.pop %v3210
          %v3212 = vadd.f32 %v3209, 1.0
          %v3213 = vadd.f32 %v3211, 1.0
          %v3214 = vrcp.pop %v3212
          %v3215 = vmul.f32 1.0, %v3214
          %v3216 = vrcp.pop %v3213
          %v3217 = vmul.f32 1.0, %v3216
          %v3218 = vxor.u32 %v3199, 2147483648
          %v3219 = vxor.u32 %v3203, 2147483648
          %v3220 = vmul.f32 %v3218, 1.442695
          %v3221 = vpow.pop %v3220
          %v3222 = vmul.f32 %v3219, 1.442695
          %v3223 = vpow.pop %v3222
          %v3224 = vadd.f32 %v3221, 1.0
          %v3225 = vadd.f32 %v3223, 1.0
          %v3226 = vrcp.pop %v3224
          %v3227 = vmul.f32 1.0, %v3226
          %v3228 = vrcp.pop %v3225
          %v3229 = vmul.f32 1.0, %v3228
          %v3230 = vtanh.pop %v3200
          %v3231 = vtanh.pop %v3204
          %v3232 = vxor.u32 %v3201, 2147483648
          %v3233 = vxor.u32 %v3205, 2147483648
          %v3234 = vmul.f32 %v3232, 1.442695
          %v3235 = vpow.pop %v3234
          %v3236 = vmul.f32 %v3233, 1.442695
          %v3237 = vpow.pop %v3236
          %v3238 = vadd.f32 %v3235, 1.0
          %v3239 = vadd.f32 %v3237, 1.0
          %v3240 = vrcp.pop %v3238
          %v3241 = vmul.f32 1.0, %v3240
          %v3242 = vrcp.pop %v3239
          %v3243 = vmul.f32 1.0, %v3242
          %v3244 = vmul.f32 %v3227, %v3094
          %v3245 = vmul.f32 %v3229, %v3095
          %v3246 = vmul.f32 %v3215, %v3230
          %v3247 = vmul.f32 %v3217, %v3231
          %v3248 = vadd.f32 %v3244, %v3246
          %v3249 = vadd.f32 %v3245, %v3247
          %v3250 = vtanh.pop %v3248
          %v3251 = vtanh.pop %v3249
          %v3252 = vmul.f32 %v3241, %v3250
          %v3253 = vmul.f32 %v3243, %v3251
          %s3254 = smul.u32 4, 4
          %s3255 = smul.addr %s3254, 8
          %s3256 = scalar_lea.vmem [#allocation2], %s3255
          %v3257 = vld [vmem:[%s3256] sm:$0xff]
          %v3258 = vld [vmem:[%s3256 + $0x8] sm:$0xff]
          %v3259 = vld [vmem:[%s3256 + $0x10] sm:$0xff]
          %v3260 = vld [vmem:[%s3256 + $0x18] sm:$0xff]
          %v3261 = vld [vmem:[%s3256 + $0x20] sm:$0xff]
          %v3262 = vld [vmem:[%s3256 + $0x28] sm:$0xff]
          %v3263 = vld [vmem:[%s3256 + $0x30] sm:$0xff]
          %v3264 = vld [vmem:[%s3256 + $0x38] sm:$0xff]
          %v3265 = vpack.c.bf16 %v3253, %v3252
          %3266 = vmatprep.subr.bf16.mxu0 %v2895
          %3267 = vmatpush1.bf16.msra.mxu0 %v2894
          %3268 = vmatprep.subr.bf16.mxu0 %v2899
          %3269 = vmatpush1.bf16.msra.mxu0 %v2898
          %3270 = vmatprep.subr.bf16.mxu0 %v2903
          %3271 = vmatpush1.bf16.msra.mxu0 %v2902
          %3272 = vmatprep.subr.bf16.mxu0 %v2907
          %3273 = vmatpush1.bf16.msra.mxu0 %v2906
          %3274 = vmatprep.subr.bf16.mxu0 %v2911
          %3275 = vmatpush1.bf16.msra.mxu0 %v2910
          %3276 = vmatprep.subr.bf16.mxu0 %v2915
          %3277 = vmatpush1.bf16.msra.mxu0 %v2914
          %3278 = vmatprep.subr.bf16.mxu0 %v2919
          %3279 = vmatpush1.bf16.msra.mxu0 %v2918
          %3280 = vmatprep.subr.bf16.mxu0 %v2923
          %3281 = vmatpush1.bf16.msra.mxu0 %v2922
          %3282 = vmatprep.subr.bf16.mxu0 0
          %3283 = vmatpush1.bf16.msra.mxu0 0
          %3284 = vmatprep.subr.bf16.mxu0 0
          %3285 = vmatpush1.bf16.msra.mxu0 0
          %3286 = vmatprep.subr.bf16.mxu0 0
          %3287 = vmatpush1.bf16.msra.mxu0 0
          %3288 = vmatprep.subr.bf16.mxu0 0
          %3289 = vmatpush1.bf16.msra.mxu0 0
          %3290 = vmatprep.subr.bf16.mxu0 0
          %3291 = vmatpush1.bf16.msra.mxu0 0
          %3292 = vmatprep.subr.bf16.mxu0 0
          %3293 = vmatpush1.bf16.msra.mxu0 0
          %3294 = vmatprep.subr.bf16.mxu0 0
          %3295 = vmatpush1.bf16.msra.mxu0 0
          %3296 = vmatprep.subr.bf16.mxu0 0
          %3297 = vmatpush1.bf16.msra.mxu0 0
          %3298 = vmatprep.mubr.bf16.mxu0 0
          %3299 = vmatmul.mubr.bf16.gmra.mrb[0].mxu0 %v3265
          %v3300 = vpop.f32.mrb[0].mxu0
          %v3301 = vadd.f32 0.0, %v3300
          %v3302 = vpop.f32.mrb[0].mxu0
          %v3303 = vadd.f32 0.0, %v3302
          %v3304 = vpop.f32.mrb[0].mxu0
          %v3305 = vadd.f32 0.0, %v3304
          %v3306 = vpop.f32.mrb[0].mxu0
          %v3307 = vadd.f32 0.0, %v3306
          %3308 = vdwg.mxu0
          %3309 = vmatprep.subr.bf16.mxu0 %v2897
          %3310 = vmatpush1.bf16.msra.mxu0 %v2896
          %3311 = vmatprep.subr.bf16.mxu0 %v2901
          %3312 = vmatpush1.bf16.msra.mxu0 %v2900
          %3313 = vmatprep.subr.bf16.mxu0 %v2905
          %3314 = vmatpush1.bf16.msra.mxu0 %v2904
          %3315 = vmatprep.subr.bf16.mxu0 %v2909
          %3316 = vmatpush1.bf16.msra.mxu0 %v2908
          %3317 = vmatprep.subr.bf16.mxu0 %v2913
          %3318 = vmatpush1.bf16.msra.mxu0 %v2912
          %3319 = vmatprep.subr.bf16.mxu0 %v2917
          %3320 = vmatpush1.bf16.msra.mxu0 %v2916
          %3321 = vmatprep.subr.bf16.mxu0 %v2921
          %3322 = vmatpush1.bf16.msra.mxu0 %v2920
          %3323 = vmatprep.subr.bf16.mxu0 %v2925
          %3324 = vmatpush1.bf16.msra.mxu0 %v2924
          %3325 = vmatprep.subr.bf16.mxu0 0
          %3326 = vmatpush1.bf16.msra.mxu0 0
          %3327 = vmatprep.subr.bf16.mxu0 0
          %3328 = vmatpush1.bf16.msra.mxu0 0
          %3329 = vmatprep.subr.bf16.mxu0 0
          %3330 = vmatpush1.bf16.msra.mxu0 0
          %3331 = vmatprep.subr.bf16.mxu0 0
          %3332 = vmatpush1.bf16.msra.mxu0 0
          %3333 = vmatprep.subr.bf16.mxu0 0
          %3334 = vmatpush1.bf16.msra.mxu0 0
          %3335 = vmatprep.subr.bf16.mxu0 0
          %3336 = vmatpush1.bf16.msra.mxu0 0
          %3337 = vmatprep.subr.bf16.mxu0 0
          %3338 = vmatpush1.bf16.msra.mxu0 0
          %3339 = vmatprep.subr.bf16.mxu0 0
          %3340 = vmatpush1.bf16.msra.mxu0 0
          %3341 = vmatprep.mubr.bf16.mxu0 0
          %3342 = vmatmul.mubr.bf16.gmra.mrb[0].mxu0 %v3265
          %v3343 = vpop.f32.mrb[0].mxu0
          %v3344 = vadd.f32 0.0, %v3343
          %v3345 = vpop.f32.mrb[0].mxu0
          %v3346 = vadd.f32 0.0, %v3345
          %v3347 = vpop.f32.mrb[0].mxu0
          %v3348 = vadd.f32 0.0, %v3347
          %v3349 = vpop.f32.mrb[0].mxu0
          %v3350 = vadd.f32 0.0, %v3349
          %3351 = vdwg.mxu0
          %v3352 = vadd.f32 %v3257, %v3301
          %v3353 = vadd.f32 %v3258, %v3303
          %v3354 = vadd.f32 %v3259, %v3344
          %v3355 = vadd.f32 %v3260, %v3346
          %v3356 = vadd.f32 %v3261, %v3305
          %v3357 = vadd.f32 %v3262, %v3307
          %v3358 = vadd.f32 %v3263, %v3348
          %v3359 = vadd.f32 %v3264, %v3350
          %v3360 = vxor.u32 %v3352, 2147483648
          %v3361 = vxor.u32 %v3356, 2147483648
          %v3362 = vmul.f32 %v3360, 1.442695
          %v3363 = vpow.pop %v3362
          %v3364 = vmul.f32 %v3361, 1.442695
          %v3365 = vpow.pop %v3364
          %v3366 = vadd.f32 %v3363, 1.0
          %v3367 = vadd.f32 %v3365, 1.0
          %v3368 = vrcp.pop %v3366
          %v3369 = vmul.f32 1.0, %v3368
          %v3370 = vrcp.pop %v3367
          %v3371 = vmul.f32 1.0, %v3370
          %v3372 = vxor.u32 %v3353, 2147483648
          %v3373 = vxor.u32 %v3357, 2147483648
          %v3374 = vmul.f32 %v3372, 1.442695
          %v3375 = vpow.pop %v3374
          %v3376 = vmul.f32 %v3373, 1.442695
          %v3377 = vpow.pop %v3376
          %v3378 = vadd.f32 %v3375, 1.0
          %v3379 = vadd.f32 %v3377, 1.0
          %v3380 = vrcp.pop %v3378
          %v3381 = vmul.f32 1.0, %v3380
          %v3382 = vrcp.pop %v3379
          %v3383 = vmul.f32 1.0, %v3382
          %v3384 = vtanh.pop %v3354
          %v3385 = vtanh.pop %v3358
          %v3386 = vxor.u32 %v3355, 2147483648
          %v3387 = vxor.u32 %v3359, 2147483648
          %v3388 = vmul.f32 %v3386, 1.442695
          %v3389 = vpow.pop %v3388
          %v3390 = vmul.f32 %v3387, 1.442695
          %v3391 = vpow.pop %v3390
          %v3392 = vadd.f32 %v3389, 1.0
          %v3393 = vadd.f32 %v3391, 1.0
          %v3394 = vrcp.pop %v3392
          %v3395 = vmul.f32 1.0, %v3394
          %v3396 = vrcp.pop %v3393
          %v3397 = vmul.f32 1.0, %v3396
          %v3398 = vmul.f32 %v3381, %v3248
          %v3399 = vmul.f32 %v3383, %v3249
          %v3400 = vmul.f32 %v3369, %v3384
          %v3401 = vmul.f32 %v3371, %v3385
          %v3402 = vadd.f32 %v3398, %v3400
          %v3403 = vadd.f32 %v3399, %v3401
          %v3404 = vtanh.pop %v3402
          %v3405 = vtanh.pop %v3403
          %v3406 = vmul.f32 %v3395, %v3404
          %v3407 = vmul.f32 %v3397, %v3405
          %s3408 = smul.u32 6, 4
          %s3409 = smul.addr %s3408, 8
          %s3410 = scalar_lea.vmem [#allocation2], %s3409
          %v3411 = vld [vmem:[%s3410] sm:$0xff]
          %v3412 = vld [vmem:[%s3410 + $0x8] sm:$0xff]
          %v3413 = vld [vmem:[%s3410 + $0x10] sm:$0xff]
          %v3414 = vld [vmem:[%s3410 + $0x18] sm:$0xff]
          %v3415 = vld [vmem:[%s3410 + $0x20] sm:$0xff]
          %v3416 = vld [vmem:[%s3410 + $0x28] sm:$0xff]
          %v3417 = vld [vmem:[%s3410 + $0x30] sm:$0xff]
          %v3418 = vld [vmem:[%s3410 + $0x38] sm:$0xff]
          %v3419 = vpack.c.bf16 %v3407, %v3406
          %3420 = vmatprep.subr.bf16.mxu0 %v2895
          %3421 = vmatpush1.bf16.msra.mxu0 %v2894
          %3422 = vmatprep.subr.bf16.mxu0 %v2899
          %3423 = vmatpush1.bf16.msra.mxu0 %v2898
          %3424 = vmatprep.subr.bf16.mxu0 %v2903
          %3425 = vmatpush1.bf16.msra.mxu0 %v2902
          %3426 = vmatprep.subr.bf16.mxu0 %v2907
          %3427 = vmatpush1.bf16.msra.mxu0 %v2906
          %3428 = vmatprep.subr.bf16.mxu0 %v2911
          %3429 = vmatpush1.bf16.msra.mxu0 %v2910
          %3430 = vmatprep.subr.bf16.mxu0 %v2915
          %3431 = vmatpush1.bf16.msra.mxu0 %v2914
          %3432 = vmatprep.subr.bf16.mxu0 %v2919
          %3433 = vmatpush1.bf16.msra.mxu0 %v2918
          %3434 = vmatprep.subr.bf16.mxu0 %v2923
          %3435 = vmatpush1.bf16.msra.mxu0 %v2922
          %3436 = vmatprep.subr.bf16.mxu0 0
          %3437 = vmatpush1.bf16.msra.mxu0 0
          %3438 = vmatprep.subr.bf16.mxu0 0
          %3439 = vmatpush1.bf16.msra.mxu0 0
          %3440 = vmatprep.subr.bf16.mxu0 0
          %3441 = vmatpush1.bf16.msra.mxu0 0
          %3442 = vmatprep.subr.bf16.mxu0 0
          %3443 = vmatpush1.bf16.msra.mxu0 0
          %3444 = vmatprep.subr.bf16.mxu0 0
          %3445 = vmatpush1.bf16.msra.mxu0 0
          %3446 = vmatprep.subr.bf16.mxu0 0
          %3447 = vmatpush1.bf16.msra.mxu0 0
          %3448 = vmatprep.subr.bf16.mxu0 0
          %3449 = vmatpush1.bf16.msra.mxu0 0
          %3450 = vmatprep.subr.bf16.mxu0 0
          %3451 = vmatpush1.bf16.msra.mxu0 0
          %3452 = vmatprep.mubr.bf16.mxu0 0
          %3453 = vmatmul.mubr.bf16.gmra.mrb[0].mxu0 %v3419
          %v3454 = vpop.f32.mrb[0].mxu0
          %v3455 = vadd.f32 0.0, %v3454
          %v3456 = vpop.f32.mrb[0].mxu0
          %v3457 = vadd.f32 0.0, %v3456
          %v3458 = vpop.f32.mrb[0].mxu0
          %v3459 = vadd.f32 0.0, %v3458
          %v3460 = vpop.f32.mrb[0].mxu0
          %v3461 = vadd.f32 0.0, %v3460
          %3462 = vdwg.mxu0
          %3463 = vmatprep.subr.bf16.mxu0 %v2897
          %3464 = vmatpush1.bf16.msra.mxu0 %v2896
          %3465 = vmatprep.subr.bf16.mxu0 %v2901
          %3466 = vmatpush1.bf16.msra.mxu0 %v2900
          %3467 = vmatprep.subr.bf16.mxu0 %v2905
          %3468 = vmatpush1.bf16.msra.mxu0 %v2904
          %3469 = vmatprep.subr.bf16.mxu0 %v2909
          %3470 = vmatpush1.bf16.msra.mxu0 %v2908
          %3471 = vmatprep.subr.bf16.mxu0 %v2913
          %3472 = vmatpush1.bf16.msra.mxu0 %v2912
          %3473 = vmatprep.subr.bf16.mxu0 %v2917
          %3474 = vmatpush1.bf16.msra.mxu0 %v2916
          %3475 = vmatprep.subr.bf16.mxu0 %v2921
          %3476 = vmatpush1.bf16.msra.mxu0 %v2920
          %3477 = vmatprep.subr.bf16.mxu0 %v2925
          %3478 = vmatpush1.bf16.msra.mxu0 %v2924
          %3479 = vmatprep.subr.bf16.mxu0 0
          %3480 = vmatpush1.bf16.msra.mxu0 0
          %3481 = vmatprep.subr.bf16.mxu0 0
          %3482 = vmatpush1.bf16.msra.mxu0 0
          %3483 = vmatprep.subr.bf16.mxu0 0
          %3484 = vmatpush1.bf16.msra.mxu0 0
          %3485 = vmatprep.subr.bf16.mxu0 0
          %3486 = vmatpush1.bf16.msra.mxu0 0
          %3487 = vmatprep.subr.bf16.mxu0 0
          %3488 = vmatpush1.bf16.msra.mxu0 0
          %3489 = vmatprep.subr.bf16.mxu0 0
          %3490 = vmatpush1.bf16.msra.mxu0 0
          %3491 = vmatprep.subr.bf16.mxu0 0
          %3492 = vmatpush1.bf16.msra.mxu0 0
          %3493 = vmatprep.subr.bf16.mxu0 0
          %3494 = vmatpush1.bf16.msra.mxu0 0
          %3495 = vmatprep.mubr.bf16.mxu0 0
          %3496 = vmatmul.mubr.bf16.gmra.mrb[0].mxu0 %v3419
          %v3497 = vpop.f32.mrb[0].mxu0
          %v3498 = vadd.f32 0.0, %v3497
          %v3499 = vpop.f32.mrb[0].mxu0
          %v3500 = vadd.f32 0.0, %v3499
          %v3501 = vpop.f32.mrb[0].mxu0
          %v3502 = vadd.f32 0.0, %v3501
          %v3503 = vpop.f32.mrb[0].mxu0
          %v3504 = vadd.f32 0.0, %v3503
          %3505 = vdwg.mxu0
          %v3506 = vadd.f32 %v3411, %v3455
          %v3507 = vadd.f32 %v3412, %v3457
          %v3508 = vadd.f32 %v3413, %v3498
          %v3509 = vadd.f32 %v3414, %v3500
          %v3510 = vadd.f32 %v3415, %v3459
          %v3511 = vadd.f32 %v3416, %v3461
          %v3512 = vadd.f32 %v3417, %v3502
          %v3513 = vadd.f32 %v3418, %v3504
          %v3514 = vxor.u32 %v3506, 2147483648
          %v3515 = vxor.u32 %v3510, 2147483648
          %v3516 = vmul.f32 %v3514, 1.442695
          %v3517 = vpow.pop %v3516
          %v3518 = vmul.f32 %v3515, 1.442695
          %v3519 = vpow.pop %v3518
          %v3520 = vadd.f32 %v3517, 1.0
          %v3521 = vadd.f32 %v3519, 1.0
          %v3522 = vrcp.pop %v3520
          %v3523 = vmul.f32 1.0, %v3522
          %v3524 = vrcp.pop %v3521
          %v3525 = vmul.f32 1.0, %v3524
          %v3526 = vxor.u32 %v3507, 2147483648
          %v3527 = vxor.u32 %v3511, 2147483648
          %v3528 = vmul.f32 %v3526, 1.442695
          %v3529 = vpow.pop %v3528
          %v3530 = vmul.f32 %v3527, 1.442695
          %v3531 = vpow.pop %v3530
          %v3532 = vadd.f32 %v3529, 1.0
          %v3533 = vadd.f32 %v3531, 1.0
          %v3534 = vrcp.pop %v3532
          %v3535 = vmul.f32 1.0, %v3534
          %v3536 = vrcp.pop %v3533
          %v3537 = vmul.f32 1.0, %v3536
          %v3538 = vtanh.pop %v3508
          %v3539 = vtanh.pop %v3512
          %v3540 = vxor.u32 %v3509, 2147483648
          %v3541 = vxor.u32 %v3513, 2147483648
          %v3542 = vmul.f32 %v3540, 1.442695
          %v3543 = vpow.pop %v3542
          %v3544 = vmul.f32 %v3541, 1.442695
          %v3545 = vpow.pop %v3544
          %v3546 = vadd.f32 %v3543, 1.0
          %v3547 = vadd.f32 %v3545, 1.0
          %v3548 = vrcp.pop %v3546
          %v3549 = vmul.f32 1.0, %v3548
          %v3550 = vrcp.pop %v3547
          %v3551 = vmul.f32 1.0, %v3550
          %v3552 = vmul.f32 %v3535, %v3402
          %v3553 = vmul.f32 %v3537, %v3403
          %v3554 = vmul.f32 %v3523, %v3538
          %v3555 = vmul.f32 %v3525, %v3539
          %v3556 = vadd.f32 %v3552, %v3554
          %v3557 = vadd.f32 %v3553, %v3555
          %v3558 = vtanh.pop %v3556
          %v3559 = vtanh.pop %v3557
          %v3560 = vmul.f32 %v3549, %v3558
          %v3561 = vmul.f32 %v3551, %v3559
        $region104: #{tpu_custom_call.1} parent=63 // loop_footer
          %s2348 = sadd.s32 1, %s2344
        $region105: #{tpu_custom_call.1} parent=63 // loop_footer_branch
          %2343 = sbr.rel target = $region101
        $region106: #{tpu_custom_call.1} parent=63 // loop_exit
          _
        %v3562 = vpack.c.bf16 %v2350, %v2349
        %v3563 = vld [vmem:[#allocation13] sm:$0xf]
        %v3564 = vld [vmem:[#allocation13 + $0x4] sm:$0xf]
        %v3565 = vld [vmem:[#allocation13 + $0x8] sm:$0xf]
        %v3566 = vld [vmem:[#allocation13 + $0xc] sm:$0xf]
        %v3567 = vld [vmem:[#allocation13 + $0x10] sm:$0xf]
        %v3568 = vld [vmem:[#allocation13 + $0x14] sm:$0xf]
        %v3569 = vld [vmem:[#allocation13 + $0x18] sm:$0xf]
        %v3570 = vld [vmem:[#allocation13 + $0x1c] sm:$0xf]
        %v3571 = vld [vmem:[#allocation13 + $0x20] sm:$0xf]
        %v3572 = vld [vmem:[#allocation13 + $0x24] sm:$0xf]
        %v3573 = vld [vmem:[#allocation13 + $0x28] sm:$0xf]
        %v3574 = vld [vmem:[#allocation13 + $0x2c] sm:$0xf]
        %v3575 = vld [vmem:[#allocation13 + $0x30] sm:$0xf]
        %v3576 = vld [vmem:[#allocation13 + $0x34] sm:$0xf]
        %v3577 = vld [vmem:[#allocation13 + $0x38] sm:$0xf]
        %v3578 = vld [vmem:[#allocation13 + $0x3c] sm:$0xf]
        %v3579 = vld [vmem:[%s8] sm:$0x1]
        %v3581 = vlaneseq
        %v3582 = vshrl.u32 %v3581, 7
        %v3583 = vsub.s32 0, %v3582
        %v3584 = vrot.slane %v3579, %v3583
        %v3602 = vunpack.c.l.b16 %v3563
        %v3603 = vunpack.c.l.b16 %v3564
        %v3604 = vunpack.c.l.b16 %v3565
        %v3605 = vunpack.c.l.b16 %v3566
        %v3606 = vunpack.c.l.b16 %v3567
        %v3607 = vunpack.c.l.b16 %v3568
        %v3608 = vunpack.c.l.b16 %v3569
        %v3609 = vunpack.c.l.b16 %v3570
        %v3610 = vunpack.c.l.b16 %v3571
        %v3611 = vunpack.c.l.b16 %v3572
        %v3612 = vunpack.c.l.b16 %v3573
        %v3613 = vunpack.c.l.b16 %v3574
        %v3614 = vunpack.c.l.b16 %v3575
        %v3615 = vunpack.c.l.b16 %v3576
        %v3616 = vunpack.c.l.b16 %v3577
        %v3617 = vunpack.c.l.b16 %v3578
        %v3618 = vpack.c.b16 %v3603, %v3602
        %v3619 = vpack.c.b16 %v3605, %v3604
        %v3620 = vpack.c.b16 %v3607, %v3606
        %v3621 = vpack.c.b16 %v3609, %v3608
        %v3622 = vpack.c.b16 %v3611, %v3610
        %v3623 = vpack.c.b16 %v3613, %v3612
        %v3624 = vpack.c.b16 %v3615, %v3614
        %v3625 = vpack.c.b16 %v3617, %v3616
        %3634 = vmatprep.subr.bf16.mxu0 0
        %3635 = vmatpush1.bf16.msra.mxu0 %v3618
        %3636 = vmatprep.subr.bf16.mxu0 0
        %3637 = vmatpush1.bf16.msra.mxu0 %v3619
        %3638 = vmatprep.subr.bf16.mxu0 0
        %3639 = vmatpush1.bf16.msra.mxu0 %v3620
        %3640 = vmatprep.subr.bf16.mxu0 0
        %3641 = vmatpush1.bf16.msra.mxu0 %v3621
        %3642 = vmatprep.subr.bf16.mxu0 0
        %3643 = vmatpush1.bf16.msra.mxu0 %v3622
        %3644 = vmatprep.subr.bf16.mxu0 0
        %3645 = vmatpush1.bf16.msra.mxu0 %v3623
        %3646 = vmatprep.subr.bf16.mxu0 0
        %3647 = vmatpush1.bf16.msra.mxu0 %v3624
        %3648 = vmatprep.subr.bf16.mxu0 0
        %3649 = vmatpush1.bf16.msra.mxu0 %v3625
        %3650 = vmatprep.subr.bf16.mxu0 0
        %3651 = vmatpush1.bf16.msra.mxu0 0
        %3652 = vmatprep.subr.bf16.mxu0 0
        %3653 = vmatpush1.bf16.msra.mxu0 0
        %3654 = vmatprep.subr.bf16.mxu0 0
        %3655 = vmatpush1.bf16.msra.mxu0 0
        %3656 = vmatprep.subr.bf16.mxu0 0
        %3657 = vmatpush1.bf16.msra.mxu0 0
        %3658 = vmatprep.subr.bf16.mxu0 0
        %3659 = vmatpush1.bf16.msra.mxu0 0
        %3660 = vmatprep.subr.bf16.mxu0 0
        %3661 = vmatpush1.bf16.msra.mxu0 0
        %3662 = vmatprep.subr.bf16.mxu0 0
        %3663 = vmatpush1.bf16.msra.mxu0 0
        %3664 = vmatprep.subr.bf16.mxu0 0
        %3665 = vmatpush1.bf16.msra.mxu0 0
        %3666 = vmatprep.mubr.bf16.mxu0 0
        %3667 = vmatmul.mubr.bf16.gmra.mrb[0].mxu0 %v3562
        %v3668 = vpop.f32.mrb[0].mxu0
        %v3669 = vadd.f32 %v3584, %v3668
        %v3670 = vpop.f32.mrb[0].mxu0
        %v3671 = vpop.f32.mrb[0].mxu0
        %v3672 = vadd.f32 %v3584, %v3671
        %v3673 = vpop.f32.mrb[0].mxu0
        %3674 = vdwg.mxu0
        %vm3675 = vcmp.gt.f32.partialorder %v3669, 0.0
        %vm3676 = vcmp.gt.f32.partialorder %v3672, 0.0
        %v3677 = vmul.f32 %v3669, 0.01
        %v3678 = vmul.f32 %v3672, 0.01
        %v3679 = vsel %vm3675, %v3669, %v3677
        %v3680 = vsel %vm3676, %v3672, %v3678
        %v3681 = vpack.c.bf16 %v3680, %v3679
        %v3682 = vld [vmem:[#allocation15] sm:$0xf]
        %v3683 = vld [vmem:[#allocation15 + $0x4] sm:$0xf]
        %v3684 = vld [vmem:[#allocation15 + $0x8] sm:$0xf]
        %v3685 = vld [vmem:[#allocation15 + $0xc] sm:$0xf]
        %v3686 = vld [vmem:[#allocation15 + $0x10] sm:$0xf]
        %v3687 = vld [vmem:[#allocation15 + $0x14] sm:$0xf]
        %v3688 = vld [vmem:[#allocation15 + $0x18] sm:$0xf]
        %v3689 = vld [vmem:[#allocation15 + $0x1c] sm:$0xf]
        %v3690 = vld [vmem:[#allocation15 + $0x20] sm:$0xf]
        %v3691 = vld [vmem:[#allocation15 + $0x24] sm:$0xf]
        %v3692 = vld [vmem:[#allocation15 + $0x28] sm:$0xf]
        %v3693 = vld [vmem:[#allocation15 + $0x2c] sm:$0xf]
        %v3694 = vld [vmem:[#allocation15 + $0x30] sm:$0xf]
        %v3695 = vld [vmem:[#allocation15 + $0x34] sm:$0xf]
        %v3696 = vld [vmem:[#allocation15 + $0x38] sm:$0xf]
        %v3697 = vld [vmem:[#allocation15 + $0x3c] sm:$0xf]
        %v3698 = vld [vmem:[%s10] sm:$0x1]
        %v3700 = vlaneseq
        %v3701 = vshrl.u32 %v3700, 7
        %v3702 = vsub.s32 0, %v3701
        %v3703 = vrot.slane %v3698, %v3702
        %v3721 = vunpack.c.l.b16 %v3682
        %v3722 = vunpack.c.l.b16 %v3683
        %v3723 = vunpack.c.l.b16 %v3684
        %v3724 = vunpack.c.l.b16 %v3685
        %v3725 = vunpack.c.l.b16 %v3686
        %v3726 = vunpack.c.l.b16 %v3687
        %v3727 = vunpack.c.l.b16 %v3688
        %v3728 = vunpack.c.l.b16 %v3689
        %v3729 = vunpack.c.l.b16 %v3690
        %v3730 = vunpack.c.l.b16 %v3691
        %v3731 = vunpack.c.l.b16 %v3692
        %v3732 = vunpack.c.l.b16 %v3693
        %v3733 = vunpack.c.l.b16 %v3694
        %v3734 = vunpack.c.l.b16 %v3695
        %v3735 = vunpack.c.l.b16 %v3696
        %v3736 = vunpack.c.l.b16 %v3697
        %v3737 = vpack.c.b16 %v3722, %v3721
        %v3738 = vpack.c.b16 %v3724, %v3723
        %v3739 = vpack.c.b16 %v3726, %v3725
        %v3740 = vpack.c.b16 %v3728, %v3727
        %v3741 = vpack.c.b16 %v3730, %v3729
        %v3742 = vpack.c.b16 %v3732, %v3731
        %v3743 = vpack.c.b16 %v3734, %v3733
        %v3744 = vpack.c.b16 %v3736, %v3735
        %3753 = vmatprep.subr.bf16.mxu0 0
        %3754 = vmatpush1.bf16.msra.mxu0 %v3737
        %3755 = vmatprep.subr.bf16.mxu0 0
        %3756 = vmatpush1.bf16.msra.mxu0 %v3738
        %3757 = vmatprep.subr.bf16.mxu0 0
        %3758 = vmatpush1.bf16.msra.mxu0 %v3739
        %3759 = vmatprep.subr.bf16.mxu0 0
        %3760 = vmatpush1.bf16.msra.mxu0 %v3740
        %3761 = vmatprep.subr.bf16.mxu0 0
        %3762 = vmatpush1.bf16.msra.mxu0 %v3741
        %3763 = vmatprep.subr.bf16.mxu0 0
        %3764 = vmatpush1.bf16.msra.mxu0 %v3742
        %3765 = vmatprep.subr.bf16.mxu0 0
        %3766 = vmatpush1.bf16.msra.mxu0 %v3743
        %3767 = vmatprep.subr.bf16.mxu0 0
        %3768 = vmatpush1.bf16.msra.mxu0 %v3744
        %3769 = vmatprep.subr.bf16.mxu0 0
        %3770 = vmatpush1.bf16.msra.mxu0 0
        %3771 = vmatprep.subr.bf16.mxu0 0
        %3772 = vmatpush1.bf16.msra.mxu0 0
        %3773 = vmatprep.subr.bf16.mxu0 0
        %3774 = vmatpush1.bf16.msra.mxu0 0
        %3775 = vmatprep.subr.bf16.mxu0 0
        %3776 = vmatpush1.bf16.msra.mxu0 0
        %3777 = vmatprep.subr.bf16.mxu0 0
        %3778 = vmatpush1.bf16.msra.mxu0 0
        %3779 = vmatprep.subr.bf16.mxu0 0
        %3780 = vmatpush1.bf16.msra.mxu0 0
        %3781 = vmatprep.subr.bf16.mxu0 0
        %3782 = vmatpush1.bf16.msra.mxu0 0
        %3783 = vmatprep.subr.bf16.mxu0 0
        %3784 = vmatpush1.bf16.msra.mxu0 0
        %3785 = vmatprep.mubr.bf16.mxu0 0
        %3786 = vmatmul.mubr.bf16.gmra.mrb[0].mxu0 %v3681
        %v3787 = vpop.f32.mrb[0].mxu0
        %v3788 = vadd.f32 %v3703, %v3787
        %v3789 = vpop.f32.mrb[0].mxu0
        %v3790 = vpop.f32.mrb[0].mxu0
        %v3791 = vadd.f32 %v3703, %v3790
        %v3792 = vpop.f32.mrb[0].mxu0
        %3793 = vdwg.mxu0
        %vm3794 = vcmp.gt.f32.partialorder %v3788, 0.0
        %vm3795 = vcmp.gt.f32.partialorder %v3791, 0.0
        %v3796 = vmul.f32 %v3788, 0.01
        %v3797 = vmul.f32 %v3791, 0.01
        %v3798 = vsel %vm3794, %v3788, %v3796
        %v3799 = vsel %vm3795, %v3791, %v3797
        %3800 = vst [vmem:[%s491] sm:$0xff] %v3798
        %3801 = vst [vmem:[%s491 + $0x8] sm:$0xff] %v3799
        %s3802 = sand.u32 %s275, 1
        %s3803 = scalar_lea.sflag [#allocation6], %s3802
        %s3804 = sand.u32 %s275, 1
        %s3805 = smul.addr %s3804, 16
        %s3806 = scalar_lea.vmem [#allocation16], %s3805
        // Predicated region
        $region107: #{tpu_custom_call.1} parent=63 // pred_check
          %p3807 = pneg %p285
        $region108: #{tpu_custom_call.1} parent=63 // pred_check_branch
          %3809 = sbr.rel (%p3807) target = $region110
        $region109: #{tpu_custom_call.1} parent=63 // pred_region
          %s3810 = smul.u32 2, %s31
          %s3812 = ssub.s32 256, 256
          %3813 = vsyncadd %s3803, %s3812
          %s3814 = smul.addr %s3810, 128
          %s3815 = scalar_lea.hbm %s11, %s3814
          %s3816 = sshll.u32 %s3806, 4
          %s3817 = int_to_ptr.vmem [resolvable:$true] %s3816
          %3822 = dma.vmem_to_hbm [thread:$0]  %s3817, 256, %s3815, %s3803, 128, 128, 8
        $region110: #{tpu_custom_call.1} parent=63 // pred_fallthru
          _
      $region64: #{tpu_custom_call.1} parent=5 // pred_fallthru
        _
      %p3823 = scmp.le.s32.totalorder 2, %s26
      // Predicated region
      $region111: #{tpu_custom_call.1} parent=5 // pred_check
        %p3824 = pneg %p3823
      $region112: #{tpu_custom_call.1} parent=5 // pred_check_branch
        %3826 = sbr.rel (%p3824) target = $region114
      $region113: #{tpu_custom_call.1} parent=5 // pred_region
        %s3827 = ssub.s32 %s26, 2
        // Predicated region
        $region115: #{tpu_custom_call.1} parent=113 // pred_check
          %p3828 = pneg %p291
        $region116: #{tpu_custom_call.1} parent=113 // pred_check_branch
          %3830 = sbr.rel (%p3828) target = $region118
        $region117: #{tpu_custom_call.1} parent=113 // pred_region
          %s3831 = sand.u32 %s276, 1
          %s3832 = scalar_lea.sflag [#allocation6], %s3831
          %s3833 = sand.u32 %s276, 1
          %s3834 = smul.addr %s3833, 16
          %s3835 = scalar_lea.vmem [#allocation16], %s3834
          %3836 = dma.done %s3832, 256
        $region118: #{tpu_custom_call.1} parent=113 // pred_fallthru
          _
      $region114: #{tpu_custom_call.1} parent=5 // pred_fallthru
        _
    $region6: #{tpu_custom_call.1} parent=1 // loop_footer
      %s30 = sadd.s32 1, %s26
    $region7: #{tpu_custom_call.1} parent=1 // loop_footer_branch
      %25 = sbr.rel target = $region3
    $region8: #{tpu_custom_call.1} parent=1 // loop_exit
      _
    %3837 = vsyncpa [#allocation5], 1
    %s3838 = scalar_lea.sflag [#allocation5], 1
    %3839 = vsyncpa %s3838, 1
    %3840 = vsyncpa [#allocation8], 1
    %3841 = vsyncpa [#allocation11], 1
    %3842 = vsyncpa [#allocation14], 1
    %3843 = vsyncpa [#allocation6], 1
    %s3844 = scalar_lea.sflag [#allocation6], 1
    %3845 = vsyncpa %s3844, 1

</llo_original>
